<compile_context>
chip_gen: v7x
topology: tpu7x:2x2x1
jax: 0.10.0
libtpu: 0.0.40
codegen_flags: <defaults>
</compile_context>

<pallas_src>
import functools

import jax
import jax.numpy as jnp
import numpy as np
from jax import lax
from jax.experimental import pallas as pl
from jax.experimental.pallas import tpu as pltpu


def _pick_tile(total: int, target: int) -> int:
    """Largest tile <= target that divides `total` and keeps the sublane dim 8-aligned."""
    if total <= target:
        return total
    for t in range(min(target, total), 0, -1):
        if total % t == 0 and t % 8 == 0:
            return t
    return total  # no aligned divisor -> fall back to the full dimension (no tiling)


def _attn_kernel(x_ref, f_ref, wk_ref, bk_ref, wv_ref, bv_ref, wp_ref, bp_ref,
                 o_ref, acc_ref, m_ref, l_ref, *, num_heads: int, head_dim: int):
    # x_ref:  (1, tq,  C)   query tile (native dtype)
    # f_ref:  (1, tkv, C)   feature (kv) tile (native dtype)
    # wk/wv/wp_ref: (C, C)  pre-transposed weights (scale folded into wk)
    # bk/bv/bp_ref: (1, C)  biases (f32)
    # o_ref:  (1, tq,  C)   output tile
    # acc_ref: (H, tq, hd) f32   running sum of p@v per head
    # m_ref:   (H, tq, 1)  f32   running row max per head
    # l_ref:   (H, tq, 1)  f32   running softmax denominator per head
    ki = pl.program_id(2)

    @pl.when(ki == 0)
    def _init():
        acc_ref[...] = jnp.zeros(acc_ref.shape, acc_ref.dtype)
        m_ref[...] = jnp.full(m_ref.shape, -jnp.inf, m_ref.dtype)
        l_ref[...] = jnp.zeros(l_ref.shape, l_ref.dtype)

    dt = x_ref.dtype
    xq = x_ref[0]                                # (tq, C)
    feat = f_ref[0]                              # (tkv, C)

    # Fused K / V projections for this kv tile: MXU in native dtype, f32 accumulation.
    # The softmax scale is already folded into wk / bk on the host.
    k = (jnp.dot(feat, wk_ref[...], preferred_element_type=jnp.float32)
         + bk_ref[...]).astype(dt)               # (tkv, C)
    v = (jnp.dot(feat, wv_ref[...], preferred_element_type=jnp.float32)
         + bv_ref[...]).astype(dt)               # (tkv, C)

    # Per-head online softmax.  The head loop is unrolled at trace time and all
    # state is addressed with static indices/slices (no concatenate, no cross-head
    # liveness of outputs).
    for h in range(num_heads):
        sl = slice(h * head_dim, (h + 1) * head_dim)
        qh = xq[:, sl]                           # (tq, hd)
        kh = k[:, sl]                            # (tkv, hd)
        vh = v[:, sl]                            # (tkv, hd)

        # (tq, hd) x (tkv, hd) contracted over hd -> (tq, tkv); expressed as a
        # dot_general so no transposed copy of kh is materialized.
        s = lax.dot_general(qh, kh, (((1,), (1,)), ((), ())),
                            preferred_element_type=jnp.float32)

        m_prev = m_ref[h]                                        # (tq, 1)
        m_new = jnp.maximum(m_prev, s.max(axis=-1, keepdims=True))
        alpha = jnp.exp(m_prev - m_new)                          # (tq, 1)
        p = jnp.exp(s - m_new)                                   # (tq, tkv) f32
        l_ref[h] = alpha * l_ref[h] + p.sum(axis=-1, keepdims=True)
        acc_ref[h] = alpha * acc_ref[h] + jnp.dot(
            p.astype(dt), vh, preferred_element_type=jnp.float32)
        m_ref[h] = m_new

    @pl.when(ki == pl.num_programs(2) - 1)
    def _finalize():
        # out = concat_h(o_h) @ Wp^T + bp  ==  sum_h o_h @ Wp^T[h*hd:(h+1)*hd, :] + bp,
        # so the per-head accumulators are projected directly (no concat / reshape),
        # and the final store is a single lane-dense (tq, C) block.
        tq = acc_ref.shape[1]
        out = jnp.zeros((tq, o_ref.shape[-1]), jnp.float32)
        for h in range(num_heads):
            inv_l = pl.reciprocal(l_ref[h], approx=True)          # (tq, 1), EUP slot
            o_h = (acc_ref[h] * inv_l).astype(dt)                 # (tq, hd)
            out = out + jnp.dot(o_h, wp_ref[h * head_dim:(h + 1) * head_dim, :],
                                preferred_element_type=jnp.float32)
        out = out + bp_ref[...]
        o_ref[0] = out.astype(o_ref.dtype)


def attention_csubject(feature, x, params, *, num_heads: int,
                       q_block: int = 256, kv_block: int = 512):
    """Pallas forward of Attention_csubject with csubject_mask=None.

    feature: (B, N, C) key/value source, x: (B, n, C) query source.
    Returns (out (B, n, C), l_att=0.0).
    """
    B, N, C = feature.shape
    Bx, n, Cx = x.shape
    assert Bx == B and Cx == C and C % num_heads == 0
    head_dim = C // num_heads
    scale = head_dim ** (-0.5)
    dt = x.dtype

    # PyTorch nn.Linear stores weight as (out, in). Split the fused kv projection into
    # K and V, fold the softmax scale into K ( (q*scale)@k^T == q@(scale*k)^T ),
    # and pre-transpose for the kernel. Weights ride in the compute dtype; biases in f32.
    kv_w, kv_b = params["kv_w"], params["kv_b"]
    wk_t = (scale * kv_w[:C, :]).T.astype(dt)              # (C, C)
    wv_t = kv_w[C:, :].T.astype(dt)                        # (C, C)
    bk = (scale * kv_b[:C])[None, :].astype(jnp.float32)   # (1, C)
    bv = kv_b[C:][None, :].astype(jnp.float32)             # (1, C)
    wp_t = params["proj_w"].T.astype(dt)                   # (C, C)
    bp = params["proj_b"][None, :].astype(jnp.float32)     # (1, C)

    tq = _pick_tile(n, q_block)
    tkv = _pick_tile(N, kv_block)
    grid = (B, n // tq, N // tkv)

    kernel = functools.partial(_attn_kernel, num_heads=num_heads, head_dim=head_dim)

    itemsize = jnp.dtype(dt).itemsize
    flops = (2 * B * N * C * (2 * C)      # fused K/V projection
             + 4 * B * n * N * C          # q@k^T and attn@v over all heads
             + 2 * B * n * C * C)         # output projection
    transcendentals = B * num_heads * n * N
    bytes_accessed = int(itemsize * (feature.size + x.size + B * n * C + 3 * C * C)
                         + 4 * 3 * C)
    cost = pl.CostEstimate(flops=int(flops), transcendentals=int(transcendentals),
                           bytes_accessed=bytes_accessed)

    out = pl.pallas_call(
        kernel,
        out_shape=jax.ShapeDtypeStruct((B, n, C), dt),
        grid_spec=pltpu.PrefetchScalarGridSpec(
            num_scalar_prefetch=0,
            grid=grid,
            in_specs=[
                pl.BlockSpec((1, tq, C), lambda b, qi, ki: (b, qi, 0)),    # x (queries)
                pl.BlockSpec((1, tkv, C), lambda b, qi, ki: (b, ki, 0)),   # feature (kv)
                pl.BlockSpec((C, C), lambda b, qi, ki: (0, 0)),            # wk (scaled)
                pl.BlockSpec((1, C), lambda b, qi, ki: (0, 0)),            # bk (scaled)
                pl.BlockSpec((C, C), lambda b, qi, ki: (0, 0)),            # wv
                pl.BlockSpec((1, C), lambda b, qi, ki: (0, 0)),            # bv
                pl.BlockSpec((C, C), lambda b, qi, ki: (0, 0)),            # wproj
                pl.BlockSpec((1, C), lambda b, qi, ki: (0, 0)),            # bproj
            ],
            out_specs=pl.BlockSpec((1, tq, C), lambda b, qi, ki: (b, qi, 0)),
            scratch_shapes=[
                pltpu.VMEM((num_heads, tq, head_dim), jnp.float32),  # running p@v
                pltpu.VMEM((num_heads, tq, 1), jnp.float32),         # running max
                pltpu.VMEM((num_heads, tq, 1), jnp.float32),         # running denom
            ],
        ),
        compiler_params=pltpu.CompilerParams(
            dimension_semantics=("parallel", "parallel", "arbitrary"),
            vmem_limit_bytes=64 * 1024 * 1024,
        ),
        cost_estimate=cost,
    )(x, feature, wk_t, bk, wv_t, bv, wp_t, bp)

    l_att = jnp.float32(0.0)  # csubject_mask is None
    return out, l_att


def _reference(feature, x, params, *, num_heads: int):
    """Pure-JAX reference mirroring the PyTorch forward exactly."""
    B, N, C = feature.shape
    _, n, _ = x.shape
    hd = C // num_heads
    scale = hd ** (-0.5)
    kv = feature @ params["kv_w"].T + params["kv_b"]                  # (B, N, 2C)
    kv = kv.reshape(B, N, 2, num_heads, hd).transpose(2, 0, 3, 1, 4)  # (2, B, H, N, hd)
    k, v = kv[0], kv[1]
    q = x.reshape(B, n, num_heads, hd).transpose(0, 2, 1, 3) * scale  # (B, H, n, hd)
    attn = jax.nn.softmax(q @ jnp.swapaxes(k, -2, -1), axis=-1)       # (B, H, n, N)
    o = (attn @ v).transpose(0, 2, 1, 3).reshape(B, n, C)
    return o @ params["proj_w"].T + params["proj_b"]


if __name__ == "__main__":
    # Small shapes, but chosen to exercise the query tiling AND the online-softmax
    # accumulation across multiple kv tiles, with a lane-dense (C=128) output.
    B, N, n, C, H = 2, 256, 128, 128, 4

    key = jax.random.PRNGKey(0)
    kf, kx, k1, k2, k3, k4 = jax.random.split(key, 6)

    feature = jax.random.normal(kf, (B, N, C), dtype=jnp.float32)
    x = jax.random.normal(kx, (B, n, C), dtype=jnp.float32)

    params = {
        "kv_w": 0.1 * jax.random.normal(k1, (2 * C, C), dtype=jnp.float32),
        "kv_b": 0.1 * jax.random.normal(k2, (2 * C,), dtype=jnp.float32),
        "proj_w": 0.1 * jax.random.normal(k3, (C, C), dtype=jnp.float32),
        "proj_b": 0.1 * jax.random.normal(k4, (C,), dtype=jnp.float32),
    }

    out, l_att = attention_csubject(feature, x, params, num_heads=H,
                                    q_block=64, kv_block=128)   # grid = (2, 2, 2)
    out = jax.block_until_ready(out)

    ref = _reference(feature, x, params, num_heads=H)
    # Tolerance covers the approximate (EUP) reciprocal used for the softmax denominator
    # and the online-softmax reassociation; both are ~1e-4 relative.
    np.testing.assert_allclose(np.asarray(out), np.asarray(ref), rtol=5e-3, atol=5e-3)
    assert out.shape == (B, n, C)
    assert float(l_att) == 0.0

    print("KERNEL_OK")
</pallas_src>

<mosaic_0001>
module attributes {stable_mosaic.version = 11 : i64} {
  func.func @_attn_kernel(%arg0: i32, %arg1: i32, %arg2: i32, %arg3: memref<1x64x128xf32, #tpu.memory_space<vmem>>, %arg4: memref<1x128x128xf32, #tpu.memory_space<vmem>>, %arg5: memref<128x128xf32, #tpu.memory_space<vmem>>, %arg6: memref<1x128xf32, #tpu.memory_space<vmem>>, %arg7: memref<128x128xf32, #tpu.memory_space<vmem>>, %arg8: memref<1x128xf32, #tpu.memory_space<vmem>>, %arg9: memref<128x128xf32, #tpu.memory_space<vmem>>, %arg10: memref<1x128xf32, #tpu.memory_space<vmem>>, %arg11: memref<1x64x128xf32, #tpu.memory_space<vmem>>, %arg12: memref<4x64x32xf32, #tpu.memory_space<vmem>>, %arg13: memref<4x64x1xf32, #tpu.memory_space<vmem>>, %arg14: memref<4x64x1xf32, #tpu.memory_space<vmem>>) attributes {dimension_semantics = [#tpu.dimension_semantics<parallel>, #tpu.dimension_semantics<parallel>, #tpu.dimension_semantics<arbitrary>], iteration_bounds = array<i64: 2, 2, 2>, scalar_prefetch = 0 : i64, scratch_operands = 3 : i64, tpu.core_type = #tpu.core_type<tc>, window_params = [{transform_indices = @transform_0, window_bounds = array<i64: 1, 64, 128>}, {transform_indices = @transform_1, window_bounds = array<i64: 1, 128, 128>}, {pipeline_mode = #tpu.pipeline_mode<synchronous>, transform_indices = @transform_2, window_bounds = array<i64: 128, 128>}, {pipeline_mode = #tpu.pipeline_mode<synchronous>, transform_indices = @transform_3, window_bounds = array<i64: 1, 128>}, {pipeline_mode = #tpu.pipeline_mode<synchronous>, transform_indices = @transform_4, window_bounds = array<i64: 128, 128>}, {pipeline_mode = #tpu.pipeline_mode<synchronous>, transform_indices = @transform_5, window_bounds = array<i64: 1, 128>}, {pipeline_mode = #tpu.pipeline_mode<synchronous>, transform_indices = @transform_6, window_bounds = array<i64: 128, 128>}, {pipeline_mode = #tpu.pipeline_mode<synchronous>, transform_indices = @transform_7, window_bounds = array<i64: 1, 128>}, {transform_indices = @transform_8, window_bounds = array<i64: 1, 64, 128>}]} {
    %c0_i32 = arith.constant 0 : i32
    %0 = arith.cmpi eq, %arg2, %c0_i32 : i32
    %1 = arith.extui %0 : i1 to i32
    %c0_i32_0 = arith.constant 0 : i32
    %2 = arith.cmpi ne, %1, %c0_i32_0 : i32
    scf.if %2 {
      %cst_101 = arith.constant 0.000000e+00 : f32
      %160 = vector.broadcast %cst_101 : f32 to vector<4x64x32xf32>
      %c0_102 = arith.constant 0 : index
      %c0_103 = arith.constant 0 : index
      %c0_104 = arith.constant 0 : index
      %161 = vector.load %arg12[%c0_102, %c0_103, %c0_104] : memref<4x64x32xf32, #tpu.memory_space<vmem>>, vector<4x64x32xf32>
      tpu.vector_store %arg12[%c0_102, %c0_103, %c0_104], %160 {strides = array<i32>} : memref<4x64x32xf32, #tpu.memory_space<vmem>>, vector<4x64x32xf32>,
      %cst_105 = arith.constant 0xFF800000 : f32
      %162 = vector.broadcast %cst_105 : f32 to vector<4x64x1xf32>
      %c0_106 = arith.constant 0 : index
      %c0_107 = arith.constant 0 : index
      %c0_108 = arith.constant 0 : index
      %163 = vector.load %arg13[%c0_106, %c0_107, %c0_108] : memref<4x64x1xf32, #tpu.memory_space<vmem>>, vector<4x64x1xf32>
      tpu.vector_store %arg13[%c0_106, %c0_107, %c0_108], %162 {strides = array<i32>} : memref<4x64x1xf32, #tpu.memory_space<vmem>>, vector<4x64x1xf32>,
      %cst_109 = arith.constant 0.000000e+00 : f32
      %164 = vector.broadcast %cst_109 : f32 to vector<4x64x1xf32>
      %c0_110 = arith.constant 0 : index
      %c0_111 = arith.constant 0 : index
      %c0_112 = arith.constant 0 : index
      %165 = vector.load %arg14[%c0_110, %c0_111, %c0_112] : memref<4x64x1xf32, #tpu.memory_space<vmem>>, vector<4x64x1xf32>
      tpu.vector_store %arg14[%c0_110, %c0_111, %c0_112], %164 {strides = array<i32>} : memref<4x64x1xf32, #tpu.memory_space<vmem>>, vector<4x64x1xf32>,
    } else {
    }
    %c0 = arith.constant 0 : index
    %c0_1 = arith.constant 0 : index
    %c0_2 = arith.constant 0 : index
    %3 = vector.load %arg3[%c0, %c0_1, %c0_2] : memref<1x64x128xf32, #tpu.memory_space<vmem>>, vector<1x64x128xf32>
    %4 = vector.shape_cast %3 : vector<1x64x128xf32> to vector<64x128xf32>
    %c0_3 = arith.constant 0 : index
    %c0_4 = arith.constant 0 : index
    %c0_5 = arith.constant 0 : index
    %5 = vector.load %arg4[%c0_3, %c0_4, %c0_5] : memref<1x128x128xf32, #tpu.memory_space<vmem>>, vector<1x128x128xf32>
    %6 = vector.shape_cast %5 : vector<1x128x128xf32> to vector<128x128xf32>
    %c0_6 = arith.constant 0 : index
    %c0_7 = arith.constant 0 : index
    %7 = vector.load %arg5[%c0_6, %c0_7] : memref<128x128xf32, #tpu.memory_space<vmem>>, vector<128x128xf32>
    %cst = arith.constant dense<0.000000e+00> : vector<128x128xf32>
    %8 = tpu.matmul %6, %7, %cst {dimension_numbers = #tpu.dot_dimension_numbers<[1], [0], [0], [1], [0, 0, 1, 1], [], []>} : vector<128x128xf32>, vector<128x128xf32>, vector<128x128xf32> -> vector<128x128xf32>
    %c0_8 = arith.constant 0 : index
    %c0_9 = arith.constant 0 : index
    %9 = vector.load %arg6[%c0_8, %c0_9] : memref<1x128xf32, #tpu.memory_space<vmem>>, vector<1x128xf32>
    %10 = vector.broadcast %9 : vector<1x128xf32> to vector<128x128xf32>
    %11 = arith.addf %8, %10 : vector<128x128xf32>
    %c0_10 = arith.constant 0 : index
    %c0_11 = arith.constant 0 : index
    %12 = vector.load %arg7[%c0_10, %c0_11] : memref<128x128xf32, #tpu.memory_space<vmem>>, vector<128x128xf32>
    %cst_12 = arith.constant dense<0.000000e+00> : vector<128x128xf32>
    %13 = tpu.matmul %6, %12, %cst_12 {dimension_numbers = #tpu.dot_dimension_numbers<[1], [0], [0], [1], [0, 0, 1, 1], [], []>} : vector<128x128xf32>, vector<128x128xf32>, vector<128x128xf32> -> vector<128x128xf32>
    %c0_13 = arith.constant 0 : index
    %c0_14 = arith.constant 0 : index
    %14 = vector.load %arg8[%c0_13, %c0_14] : memref<1x128xf32, #tpu.memory_space<vmem>>, vector<1x128xf32>
    %15 = vector.broadcast %14 : vector<1x128xf32> to vector<128x128xf32>
    %16 = arith.addf %13, %15 : vector<128x128xf32>
    %17 = vector.extract_strided_slice %4 {offsets = [0, 0], sizes = [64, 32], strides = [1, 1]} : vector<64x128xf32> to vector<64x32xf32>
    %18 = vector.extract_strided_slice %11 {offsets = [0, 0], sizes = [128, 32], strides = [1, 1]} : vector<128x128xf32> to vector<128x32xf32>
    %19 = vector.extract_strided_slice %16 {offsets = [0, 0], sizes = [128, 32], strides = [1, 1]} : vector<128x128xf32> to vector<128x32xf32>
    %cst_15 = arith.constant dense<0.000000e+00> : vector<64x128xf32>
    %20 = tpu.matmul %17, %18, %cst_15 {dimension_numbers = #tpu.dot_dimension_numbers<[1], [1], [0], [0], [0, 0, 1, 0], [], []>} : vector<64x32xf32>, vector<128x32xf32>, vector<64x128xf32> -> vector<64x128xf32>
    %c0_16 = arith.constant 0 : index
    %c0_17 = arith.constant 0 : index
    %c0_18 = arith.constant 0 : index
    %21 = vector.load %arg13[%c0_16, %c0_17, %c0_18] : memref<4x64x1xf32, #tpu.memory_space<vmem>>, vector<1x64x1xf32>
    %22 = vector.shape_cast %21 : vector<1x64x1xf32> to vector<64x1xf32>
    %cst_19 = arith.constant dense<0xFF800000> : vector<64xf32>
    %23 = vector.multi_reduction <maximumf>, %20, %cst_19 [1] : vector<64x128xf32> to vector<64xf32>
    %24 = vector.shape_cast %23 : vector<64xf32> to vector<64x1xf32>
    %25 = arith.maximumf %22, %24 : vector<64x1xf32>
    %26 = arith.subf %22, %25 : vector<64x1xf32>
    %27 = math.exp %26 : vector<64x1xf32>
    %28 = vector.broadcast %25 : vector<64x1xf32> to vector<64x128xf32>
    %29 = arith.subf %20, %28 : vector<64x128xf32>
    %30 = math.exp %29 : vector<64x128xf32>
    %c0_20 = arith.constant 0 : index
    %c0_21 = arith.constant 0 : index
    %c0_22 = arith.constant 0 : index
    %31 = vector.load %arg14[%c0_20, %c0_21, %c0_22] : memref<4x64x1xf32, #tpu.memory_space<vmem>>, vector<1x64x1xf32>
    %32 = vector.shape_cast %31 : vector<1x64x1xf32> to vector<64x1xf32>
    %33 = arith.mulf %27, %32 : vector<64x1xf32>
    %cst_23 = arith.constant dense<0.000000e+00> : vector<64xf32>
    %34 = vector.multi_reduction <add>, %30, %cst_23 [1] : vector<64x128xf32> to vector<64xf32>
    %35 = vector.shape_cast %34 : vector<64xf32> to vector<64x1xf32>
    %36 = arith.addf %33, %35 : vector<64x1xf32>
    %c0_24 = arith.constant 0 : index
    %c0_25 = arith.constant 0 : index
    %c0_26 = arith.constant 0 : index
    %37 = vector.load %arg14[%c0_24, %c0_25, %c0_26] : memref<4x64x1xf32, #tpu.memory_space<vmem>>, vector<1x64x1xf32>
    %38 = vector.shape_cast %37 : vector<1x64x1xf32> to vector<64x1xf32>
    %39 = vector.shape_cast %36 : vector<64x1xf32> to vector<1x64x1xf32>
    tpu.vector_store %arg14[%c0_24, %c0_25, %c0_26], %39 {strides = array<i32>} : memref<4x64x1xf32, #tpu.memory_space<vmem>>, vector<1x64x1xf32>,
    %c0_27 = arith.constant 0 : index
    %c0_28 = arith.constant 0 : index
    %c0_29 = arith.constant 0 : index
    %40 = vector.load %arg12[%c0_27, %c0_28, %c0_29] : memref<4x64x32xf32, #tpu.memory_space<vmem>>, vector<1x64x32xf32>
    %41 = vector.shape_cast %40 : vector<1x64x32xf32> to vector<64x32xf32>
    %42 = vector.broadcast %27 : vector<64x1xf32> to vector<64x32xf32>
    %43 = arith.mulf %42, %41 : vector<64x32xf32>
    %cst_30 = arith.constant dense<0.000000e+00> : vector<64x32xf32>
    %44 = tpu.matmul %30, %19, %cst_30 {dimension_numbers = #tpu.dot_dimension_numbers<[1], [0], [0], [1], [0, 0, 1, 1], [], []>} : vector<64x128xf32>, vector<128x32xf32>, vector<64x32xf32> -> vector<64x32xf32>
    %45 = arith.addf %43, %44 : vector<64x32xf32>
    %c0_31 = arith.constant 0 : index
    %c0_32 = arith.constant 0 : index
    %c0_33 = arith.constant 0 : index
    %46 = vector.load %arg12[%c0_31, %c0_32, %c0_33] : memref<4x64x32xf32, #tpu.memory_space<vmem>>, vector<1x64x32xf32>
    %47 = vector.shape_cast %46 : vector<1x64x32xf32> to vector<64x32xf32>
    %48 = vector.shape_cast %45 : vector<64x32xf32> to vector<1x64x32xf32>
    tpu.vector_store %arg12[%c0_31, %c0_32, %c0_33], %48 {strides = array<i32>} : memref<4x64x32xf32, #tpu.memory_space<vmem>>, vector<1x64x32xf32>,
    %c0_34 = arith.constant 0 : index
    %c0_35 = arith.constant 0 : index
    %c0_36 = arith.constant 0 : index
    %49 = vector.load %arg13[%c0_34, %c0_35, %c0_36] : memref<4x64x1xf32, #tpu.memory_space<vmem>>, vector<1x64x1xf32>
    %50 = vector.shape_cast %49 : vector<1x64x1xf32> to vector<64x1xf32>
    %51 = vector.shape_cast %25 : vector<64x1xf32> to vector<1x64x1xf32>
    tpu.vector_store %arg13[%c0_34, %c0_35, %c0_36], %51 {strides = array<i32>} : memref<4x64x1xf32, #tpu.memory_space<vmem>>, vector<1x64x1xf32>,
    %52 = vector.extract_strided_slice %4 {offsets = [0, 32], sizes = [64, 32], strides = [1, 1]} : vector<64x128xf32> to vector<64x32xf32>
    %53 = vector.extract_strided_slice %11 {offsets = [0, 32], sizes = [128, 32], strides = [1, 1]} : vector<128x128xf32> to vector<128x32xf32>
    %54 = vector.extract_strided_slice %16 {offsets = [0, 32], sizes = [128, 32], strides = [1, 1]} : vector<128x128xf32> to vector<128x32xf32>
    %cst_37 = arith.constant dense<0.000000e+00> : vector<64x128xf32>
    %55 = tpu.matmul %52, %53, %cst_37 {dimension_numbers = #tpu.dot_dimension_numbers<[1], [1], [0], [0], [0, 0, 1, 0], [], []>} : vector<64x32xf32>, vector<128x32xf32>, vector<64x128xf32> -> vector<64x128xf32>
    %c1 = arith.constant 1 : index
    %c0_38 = arith.constant 0 : index
    %c0_39 = arith.constant 0 : index
    %56 = vector.load %arg13[%c1, %c0_38, %c0_39] : memref<4x64x1xf32, #tpu.memory_space<vmem>>, vector<1x64x1xf32>
    %57 = vector.shape_cast %56 : vector<1x64x1xf32> to vector<64x1xf32>
    %cst_40 = arith.constant dense<0xFF800000> : vector<64xf32>
    %58 = vector.multi_reduction <maximumf>, %55, %cst_40 [1] : vector<64x128xf32> to vector<64xf32>
    %59 = vector.shape_cast %58 : vector<64xf32> to vector<64x1xf32>
    %60 = arith.maximumf %57, %59 : vector<64x1xf32>
    %61 = arith.subf %57, %60 : vector<64x1xf32>
    %62 = math.exp %61 : vector<64x1xf32>
    %63 = vector.broadcast %60 : vector<64x1xf32> to vector<64x128xf32>
    %64 = arith.subf %55, %63 : vector<64x128xf32>
    %65 = math.exp %64 : vector<64x128xf32>
    %c1_41 = arith.constant 1 : index
    %c0_42 = arith.constant 0 : index
    %c0_43 = arith.constant 0 : index
    %66 = vector.load %arg14[%c1_41, %c0_42, %c0_43] : memref<4x64x1xf32, #tpu.memory_space<vmem>>, vector<1x64x1xf32>
    %67 = vector.shape_cast %66 : vector<1x64x1xf32> to vector<64x1xf32>
    %68 = arith.mulf %62, %67 : vector<64x1xf32>
    %cst_44 = arith.constant dense<0.000000e+00> : vector<64xf32>
    %69 = vector.multi_reduction <add>, %65, %cst_44 [1] : vector<64x128xf32> to vector<64xf32>
    %70 = vector.shape_cast %69 : vector<64xf32> to vector<64x1xf32>
    %71 = arith.addf %68, %70 : vector<64x1xf32>
    %c1_45 = arith.constant 1 : index
    %c0_46 = arith.constant 0 : index
    %c0_47 = arith.constant 0 : index
    %72 = vector.load %arg14[%c1_45, %c0_46, %c0_47] : memref<4x64x1xf32, #tpu.memory_space<vmem>>, vector<1x64x1xf32>
    %73 = vector.shape_cast %72 : vector<1x64x1xf32> to vector<64x1xf32>
    %74 = vector.shape_cast %71 : vector<64x1xf32> to vector<1x64x1xf32>
    tpu.vector_store %arg14[%c1_45, %c0_46, %c0_47], %74 {strides = array<i32>} : memref<4x64x1xf32, #tpu.memory_space<vmem>>, vector<1x64x1xf32>,
    %c1_48 = arith.constant 1 : index
    %c0_49 = arith.constant 0 : index
    %c0_50 = arith.constant 0 : index
    %75 = vector.load %arg12[%c1_48, %c0_49, %c0_50] : memref<4x64x32xf32, #tpu.memory_space<vmem>>, vector<1x64x32xf32>
    %76 = vector.shape_cast %75 : vector<1x64x32xf32> to vector<64x32xf32>
    %77 = vector.broadcast %62 : vector<64x1xf32> to vector<64x32xf32>
    %78 = arith.mulf %77, %76 : vector<64x32xf32>
    %cst_51 = arith.constant dense<0.000000e+00> : vector<64x32xf32>
    %79 = tpu.matmul %65, %54, %cst_51 {dimension_numbers = #tpu.dot_dimension_numbers<[1], [0], [0], [1], [0, 0, 1, 1], [], []>} : vector<64x128xf32>, vector<128x32xf32>, vector<64x32xf32> -> vector<64x32xf32>
    %80 = arith.addf %78, %79 : vector<64x32xf32>
    %c1_52 = arith.constant 1 : index
    %c0_53 = arith.constant 0 : index
    %c0_54 = arith.constant 0 : index
    %81 = vector.load %arg12[%c1_52, %c0_53, %c0_54] : memref<4x64x32xf32, #tpu.memory_space<vmem>>, vector<1x64x32xf32>
    %82 = vector.shape_cast %81 : vector<1x64x32xf32> to vector<64x32xf32>
    %83 = vector.shape_cast %80 : vector<64x32xf32> to vector<1x64x32xf32>
    tpu.vector_store %arg12[%c1_52, %c0_53, %c0_54], %83 {strides = array<i32>} : memref<4x64x32xf32, #tpu.memory_space<vmem>>, vector<1x64x32xf32>,
    %c1_55 = arith.constant 1 : index
    %c0_56 = arith.constant 0 : index
    %c0_57 = arith.constant 0 : index
    %84 = vector.load %arg13[%c1_55, %c0_56, %c0_57] : memref<4x64x1xf32, #tpu.memory_space<vmem>>, vector<1x64x1xf32>
    %85 = vector.shape_cast %84 : vector<1x64x1xf32> to vector<64x1xf32>
    %86 = vector.shape_cast %60 : vector<64x1xf32> to vector<1x64x1xf32>
    tpu.vector_store %arg13[%c1_55, %c0_56, %c0_57], %86 {strides = array<i32>} : memref<4x64x1xf32, #tpu.memory_space<vmem>>, vector<1x64x1xf32>,
    %87 = vector.extract_strided_slice %4 {offsets = [0, 64], sizes = [64, 32], strides = [1, 1]} : vector<64x128xf32> to vector<64x32xf32>
    %88 = vector.extract_strided_slice %11 {offsets = [0, 64], sizes = [128, 32], strides = [1, 1]} : vector<128x128xf32> to vector<128x32xf32>
    %89 = vector.extract_strided_slice %16 {offsets = [0, 64], sizes = [128, 32], strides = [1, 1]} : vector<128x128xf32> to vector<128x32xf32>
    %cst_58 = arith.constant dense<0.000000e+00> : vector<64x128xf32>
    %90 = tpu.matmul %87, %88, %cst_58 {dimension_numbers = #tpu.dot_dimension_numbers<[1], [1], [0], [0], [0, 0, 1, 0], [], []>} : vector<64x32xf32>, vector<128x32xf32>, vector<64x128xf32> -> vector<64x128xf32>
    %c2 = arith.constant 2 : index
    %c0_59 = arith.constant 0 : index
    %c0_60 = arith.constant 0 : index
    %91 = vector.load %arg13[%c2, %c0_59, %c0_60] : memref<4x64x1xf32, #tpu.memory_space<vmem>>, vector<1x64x1xf32>
    %92 = vector.shape_cast %91 : vector<1x64x1xf32> to vector<64x1xf32>
    %cst_61 = arith.constant dense<0xFF800000> : vector<64xf32>
    %93 = vector.multi_reduction <maximumf>, %90, %cst_61 [1] : vector<64x128xf32> to vector<64xf32>
    %94 = vector.shape_cast %93 : vector<64xf32> to vector<64x1xf32>
    %95 = arith.maximumf %92, %94 : vector<64x1xf32>
    %96 = arith.subf %92, %95 : vector<64x1xf32>
    %97 = math.exp %96 : vector<64x1xf32>
    %98 = vector.broadcast %95 : vector<64x1xf32> to vector<64x128xf32>
    %99 = arith.subf %90, %98 : vector<64x128xf32>
    %100 = math.exp %99 : vector<64x128xf32>
    %c2_62 = arith.constant 2 : index
    %c0_63 = arith.constant 0 : index
    %c0_64 = arith.constant 0 : index
    %101 = vector.load %arg14[%c2_62, %c0_63, %c0_64] : memref<4x64x1xf32, #tpu.memory_space<vmem>>, vector<1x64x1xf32>
    %102 = vector.shape_cast %101 : vector<1x64x1xf32> to vector<64x1xf32>
    %103 = arith.mulf %97, %102 : vector<64x1xf32>
    %cst_65 = arith.constant dense<0.000000e+00> : vector<64xf32>
    %104 = vector.multi_reduction <add>, %100, %cst_65 [1] : vector<64x128xf32> to vector<64xf32>
    %105 = vector.shape_cast %104 : vector<64xf32> to vector<64x1xf32>
    %106 = arith.addf %103, %105 : vector<64x1xf32>
    %c2_66 = arith.constant 2 : index
    %c0_67 = arith.constant 0 : index
    %c0_68 = arith.constant 0 : index
    %107 = vector.load %arg14[%c2_66, %c0_67, %c0_68] : memref<4x64x1xf32, #tpu.memory_space<vmem>>, vector<1x64x1xf32>
    %108 = vector.shape_cast %107 : vector<1x64x1xf32> to vector<64x1xf32>
    %109 = vector.shape_cast %106 : vector<64x1xf32> to vector<1x64x1xf32>
    tpu.vector_store %arg14[%c2_66, %c0_67, %c0_68], %109 {strides = array<i32>} : memref<4x64x1xf32, #tpu.memory_space<vmem>>, vector<1x64x1xf32>,
    %c2_69 = arith.constant 2 : index
    %c0_70 = arith.constant 0 : index
    %c0_71 = arith.constant 0 : index
    %110 = vector.load %arg12[%c2_69, %c0_70, %c0_71] : memref<4x64x32xf32, #tpu.memory_space<vmem>>, vector<1x64x32xf32>
    %111 = vector.shape_cast %110 : vector<1x64x32xf32> to vector<64x32xf32>
    %112 = vector.broadcast %97 : vector<64x1xf32> to vector<64x32xf32>
    %113 = arith.mulf %112, %111 : vector<64x32xf32>
    %cst_72 = arith.constant dense<0.000000e+00> : vector<64x32xf32>
    %114 = tpu.matmul %100, %89, %cst_72 {dimension_numbers = #tpu.dot_dimension_numbers<[1], [0], [0], [1], [0, 0, 1, 1], [], []>} : vector<64x128xf32>, vector<128x32xf32>, vector<64x32xf32> -> vector<64x32xf32>
    %115 = arith.addf %113, %114 : vector<64x32xf32>
    %c2_73 = arith.constant 2 : index
    %c0_74 = arith.constant 0 : index
    %c0_75 = arith.constant 0 : index
    %116 = vector.load %arg12[%c2_73, %c0_74, %c0_75] : memref<4x64x32xf32, #tpu.memory_space<vmem>>, vector<1x64x32xf32>
    %117 = vector.shape_cast %116 : vector<1x64x32xf32> to vector<64x32xf32>
    %118 = vector.shape_cast %115 : vector<64x32xf32> to vector<1x64x32xf32>
    tpu.vector_store %arg12[%c2_73, %c0_74, %c0_75], %118 {strides = array<i32>} : memref<4x64x32xf32, #tpu.memory_space<vmem>>, vector<1x64x32xf32>,
    %c2_76 = arith.constant 2 : index
    %c0_77 = arith.constant 0 : index
    %c0_78 = arith.constant 0 : index
    %119 = vector.load %arg13[%c2_76, %c0_77, %c0_78] : memref<4x64x1xf32, #tpu.memory_space<vmem>>, vector<1x64x1xf32>
    %120 = vector.shape_cast %119 : vector<1x64x1xf32> to vector<64x1xf32>
    %121 = vector.shape_cast %95 : vector<64x1xf32> to vector<1x64x1xf32>
    tpu.vector_store %arg13[%c2_76, %c0_77, %c0_78], %121 {strides = array<i32>} : memref<4x64x1xf32, #tpu.memory_space<vmem>>, vector<1x64x1xf32>,
    %122 = vector.extract_strided_slice %4 {offsets = [0, 96], sizes = [64, 32], strides = [1, 1]} : vector<64x128xf32> to vector<64x32xf32>
    %123 = vector.extract_strided_slice %11 {offsets = [0, 96], sizes = [128, 32], strides = [1, 1]} : vector<128x128xf32> to vector<128x32xf32>
    %124 = vector.extract_strided_slice %16 {offsets = [0, 96], sizes = [128, 32], strides = [1, 1]} : vector<128x128xf32> to vector<128x32xf32>
    %cst_79 = arith.constant dense<0.000000e+00> : vector<64x128xf32>
    %125 = tpu.matmul %122, %123, %cst_79 {dimension_numbers = #tpu.dot_dimension_numbers<[1], [1], [0], [0], [0, 0, 1, 0], [], []>} : vector<64x32xf32>, vector<128x32xf32>, vector<64x128xf32> -> vector<64x128xf32>
    %c3 = arith.constant 3 : index
    %c0_80 = arith.constant 0 : index
    %c0_81 = arith.constant 0 : index
    %126 = vector.load %arg13[%c3, %c0_80, %c0_81] : memref<4x64x1xf32, #tpu.memory_space<vmem>>, vector<1x64x1xf32>
    %127 = vector.shape_cast %126 : vector<1x64x1xf32> to vector<64x1xf32>
    %cst_82 = arith.constant dense<0xFF800000> : vector<64xf32>
    %128 = vector.multi_reduction <maximumf>, %125, %cst_82 [1] : vector<64x128xf32> to vector<64xf32>
    %129 = vector.shape_cast %128 : vector<64xf32> to vector<64x1xf32>
    %130 = arith.maximumf %127, %129 : vector<64x1xf32>
    %131 = arith.subf %127, %130 : vector<64x1xf32>
    %132 = math.exp %131 : vector<64x1xf32>
    %133 = vector.broadcast %130 : vector<64x1xf32> to vector<64x128xf32>
    %134 = arith.subf %125, %133 : vector<64x128xf32>
    %135 = math.exp %134 : vector<64x128xf32>
    %c3_83 = arith.constant 3 : index
    %c0_84 = arith.constant 0 : index
    %c0_85 = arith.constant 0 : index
    %136 = vector.load %arg14[%c3_83, %c0_84, %c0_85] : memref<4x64x1xf32, #tpu.memory_space<vmem>>, vector<1x64x1xf32>
    %137 = vector.shape_cast %136 : vector<1x64x1xf32> to vector<64x1xf32>
    %138 = arith.mulf %132, %137 : vector<64x1xf32>
    %cst_86 = arith.constant dense<0.000000e+00> : vector<64xf32>
    %139 = vector.multi_reduction <add>, %135, %cst_86 [1] : vector<64x128xf32> to vector<64xf32>
    %140 = vector.shape_cast %139 : vector<64xf32> to vector<64x1xf32>
    %141 = arith.addf %138, %140 : vector<64x1xf32>
    %c3_87 = arith.constant 3 : index
    %c0_88 = arith.constant 0 : index
    %c0_89 = arith.constant 0 : index
    %142 = vector.load %arg14[%c3_87, %c0_88, %c0_89] : memref<4x64x1xf32, #tpu.memory_space<vmem>>, vector<1x64x1xf32>
    %143 = vector.shape_cast %142 : vector<1x64x1xf32> to vector<64x1xf32>
    %144 = vector.shape_cast %141 : vector<64x1xf32> to vector<1x64x1xf32>
    tpu.vector_store %arg14[%c3_87, %c0_88, %c0_89], %144 {strides = array<i32>} : memref<4x64x1xf32, #tpu.memory_space<vmem>>, vector<1x64x1xf32>,
    %c3_90 = arith.constant 3 : index
    %c0_91 = arith.constant 0 : index
    %c0_92 = arith.constant 0 : index
    %145 = vector.load %arg12[%c3_90, %c0_91, %c0_92] : memref<4x64x32xf32, #tpu.memory_space<vmem>>, vector<1x64x32xf32>
    %146 = vector.shape_cast %145 : vector<1x64x32xf32> to vector<64x32xf32>
    %147 = vector.broadcast %132 : vector<64x1xf32> to vector<64x32xf32>
    %148 = arith.mulf %147, %146 : vector<64x32xf32>
    %cst_93 = arith.constant dense<0.000000e+00> : vector<64x32xf32>
    %149 = tpu.matmul %135, %124, %cst_93 {dimension_numbers = #tpu.dot_dimension_numbers<[1], [0], [0], [1], [0, 0, 1, 1], [], []>} : vector<64x128xf32>, vector<128x32xf32>, vector<64x32xf32> -> vector<64x32xf32>
    %150 = arith.addf %148, %149 : vector<64x32xf32>
    %c3_94 = arith.constant 3 : index
    %c0_95 = arith.constant 0 : index
    %c0_96 = arith.constant 0 : index
    %151 = vector.load %arg12[%c3_94, %c0_95, %c0_96] : memref<4x64x32xf32, #tpu.memory_space<vmem>>, vector<1x64x32xf32>
    %152 = vector.shape_cast %151 : vector<1x64x32xf32> to vector<64x32xf32>
    %153 = vector.shape_cast %150 : vector<64x32xf32> to vector<1x64x32xf32>
    tpu.vector_store %arg12[%c3_94, %c0_95, %c0_96], %153 {strides = array<i32>} : memref<4x64x32xf32, #tpu.memory_space<vmem>>, vector<1x64x32xf32>,
    %c3_97 = arith.constant 3 : index
    %c0_98 = arith.constant 0 : index
    %c0_99 = arith.constant 0 : index
    %154 = vector.load %arg13[%c3_97, %c0_98, %c0_99] : memref<4x64x1xf32, #tpu.memory_space<vmem>>, vector<1x64x1xf32>
    %155 = vector.shape_cast %154 : vector<1x64x1xf32> to vector<64x1xf32>
    %156 = vector.shape_cast %130 : vector<64x1xf32> to vector<1x64x1xf32>
    tpu.vector_store %arg13[%c3_97, %c0_98, %c0_99], %156 {strides = array<i32>} : memref<4x64x1xf32, #tpu.memory_space<vmem>>, vector<1x64x1xf32>,
    %c1_i32 = arith.constant 1 : i32
    %157 = arith.cmpi eq, %arg2, %c1_i32 : i32
    %158 = arith.extui %157 : i1 to i32
    %c0_i32_100 = arith.constant 0 : i32
    %159 = arith.cmpi ne, %158, %c0_i32_100 : i32
    scf.if %159 {
      %cst_101 = arith.constant 0.000000e+00 : f32
      %160 = vector.broadcast %cst_101 : f32 to vector<64x128xf32>
      %c0_102 = arith.constant 0 : index
      %c0_103 = arith.constant 0 : index
      %c0_104 = arith.constant 0 : index
      %161 = vector.load %arg14[%c0_102, %c0_103, %c0_104] : memref<4x64x1xf32, #tpu.memory_space<vmem>>, vector<1x64x1xf32>
      %162 = vector.shape_cast %161 : vector<1x64x1xf32> to vector<64x1xf32>
      %163 = tpu.reciprocal %162 {approx = true} : vector<64x1xf32> -> vector<64x1xf32>
      %c0_105 = arith.constant 0 : index
      %c0_106 = arith.constant 0 : index
      %c0_107 = arith.constant 0 : index
      %164 = vector.load %arg12[%c0_105, %c0_106, %c0_107] : memref<4x64x32xf32, #tpu.memory_space<vmem>>, vector<1x64x32xf32>
      %165 = vector.shape_cast %164 : vector<1x64x32xf32> to vector<64x32xf32>
      %166 = vector.broadcast %163 : vector<64x1xf32> to vector<64x32xf32>
      %167 = arith.mulf %165, %166 : vector<64x32xf32>
      %c0_108 = arith.constant 0 : index
      %c0_109 = arith.constant 0 : index
      %168 = vector.load %arg9[%c0_108, %c0_109] : memref<128x128xf32, #tpu.memory_space<vmem>>, vector<32x128xf32>
      %cst_110 = arith.constant dense<0.000000e+00> : vector<64x128xf32>
      %169 = tpu.matmul %167, %168, %cst_110 {dimension_numbers = #tpu.dot_dimension_numbers<[1], [0], [0], [1], [0, 0, 1, 1], [], []>} : vector<64x32xf32>, vector<32x128xf32>, vector<64x128xf32> -> vector<64x128xf32>
      %170 = arith.addf %160, %169 : vector<64x128xf32>
      %c1_111 = arith.constant 1 : index
      %c0_112 = arith.constant 0 : index
      %c0_113 = arith.constant 0 : index
      %171 = vector.load %arg14[%c1_111, %c0_112, %c0_113] : memref<4x64x1xf32, #tpu.memory_space<vmem>>, vector<1x64x1xf32>
      %172 = vector.shape_cast %171 : vector<1x64x1xf32> to vector<64x1xf32>
      %173 = tpu.reciprocal %172 {approx = true} : vector<64x1xf32> -> vector<64x1xf32>
      %c1_114 = arith.constant 1 : index
      %c0_115 = arith.constant 0 : index
      %c0_116 = arith.constant 0 : index
      %174 = vector.load %arg12[%c1_114, %c0_115, %c0_116] : memref<4x64x32xf32, #tpu.memory_space<vmem>>, vector<1x64x32xf32>
      %175 = vector.shape_cast %174 : vector<1x64x32xf32> to vector<64x32xf32>
      %176 = vector.broadcast %173 : vector<64x1xf32> to vector<64x32xf32>
      %177 = arith.mulf %175, %176 : vector<64x32xf32>
      %c32 = arith.constant 32 : index
      %c0_117 = arith.constant 0 : index
      %178 = vector.load %arg9[%c32, %c0_117] : memref<128x128xf32, #tpu.memory_space<vmem>>, vector<32x128xf32>
      %cst_118 = arith.constant dense<0.000000e+00> : vector<64x128xf32>
      %179 = tpu.matmul %177, %178, %cst_118 {dimension_numbers = #tpu.dot_dimension_numbers<[1], [0], [0], [1], [0, 0, 1, 1], [], []>} : vector<64x32xf32>, vector<32x128xf32>, vector<64x128xf32> -> vector<64x128xf32>
      %180 = arith.addf %170, %179 : vector<64x128xf32>
      %c2_119 = arith.constant 2 : index
      %c0_120 = arith.constant 0 : index
      %c0_121 = arith.constant 0 : index
      %181 = vector.load %arg14[%c2_119, %c0_120, %c0_121] : memref<4x64x1xf32, #tpu.memory_space<vmem>>, vector<1x64x1xf32>
      %182 = vector.shape_cast %181 : vector<1x64x1xf32> to vector<64x1xf32>
      %183 = tpu.reciprocal %182 {approx = true} : vector<64x1xf32> -> vector<64x1xf32>
      %c2_122 = arith.constant 2 : index
      %c0_123 = arith.constant 0 : index
      %c0_124 = arith.constant 0 : index
      %184 = vector.load %arg12[%c2_122, %c0_123, %c0_124] : memref<4x64x32xf32, #tpu.memory_space<vmem>>, vector<1x64x32xf32>
      %185 = vector.shape_cast %184 : vector<1x64x32xf32> to vector<64x32xf32>
      %186 = vector.broadcast %183 : vector<64x1xf32> to vector<64x32xf32>
      %187 = arith.mulf %185, %186 : vector<64x32xf32>
      %c64 = arith.constant 64 : index
      %c0_125 = arith.constant 0 : index
      %188 = vector.load %arg9[%c64, %c0_125] : memref<128x128xf32, #tpu.memory_space<vmem>>, vector<32x128xf32>
      %cst_126 = arith.constant dense<0.000000e+00> : vector<64x128xf32>
      %189 = tpu.matmul %187, %188, %cst_126 {dimension_numbers = #tpu.dot_dimension_numbers<[1], [0], [0], [1], [0, 0, 1, 1], [], []>} : vector<64x32xf32>, vector<32x128xf32>, vector<64x128xf32> -> vector<64x128xf32>
      %190 = arith.addf %180, %189 : vector<64x128xf32>
      %c3_127 = arith.constant 3 : index
      %c0_128 = arith.constant 0 : index
      %c0_129 = arith.constant 0 : index
      %191 = vector.load %arg14[%c3_127, %c0_128, %c0_129] : memref<4x64x1xf32, #tpu.memory_space<vmem>>, vector<1x64x1xf32>
      %192 = vector.shape_cast %191 : vector<1x64x1xf32> to vector<64x1xf32>
      %193 = tpu.reciprocal %192 {approx = true} : vector<64x1xf32> -> vector<64x1xf32>
      %c3_130 = arith.constant 3 : index
      %c0_131 = arith.constant 0 : index
      %c0_132 = arith.constant 0 : index
      %194 = vector.load %arg12[%c3_130, %c0_131, %c0_132] : memref<4x64x32xf32, #tpu.memory_space<vmem>>, vector<1x64x32xf32>
      %195 = vector.shape_cast %194 : vector<1x64x32xf32> to vector<64x32xf32>
      %196 = vector.broadcast %193 : vector<64x1xf32> to vector<64x32xf32>
      %197 = arith.mulf %195, %196 : vector<64x32xf32>
      %c96 = arith.constant 96 : index
      %c0_133 = arith.constant 0 : index
      %198 = vector.load %arg9[%c96, %c0_133] : memref<128x128xf32, #tpu.memory_space<vmem>>, vector<32x128xf32>
      %cst_134 = arith.constant dense<0.000000e+00> : vector<64x128xf32>
      %199 = tpu.matmul %197, %198, %cst_134 {dimension_numbers = #tpu.dot_dimension_numbers<[1], [0], [0], [1], [0, 0, 1, 1], [], []>} : vector<64x32xf32>, vector<32x128xf32>, vector<64x128xf32> -> vector<64x128xf32>
      %200 = arith.addf %190, %199 : vector<64x128xf32>
      %c0_135 = arith.constant 0 : index
      %c0_136 = arith.constant 0 : index
      %201 = vector.load %arg10[%c0_135, %c0_136] : memref<1x128xf32, #tpu.memory_space<vmem>>, vector<1x128xf32>
      %202 = vector.broadcast %201 : vector<1x128xf32> to vector<64x128xf32>
      %203 = arith.addf %200, %202 : vector<64x128xf32>
      %c0_137 = arith.constant 0 : index
      %c0_138 = arith.constant 0 : index
      %c0_139 = arith.constant 0 : index
      %204 = vector.load %arg11[%c0_137, %c0_138, %c0_139] : memref<1x64x128xf32, #tpu.memory_space<vmem>>, vector<1x64x128xf32>
      %205 = vector.shape_cast %204 : vector<1x64x128xf32> to vector<64x128xf32>
      %206 = vector.shape_cast %203 : vector<64x128xf32> to vector<1x64x128xf32>
      tpu.vector_store %arg11[%c0_137, %c0_138, %c0_139], %206 {strides = array<i32>} : memref<1x64x128xf32, #tpu.memory_space<vmem>>, vector<1x64x128xf32>,
    } else {
    }
    return
  }
  func.func @transform_0(%arg0: i32, %arg1: i32, %arg2: i32) -> (i32, i32, i32) {
    %c0_i32 = arith.constant 0 : i32
    %c0_i32_0 = arith.constant 0 : i32
    return %arg0, %arg1, %c0_i32 : i32, i32, i32
  }
  func.func @transform_1(%arg0: i32, %arg1: i32, %arg2: i32) -> (i32, i32, i32) {
    %c0_i32 = arith.constant 0 : i32
    %c0_i32_0 = arith.constant 0 : i32
    return %arg0, %arg2, %c0_i32 : i32, i32, i32
  }
  func.func @transform_2(%arg0: i32, %arg1: i32, %arg2: i32) -> (i32, i32) {
    %c0_i32 = arith.constant 0 : i32
    %c0_i32_0 = arith.constant 0 : i32
    %c0_i32_1 = arith.constant 0 : i32
    return %c0_i32, %c0_i32_0 : i32, i32
  }
  func.func @transform_3(%arg0: i32, %arg1: i32, %arg2: i32) -> (i32, i32) {
    %c0_i32 = arith.constant 0 : i32
    %c0_i32_0 = arith.constant 0 : i32
    %c0_i32_1 = arith.constant 0 : i32
    return %c0_i32, %c0_i32_0 : i32, i32
  }
  func.func @transform_4(%arg0: i32, %arg1: i32, %arg2: i32) -> (i32, i32) {
    %c0_i32 = arith.constant 0 : i32
    %c0_i32_0 = arith.constant 0 : i32
    %c0_i32_1 = arith.constant 0 : i32
    return %c0_i32, %c0_i32_0 : i32, i32
  }
  func.func @transform_5(%arg0: i32, %arg1: i32, %arg2: i32) -> (i32, i32) {
    %c0_i32 = arith.constant 0 : i32
    %c0_i32_0 = arith.constant 0 : i32
    %c0_i32_1 = arith.constant 0 : i32
    return %c0_i32, %c0_i32_0 : i32, i32
  }
  func.func @transform_6(%arg0: i32, %arg1: i32, %arg2: i32) -> (i32, i32) {
    %c0_i32 = arith.constant 0 : i32
    %c0_i32_0 = arith.constant 0 : i32
    %c0_i32_1 = arith.constant 0 : i32
    return %c0_i32, %c0_i32_0 : i32, i32
  }
  func.func @transform_7(%arg0: i32, %arg1: i32, %arg2: i32) -> (i32, i32) {
    %c0_i32 = arith.constant 0 : i32
    %c0_i32_0 = arith.constant 0 : i32
    %c0_i32_1 = arith.constant 0 : i32
    return %c0_i32, %c0_i32_0 : i32, i32
  }
  func.func @transform_8(%arg0: i32, %arg1: i32, %arg2: i32) -> (i32, i32, i32) {
    %c0_i32 = arith.constant 0 : i32
    %c0_i32_0 = arith.constant 0 : i32
    return %arg0, %arg1, %c0_i32 : i32, i32, i32
  }
}

</mosaic_0001>

<llo_original>
// kernel: tpu_custom_call.1
$region0: #{tpu_custom_call.1}
  #allocation0 [shape = 'u32[]', space=smem, size = 0x4, offset = 0x4, fixed_abs, tag = 'smem constant byte address 0x4 - core index']
  #allocation1 [shape = 'u32[144,128]{1,0:T(1,128)}', space=vmem, size = 0x12000, scoped, tag = 'internal scratch']
  #allocation2 [shape = 'f32[4,64,32]{2,1,0:T(8,128)}', space=vmem, size = 0x20000, scoped, tag = 'scratch operand']
  #allocation3 [shape = 'f32[4,64,1]{2,1,0:T(8,128)}', space=vmem, size = 0x20000, scoped, tag = 'scratch operand']
  #allocation4 [shape = 'f32[4,64,1]{2,1,0:T(8,128)}', space=vmem, size = 0x20000, scoped, tag = 'scratch operand']
  %s0 = inlined_call_operand.hbm [shape: f32[2,128,128], index: 0, kind: input, shape index: {}]
  %s1 = inlined_call_operand.hbm [shape: f32[2,256,128], index: 1, kind: input, shape index: {}]
  %s2 = inlined_call_operand.hbm [shape: f32[128,128], index: 2, kind: input, shape index: {}]
  %s3 = inlined_call_operand.hbm [shape: f32[1,128], index: 3, kind: input, shape index: {}]
  %s4 = inlined_call_operand.hbm [shape: f32[128,128], index: 4, kind: input, shape index: {}]
  %s5 = inlined_call_operand.hbm [shape: f32[1,128], index: 5, kind: input, shape index: {}]
  %s6 = inlined_call_operand.hbm [shape: f32[128,128], index: 6, kind: input, shape index: {}]
  %s7 = inlined_call_operand.hbm [shape: f32[1,128], index: 7, kind: input, shape index: {}]
  %s8 = inlined_call_operand.hbm [shape: f32[2,128,128], index: 8, kind: output, shape index: {}]
  %s9 = sld [smem:[#allocation0]]
  $region105: #{tpu_custom_call.1} parent=0
    _
  %s11 = ssub.s32 1, %s9
  %s12 = scalar_select 0, %s11, %s9
  $region1: #{tpu_custom_call.1} parent=0
    #allocation5 [shape = 'u8[65536]{0}', space=vmem, size = 0x10000, scoped, tag = 'input window, operand 0']
    #allocation6 [shape = 's32[2]{0}', space=sflag, size = 0x8, scoped, tag = 'scoped memory for tpu_custom_call.1']
    #allocation7 [shape = 's32[2]{0}', space=sflag, size = 0x8, scoped, tag = 'scoped memory for tpu_custom_call.1']
    #allocation8 [shape = 'u8[131072]{0}', space=vmem, size = 0x20000, scoped, tag = 'input window, operand 1']
    #allocation9 [shape = 's32[2]{0}', space=sflag, size = 0x8, scoped, tag = 'scoped memory for tpu_custom_call.1']
    #allocation10 [shape = 'u8[65536]{0}', space=vmem, size = 0x10000, scoped, tag = 'input window, operand 2, single buffered']
    #allocation11 [shape = 'u8[512]{0}', space=vmem, size = 0x400, scoped, tag = 'input window, operand 3, single buffered']
    #allocation12 [shape = 's32[1]{0}', space=sflag, size = 0x4, scoped, tag = 'scoped memory for tpu_custom_call.1']
    #allocation13 [shape = 'u8[65536]{0}', space=vmem, size = 0x10000, scoped, tag = 'input window, operand 4, single buffered']
    #allocation14 [shape = 'u8[512]{0}', space=vmem, size = 0x400, scoped, tag = 'input window, operand 5, single buffered']
    #allocation15 [shape = 's32[1]{0}', space=sflag, size = 0x4, scoped, tag = 'scoped memory for tpu_custom_call.1']
    #allocation16 [shape = 'u8[65536]{0}', space=vmem, size = 0x10000, scoped, tag = 'input window, operand 6, single buffered']
    #allocation17 [shape = 'u8[512]{0}', space=vmem, size = 0x400, scoped, tag = 'input window, operand 7, single buffered']
    #allocation18 [shape = 's32[1]{0}', space=sflag, size = 0x4, scoped, tag = 'scoped memory for tpu_custom_call.1']
    #allocation19 [shape = 'u8[65536]{0}', space=vmem, size = 0x10000, scoped, tag = 'output window, operand 0']
    %13 = vsyncpa [#allocation6], 0
    %s14 = scalar_lea.sflag [#allocation6], 1
    %15 = vsyncpa %s14, 0
    %16 = vsyncpa [#allocation9], 0
    %s17 = scalar_lea.sflag [#allocation9], 1
    %18 = vsyncpa %s17, 0
    %19 = vsyncpa [#allocation12], 0
    %20 = vsyncpa [#allocation15], 0
    %21 = vsyncpa [#allocation18], 0
    %22 = vsyncpa [#allocation7], 0
    %s23 = scalar_lea.sflag [#allocation7], 1
    %24 = vsyncpa %s23, 0
    loop: start=0, step=1, limit=10
    $region2: #{tpu_custom_call.1} parent=1 // loop_pre_header
      _
    $region3: #{tpu_custom_call.1} parent=1 // loop_header
      %s26 = sphi 0, %s30
      %p27 = scmp.ge.s32.totalorder %s26, 10
      %s33 = sphi 0, %s52
      %s34 = sphi 0, %s48
      %s35 = sphi 0, %s44
      %s36 = sphi 0, %s33
      %s37 = sphi 0, %s34
      %s38 = sphi 0, %s35
      %s39 = sphi 0, %s36
      %s40 = sphi 0, %s37
      %s41 = sphi 0, %s38
      %s57 = sphi 0, %s59
      %s60 = sphi 0, %s57
      %s61 = sphi 0, %s60
      %s77 = sphi 0, %s61
      %s85 = sphi 0, %s87
      %s88 = sphi 0, %s85
      %s89 = sphi 0, %s88
      %s105 = sphi 0, %s89
      %s109 = sphi 0, %s109
      %s111 = sphi 0, %s109
      %s112 = sphi 0, %s111
      %s126 = sphi 0, %s112
      %s130 = sphi 0, %s130
      %s132 = sphi 0, %s130
      %s133 = sphi 0, %s132
      %s147 = sphi 0, %s133
      %s151 = sphi 0, %s151
      %s153 = sphi 0, %s151
      %s154 = sphi 0, %s153
      %s168 = sphi 0, %s154
      %s172 = sphi 0, %s172
      %s174 = sphi 0, %s172
      %s175 = sphi 0, %s174
      %s189 = sphi 0, %s175
      %s193 = sphi 0, %s193
      %s195 = sphi 0, %s193
      %s196 = sphi 0, %s195
      %s210 = sphi 0, %s196
      %s214 = sphi 0, %s214
      %s216 = sphi 0, %s214
      %s217 = sphi 0, %s216
      %s231 = sphi 0, %s217
      %s239 = sphi 0, %s241
      %s242 = sphi 0, %s239
      %s243 = sphi 0, %s242
      %s259 = sphi 0, %s243
    $region4: #{tpu_custom_call.1} parent=1 // loop_header_branch
      %29 = sbr.rel (%p27) target = $region8
    $region5: #{tpu_custom_call.1} parent=1 // loop_body
      %s31 = ssub.s32 %s26, 1
      %s32 = ssub.s32 %s26, 2
      %s42 = sadd.s32 1, %s35
      %p43 = scmp.ge.s32.totalorder %s42, 2
      %s44 = scalar_select %p43, 0, %s42
      %s45 = sadd.s32 1, %s34
      %s46 = scalar_select %p43, %s45, %s34
      %p47 = scmp.ge.s32.totalorder %s46, 2
      %s48 = scalar_select %p47, 0, %s46
      %s49 = sadd.s32 1, %s33
      %s50 = scalar_select %p47, %s49, %s33
      %p51 = scmp.ge.s32.totalorder %s50, 2
      %s52 = scalar_select %p51, 0, %s50
      %s53 = ssub.s32 %s33, %s52
      %s54 = ssub.s32 %s34, %s48
      %s55 = sor.u32 %s53, %s54
      %p56 = scmp.eq.s32.totalorder %s55, 0
      %s58 = sadd.s32 %s57, 1
      %s59 = scalar_select %p56, %s57, %s58
      %p62 = pneg %p56
      %p63 = scmp.eq.s32.totalorder %s26, 7
      %p64 = por %p62, %p63
      %p65 = scmp.ne.s32.totalorder %s57, %s60
      %p66 = scmp.eq.s32.totalorder %s26, 0
      %p67 = por %p65, %p66
      %p68 = scmp.ne.s32.totalorder %s57, %s60
      %p69 = scmp.eq.s32.totalorder %s31, 7
      %p70 = por %p68, %p69
      %p71 = scmp.ne.s32.totalorder %s60, %s61
      %p72 = scmp.eq.s32.totalorder %s31, 0
      %p73 = por %p71, %p72
      %p74 = scmp.ne.s32.totalorder %s60, %s61
      %p75 = scmp.eq.s32.totalorder %s32, 7
      %p76 = por %p74, %p75
      %p78 = scmp.ne.s32.totalorder %s61, %s77
      %p79 = scmp.eq.s32.totalorder %s32, 0
      %p80 = por %p78, %p79
      %s81 = ssub.s32 %s33, %s52
      %s82 = ssub.s32 %s35, %s44
      %s83 = sor.u32 %s81, %s82
      %p84 = scmp.eq.s32.totalorder %s83, 0
      %s86 = sadd.s32 %s85, 1
      %s87 = scalar_select %p84, %s85, %s86
      %p90 = pneg %p84
      %p91 = scmp.eq.s32.totalorder %s26, 7
      %p92 = por %p90, %p91
      %p93 = scmp.ne.s32.totalorder %s85, %s88
      %p94 = scmp.eq.s32.totalorder %s26, 0
      %p95 = por %p93, %p94
      %p96 = scmp.ne.s32.totalorder %s85, %s88
      %p97 = scmp.eq.s32.totalorder %s31, 7
      %p98 = por %p96, %p97
      %p99 = scmp.ne.s32.totalorder %s88, %s89
      %p100 = scmp.eq.s32.totalorder %s31, 0
      %p101 = por %p99, %p100
      %p102 = scmp.ne.s32.totalorder %s88, %s89
      %p103 = scmp.eq.s32.totalorder %s32, 7
      %p104 = por %p102, %p103
      %p106 = scmp.ne.s32.totalorder %s89, %s105
      %p107 = scmp.eq.s32.totalorder %s32, 0
      %p108 = por %p106, %p107
      %s110 = sadd.s32 %s109, 1
      %p113 = scmp.eq.s32.totalorder %s26, 7
      %p114 = scmp.ne.s32.totalorder %s109, %s111
      %p115 = scmp.eq.s32.totalorder %s26, 0
      %p116 = por %p114, %p115
      %p117 = scmp.ne.s32.totalorder %s109, %s111
      %p118 = scmp.eq.s32.totalorder %s31, 7
      %p119 = por %p117, %p118
      %p120 = scmp.ne.s32.totalorder %s111, %s112
      %p121 = scmp.eq.s32.totalorder %s31, 0
      %p122 = por %p120, %p121
      %p123 = scmp.ne.s32.totalorder %s111, %s112
      %p124 = scmp.eq.s32.totalorder %s32, 7
      %p125 = por %p123, %p124
      %p127 = scmp.ne.s32.totalorder %s112, %s126
      %p128 = scmp.eq.s32.totalorder %s32, 0
      %p129 = por %p127, %p128
      %s131 = sadd.s32 %s130, 1
      %p134 = scmp.eq.s32.totalorder %s26, 7
      %p135 = scmp.ne.s32.totalorder %s130, %s132
      %p136 = scmp.eq.s32.totalorder %s26, 0
      %p137 = por %p135, %p136
      %p138 = scmp.ne.s32.totalorder %s130, %s132
      %p139 = scmp.eq.s32.totalorder %s31, 7
      %p140 = por %p138, %p139
      %p141 = scmp.ne.s32.totalorder %s132, %s133
      %p142 = scmp.eq.s32.totalorder %s31, 0
      %p143 = por %p141, %p142
      %p144 = scmp.ne.s32.totalorder %s132, %s133
      %p145 = scmp.eq.s32.totalorder %s32, 7
      %p146 = por %p144, %p145
      %p148 = scmp.ne.s32.totalorder %s133, %s147
      %p149 = scmp.eq.s32.totalorder %s32, 0
      %p150 = por %p148, %p149
      %s152 = sadd.s32 %s151, 1
      %p155 = scmp.eq.s32.totalorder %s26, 7
      %p156 = scmp.ne.s32.totalorder %s151, %s153
      %p157 = scmp.eq.s32.totalorder %s26, 0
      %p158 = por %p156, %p157
      %p159 = scmp.ne.s32.totalorder %s151, %s153
      %p160 = scmp.eq.s32.totalorder %s31, 7
      %p161 = por %p159, %p160
      %p162 = scmp.ne.s32.totalorder %s153, %s154
      %p163 = scmp.eq.s32.totalorder %s31, 0
      %p164 = por %p162, %p163
      %p165 = scmp.ne.s32.totalorder %s153, %s154
      %p166 = scmp.eq.s32.totalorder %s32, 7
      %p167 = por %p165, %p166
      %p169 = scmp.ne.s32.totalorder %s154, %s168
      %p170 = scmp.eq.s32.totalorder %s32, 0
      %p171 = por %p169, %p170
      %s173 = sadd.s32 %s172, 1
      %p176 = scmp.eq.s32.totalorder %s26, 7
      %p177 = scmp.ne.s32.totalorder %s172, %s174
      %p178 = scmp.eq.s32.totalorder %s26, 0
      %p179 = por %p177, %p178
      %p180 = scmp.ne.s32.totalorder %s172, %s174
      %p181 = scmp.eq.s32.totalorder %s31, 7
      %p182 = por %p180, %p181
      %p183 = scmp.ne.s32.totalorder %s174, %s175
      %p184 = scmp.eq.s32.totalorder %s31, 0
      %p185 = por %p183, %p184
      %p186 = scmp.ne.s32.totalorder %s174, %s175
      %p187 = scmp.eq.s32.totalorder %s32, 7
      %p188 = por %p186, %p187
      %p190 = scmp.ne.s32.totalorder %s175, %s189
      %p191 = scmp.eq.s32.totalorder %s32, 0
      %p192 = por %p190, %p191
      %s194 = sadd.s32 %s193, 1
      %p197 = scmp.eq.s32.totalorder %s26, 7
      %p198 = scmp.ne.s32.totalorder %s193, %s195
      %p199 = scmp.eq.s32.totalorder %s26, 0
      %p200 = por %p198, %p199
      %p201 = scmp.ne.s32.totalorder %s193, %s195
      %p202 = scmp.eq.s32.totalorder %s31, 7
      %p203 = por %p201, %p202
      %p204 = scmp.ne.s32.totalorder %s195, %s196
      %p205 = scmp.eq.s32.totalorder %s31, 0
      %p206 = por %p204, %p205
      %p207 = scmp.ne.s32.totalorder %s195, %s196
      %p208 = scmp.eq.s32.totalorder %s32, 7
      %p209 = por %p207, %p208
      %p211 = scmp.ne.s32.totalorder %s196, %s210
      %p212 = scmp.eq.s32.totalorder %s32, 0
      %p213 = por %p211, %p212
      %s215 = sadd.s32 %s214, 1
      %p218 = scmp.eq.s32.totalorder %s26, 7
      %p219 = scmp.ne.s32.totalorder %s214, %s216
      %p220 = scmp.eq.s32.totalorder %s26, 0
      %p221 = por %p219, %p220
      %p222 = scmp.ne.s32.totalorder %s214, %s216
      %p223 = scmp.eq.s32.totalorder %s31, 7
      %p224 = por %p222, %p223
      %p225 = scmp.ne.s32.totalorder %s216, %s217
      %p226 = scmp.eq.s32.totalorder %s31, 0
      %p227 = por %p225, %p226
      %p228 = scmp.ne.s32.totalorder %s216, %s217
      %p229 = scmp.eq.s32.totalorder %s32, 7
      %p230 = por %p228, %p229
      %p232 = scmp.ne.s32.totalorder %s217, %s231
      %p233 = scmp.eq.s32.totalorder %s32, 0
      %p234 = por %p232, %p233
      %s235 = ssub.s32 %s33, %s52
      %s236 = ssub.s32 %s34, %s48
      %s237 = sor.u32 %s235, %s236
      %p238 = scmp.eq.s32.totalorder %s237, 0
      %s240 = sadd.s32 %s239, 1
      %s241 = scalar_select %p238, %s239, %s240
      %p244 = pneg %p238
      %p245 = scmp.eq.s32.totalorder %s26, 7
      %p246 = por %p244, %p245
      %p247 = scmp.ne.s32.totalorder %s239, %s242
      %p248 = scmp.eq.s32.totalorder %s26, 0
      %p249 = por %p247, %p248
      %p250 = scmp.ne.s32.totalorder %s239, %s242
      %p251 = scmp.eq.s32.totalorder %s31, 7
      %p252 = por %p250, %p251
      %p253 = scmp.ne.s32.totalorder %s242, %s243
      %p254 = scmp.eq.s32.totalorder %s31, 0
      %p255 = por %p253, %p254
      %p256 = scmp.ne.s32.totalorder %s242, %s243
      %p257 = scmp.eq.s32.totalorder %s32, 7
      %p258 = por %p256, %p257
      %p260 = scmp.ne.s32.totalorder %s243, %s259
      %p261 = scmp.eq.s32.totalorder %s32, 0
      %p262 = por %p260, %p261
      %p263 = scmp.le.s32.totalorder 1, %s26
      %p264 = scmp.lt.s32.totalorder %s26, 9
      %p265 = pnand %p263, %p264
      %p266 = pneg %p265
      // Predicated region
      $region9: #{tpu_custom_call.1} parent=5 // pred_check
        _
      $region10: #{tpu_custom_call.1} parent=5 // pred_check_branch
        %268 = sbr.rel (%p265) target = $region12
      $region11: #{tpu_custom_call.1} parent=5 // pred_region
        %s269 = ssub.s32 %s26, 1
        // Predicated region
        $region13: #{tpu_custom_call.1} parent=11 // pred_check
          %p270 = pneg %p122
        $region14: #{tpu_custom_call.1} parent=11 // pred_check_branch
          %272 = sbr.rel (%p270) target = $region16
        $region15: #{tpu_custom_call.1} parent=11 // pred_region
          %s274 = ssub.s32 2048, 2048
          %275 = vsyncadd [#allocation9], %s274
          %s276 = sshll.u32 [#allocation10], 4
          %s277 = int_to_ptr.vmem [resolvable:$true] %s276
          %282 = dma.hbm_to_vmem [thread:$0]  %s2, 2048, %s277, [#allocation9], 128, 128, 8
        $region16: #{tpu_custom_call.1} parent=11 // pred_fallthru
          _
        // Predicated region
        $region17: #{tpu_custom_call.1} parent=11 // pred_check
          %p283 = pneg %p143
        $region18: #{tpu_custom_call.1} parent=11 // pred_check_branch
          %285 = sbr.rel (%p283) target = $region20
        $region19: #{tpu_custom_call.1} parent=11 // pred_region
          %s287 = ssub.s32 16, 16
          %288 = vsyncadd [#allocation12], %s287
          %s290 = sshll.u32 [#allocation11], 4
          %s291 = int_to_ptr.vmem [resolvable:$true] %s290
          %293 = dma.hbm_to_vmem [thread:$0]  %s3, 16, %s291, [#allocation12]
        $region20: #{tpu_custom_call.1} parent=11 // pred_fallthru
          _
        // Predicated region
        $region21: #{tpu_custom_call.1} parent=11 // pred_check
          %p294 = pneg %p164
        $region22: #{tpu_custom_call.1} parent=11 // pred_check_branch
          %296 = sbr.rel (%p294) target = $region24
        $region23: #{tpu_custom_call.1} parent=11 // pred_region
          %s298 = ssub.s32 2048, 2048
          %299 = vsyncadd [#allocation12], %s298
          %s300 = sshll.u32 [#allocation13], 4
          %s301 = int_to_ptr.vmem [resolvable:$true] %s300
          %306 = dma.hbm_to_vmem [thread:$0]  %s4, 2048, %s301, [#allocation12], 128, 128, 8
        $region24: #{tpu_custom_call.1} parent=11 // pred_fallthru
          _
        // Predicated region
        $region25: #{tpu_custom_call.1} parent=11 // pred_check
          %p307 = pneg %p185
        $region26: #{tpu_custom_call.1} parent=11 // pred_check_branch
          %309 = sbr.rel (%p307) target = $region28
        $region27: #{tpu_custom_call.1} parent=11 // pred_region
          %s311 = ssub.s32 16, 16
          %312 = vsyncadd [#allocation15], %s311
          %s314 = sshll.u32 [#allocation14], 4
          %s315 = int_to_ptr.vmem [resolvable:$true] %s314
          %317 = dma.hbm_to_vmem [thread:$0]  %s5, 16, %s315, [#allocation15]
        $region28: #{tpu_custom_call.1} parent=11 // pred_fallthru
          _
        // Predicated region
        $region29: #{tpu_custom_call.1} parent=11 // pred_check
          %p318 = pneg %p206
        $region30: #{tpu_custom_call.1} parent=11 // pred_check_branch
          %320 = sbr.rel (%p318) target = $region32
        $region31: #{tpu_custom_call.1} parent=11 // pred_region
          %s322 = ssub.s32 2048, 2048
          %323 = vsyncadd [#allocation15], %s322
          %s324 = sshll.u32 [#allocation16], 4
          %s325 = int_to_ptr.vmem [resolvable:$true] %s324
          %330 = dma.hbm_to_vmem [thread:$0]  %s6, 2048, %s325, [#allocation15], 128, 128, 8
        $region32: #{tpu_custom_call.1} parent=11 // pred_fallthru
          _
        // Predicated region
        $region33: #{tpu_custom_call.1} parent=11 // pred_check
          %p331 = pneg %p227
        $region34: #{tpu_custom_call.1} parent=11 // pred_check_branch
          %333 = sbr.rel (%p331) target = $region36
        $region35: #{tpu_custom_call.1} parent=11 // pred_region
          %s335 = ssub.s32 16, 16
          %336 = vsyncadd [#allocation18], %s335
          %s338 = sshll.u32 [#allocation17], 4
          %s339 = int_to_ptr.vmem [resolvable:$true] %s338
          %341 = dma.hbm_to_vmem [thread:$0]  %s7, 16, %s339, [#allocation18]
        $region36: #{tpu_custom_call.1} parent=11 // pred_fallthru
          _
      $region12: #{tpu_custom_call.1} parent=5 // pred_fallthru
        _
      %p342 = scmp.lt.s32.totalorder %s26, 8
      // Predicated region
      $region37: #{tpu_custom_call.1} parent=5 // pred_check
        %p343 = pneg %p342
      $region38: #{tpu_custom_call.1} parent=5 // pred_check_branch
        %345 = sbr.rel (%p343) target = $region40
      $region39: #{tpu_custom_call.1} parent=5 // pred_region
        // Predicated region
        $region41: #{tpu_custom_call.1} parent=39 // pred_check
          %p346 = pneg %p67
        $region42: #{tpu_custom_call.1} parent=39 // pred_check_branch
          %348 = sbr.rel (%p346) target = $region44
        $region43: #{tpu_custom_call.1} parent=39 // pred_region
          %s349 = sand.u32 %s57, 1
          %s350 = scalar_lea.sflag [#allocation6], %s349
          %s351 = sand.u32 %s57, 1
          %s352 = smul.addr %s351, 64
          %s353 = scalar_lea.vmem [#allocation5], %s352
          %s354 = smul.u32 8, %s34
          %s356 = ssub.s32 1024, 1024
          %357 = vsyncadd %s350, %s356
          %s358 = smul.addr %s33, 16
          %s359 = sadd.s32 %s354, %s358
          %s360 = smul.addr %s359, 128
          %s361 = scalar_lea.hbm %s0, %s360
          %s362 = sshll.u32 %s353, 4
          %s363 = int_to_ptr.vmem [resolvable:$true] %s362
          %368 = dma.hbm_to_vmem [thread:$0]  %s361, 1024, %s363, %s350, 128, 128, 8
        $region44: #{tpu_custom_call.1} parent=39 // pred_fallthru
          _
        // Predicated region
        $region45: #{tpu_custom_call.1} parent=39 // pred_check
          %p369 = pneg %p95
        $region46: #{tpu_custom_call.1} parent=39 // pred_check_branch
          %371 = sbr.rel (%p369) target = $region48
        $region47: #{tpu_custom_call.1} parent=39 // pred_region
          %s372 = sand.u32 %s26, 1
          %s373 = scalar_lea.sflag [#allocation9], %s372
          %s374 = sand.u32 %s85, 1
          %s375 = smul.addr %s374, 128
          %s376 = scalar_lea.vmem [#allocation8], %s375
          %s377 = smul.u32 16, %s35
          %s379 = ssub.s32 2048, 2048
          %380 = vsyncadd %s373, %s379
          %s381 = smul.addr %s33, 32
          %s382 = sadd.s32 %s377, %s381
          %s383 = smul.addr %s382, 128
          %s384 = scalar_lea.hbm %s1, %s383
          %s385 = sshll.u32 %s376, 4
          %s386 = int_to_ptr.vmem [resolvable:$true] %s385
          %391 = dma.hbm_to_vmem [thread:$0]  %s384, 2048, %s386, %s373, 128, 128, 8
        $region48: #{tpu_custom_call.1} parent=39 // pred_fallthru
          _
      $region40: #{tpu_custom_call.1} parent=5 // pred_fallthru
        _
      %p392 = scmp.le.s32.totalorder 1, %s26
      %p393 = scmp.lt.s32.totalorder %s26, 9
      %p394 = pnand %p392, %p393
      %p395 = pneg %p394
      // Predicated region
      $region49: #{tpu_custom_call.1} parent=5 // pred_check
        _
      $region50: #{tpu_custom_call.1} parent=5 // pred_check_branch
        %397 = sbr.rel (%p394) target = $region52
      $region51: #{tpu_custom_call.1} parent=5 // pred_region
        %s398 = ssub.s32 %s26, 1
        %s399 = sand.u32 %s60, 1
        %s400 = scalar_lea.sflag [#allocation6], %s399
        %s401 = sand.u32 %s60, 1
        %s402 = smul.addr %s401, 64
        %s403 = scalar_lea.vmem [#allocation5], %s402
        // Predicated region
        $region53: #{tpu_custom_call.1} parent=51 // pred_check
          %p404 = pneg %p73
        $region54: #{tpu_custom_call.1} parent=51 // pred_check_branch
          %406 = sbr.rel (%p404) target = $region56
        $region55: #{tpu_custom_call.1} parent=51 // pred_region
          %407 = dma.done %s400, 1024
        $region56: #{tpu_custom_call.1} parent=51 // pred_fallthru
          _
        %s408 = sand.u32 %s31, 1
        %s409 = scalar_lea.sflag [#allocation9], %s408
        %s410 = sand.u32 %s88, 1
        %s411 = smul.addr %s410, 128
        %s412 = scalar_lea.vmem [#allocation8], %s411
        // Predicated region
        $region57: #{tpu_custom_call.1} parent=51 // pred_check
          %p413 = pneg %p101
        $region58: #{tpu_custom_call.1} parent=51 // pred_check_branch
          %415 = sbr.rel (%p413) target = $region60
        $region59: #{tpu_custom_call.1} parent=51 // pred_region
          %416 = dma.done %s409, 2048
        $region60: #{tpu_custom_call.1} parent=51 // pred_fallthru
          _
        // Predicated region
        $region61: #{tpu_custom_call.1} parent=51 // pred_check
          %p417 = pneg %p122
        $region62: #{tpu_custom_call.1} parent=51 // pred_check_branch
          %419 = sbr.rel (%p417) target = $region64
        $region63: #{tpu_custom_call.1} parent=51 // pred_region
          %420 = dma.done [#allocation9], 2048
        $region64: #{tpu_custom_call.1} parent=51 // pred_fallthru
          _
        // Predicated region
        $region65: #{tpu_custom_call.1} parent=51 // pred_check
          %p421 = pneg %p143
        $region66: #{tpu_custom_call.1} parent=51 // pred_check_branch
          %423 = sbr.rel (%p421) target = $region68
        $region67: #{tpu_custom_call.1} parent=51 // pred_region
          %424 = dma.done [#allocation12], 16
        $region68: #{tpu_custom_call.1} parent=51 // pred_fallthru
          _
        // Predicated region
        $region69: #{tpu_custom_call.1} parent=51 // pred_check
          %p425 = pneg %p164
        $region70: #{tpu_custom_call.1} parent=51 // pred_check_branch
          %427 = sbr.rel (%p425) target = $region72
        $region71: #{tpu_custom_call.1} parent=51 // pred_region
          %428 = dma.done [#allocation12], 2048
        $region72: #{tpu_custom_call.1} parent=51 // pred_fallthru
          _
        // Predicated region
        $region73: #{tpu_custom_call.1} parent=51 // pred_check
          %p429 = pneg %p185
        $region74: #{tpu_custom_call.1} parent=51 // pred_check_branch
          %431 = sbr.rel (%p429) target = $region76
        $region75: #{tpu_custom_call.1} parent=51 // pred_region
          %432 = dma.done [#allocation15], 16
        $region76: #{tpu_custom_call.1} parent=51 // pred_fallthru
          _
        // Predicated region
        $region77: #{tpu_custom_call.1} parent=51 // pred_check
          %p433 = pneg %p206
        $region78: #{tpu_custom_call.1} parent=51 // pred_check_branch
          %435 = sbr.rel (%p433) target = $region80
        $region79: #{tpu_custom_call.1} parent=51 // pred_region
          %436 = dma.done [#allocation15], 2048
        $region80: #{tpu_custom_call.1} parent=51 // pred_fallthru
          _
        // Predicated region
        $region81: #{tpu_custom_call.1} parent=51 // pred_check
          %p437 = pneg %p227
        $region82: #{tpu_custom_call.1} parent=51 // pred_check_branch
          %439 = sbr.rel (%p437) target = $region84
        $region83: #{tpu_custom_call.1} parent=51 // pred_region
          %440 = dma.done [#allocation18], 16
        $region84: #{tpu_custom_call.1} parent=51 // pred_fallthru
          _
        %s441 = sand.u32 %s60, 1
        %s442 = scalar_lea.sflag [#allocation6], %s441
        %s443 = sand.u32 %s60, 1
        %s444 = smul.addr %s443, 64
        %s445 = scalar_lea.vmem [#allocation5], %s444
        %p446 = pneg %p73
        %p447 = pneg %p70
        %s448 = sand.u32 %s31, 1
        %s449 = scalar_lea.sflag [#allocation9], %s448
        %s450 = sand.u32 %s88, 1
        %s451 = smul.addr %s450, 128
        %s452 = scalar_lea.vmem [#allocation8], %s451
        %p453 = pneg %p101
        %p454 = pneg %p98
        %p455 = pneg %p122
        %p456 = pneg %p119
        %p457 = pneg %p143
        %p458 = pneg %p140
        %p459 = pneg %p164
        %p460 = pneg %p161
        %p461 = pneg %p185
        %p462 = pneg %p182
        %p463 = pneg %p206
        %p464 = pneg %p203
        %p465 = pneg %p227
        %p466 = pneg %p224
        %p467 = pneg %p255
        %p468 = pneg %p252
        %s469 = sand.u32 %s242, 1
        %s470 = scalar_lea.sflag [#allocation7], %s469
        %s471 = sand.u32 %s242, 1
        %s472 = smul.addr %s471, 64
        %s473 = scalar_lea.vmem [#allocation19], %s472
        %s474 = smul.u32 8, %s37
        %s475 = smul.u32 16, %s38
        %s476 = smul.u32 8, %s37
        %p477 = scmp.eq.s32.totalorder %s38, 0
        // Predicated region
        $region85: #{tpu_custom_call.1} parent=51 // pred_check
          %p478 = pneg %p477
        $region86: #{tpu_custom_call.1} parent=51 // pred_check_branch
          %480 = sbr.rel (%p478) target = $region88
        $region87: #{tpu_custom_call.1} parent=51 // pred_region
          %vm481 = vcmask 261120
          %482 = vst.msk [vmem:[#allocation2] sm:$0xff] %vm481, 0.0
          %483 = vst.msk [vmem:[#allocation2 + $0x8] sm:$0xff] %vm481, 0.0
          %484 = vst.msk [vmem:[#allocation2 + $0x10] sm:$0xff] %vm481, 0.0
          %485 = vst.msk [vmem:[#allocation2 + $0x18] sm:$0xff] %vm481, 0.0
          %486 = vst.msk [vmem:[#allocation2 + $0x20] sm:$0xff] %vm481, 0.0
          %487 = vst.msk [vmem:[#allocation2 + $0x28] sm:$0xff] %vm481, 0.0
          %488 = vst.msk [vmem:[#allocation2 + $0x30] sm:$0xff] %vm481, 0.0
          %489 = vst.msk [vmem:[#allocation2 + $0x38] sm:$0xff] %vm481, 0.0
          %490 = vst.msk [vmem:[#allocation2 + $0x40] sm:$0xff] %vm481, 0.0
          %491 = vst.msk [vmem:[#allocation2 + $0x48] sm:$0xff] %vm481, 0.0
          %492 = vst.msk [vmem:[#allocation2 + $0x50] sm:$0xff] %vm481, 0.0
          %493 = vst.msk [vmem:[#allocation2 + $0x58] sm:$0xff] %vm481, 0.0
          %494 = vst.msk [vmem:[#allocation2 + $0x60] sm:$0xff] %vm481, 0.0
          %495 = vst.msk [vmem:[#allocation2 + $0x68] sm:$0xff] %vm481, 0.0
          %496 = vst.msk [vmem:[#allocation2 + $0x70] sm:$0xff] %vm481, 0.0
          %497 = vst.msk [vmem:[#allocation2 + $0x78] sm:$0xff] %vm481, 0.0
          %498 = vst.msk [vmem:[#allocation2 + $0x80] sm:$0xff] %vm481, 0.0
          %499 = vst.msk [vmem:[#allocation2 + $0x88] sm:$0xff] %vm481, 0.0
          %500 = vst.msk [vmem:[#allocation2 + $0x90] sm:$0xff] %vm481, 0.0
          %501 = vst.msk [vmem:[#allocation2 + $0x98] sm:$0xff] %vm481, 0.0
          %502 = vst.msk [vmem:[#allocation2 + $0xa0] sm:$0xff] %vm481, 0.0
          %503 = vst.msk [vmem:[#allocation2 + $0xa8] sm:$0xff] %vm481, 0.0
          %504 = vst.msk [vmem:[#allocation2 + $0xb0] sm:$0xff] %vm481, 0.0
          %505 = vst.msk [vmem:[#allocation2 + $0xb8] sm:$0xff] %vm481, 0.0
          %506 = vst.msk [vmem:[#allocation2 + $0xc0] sm:$0xff] %vm481, 0.0
          %507 = vst.msk [vmem:[#allocation2 + $0xc8] sm:$0xff] %vm481, 0.0
          %508 = vst.msk [vmem:[#allocation2 + $0xd0] sm:$0xff] %vm481, 0.0
          %509 = vst.msk [vmem:[#allocation2 + $0xd8] sm:$0xff] %vm481, 0.0
          %510 = vst.msk [vmem:[#allocation2 + $0xe0] sm:$0xff] %vm481, 0.0
          %511 = vst.msk [vmem:[#allocation2 + $0xe8] sm:$0xff] %vm481, 0.0
          %512 = vst.msk [vmem:[#allocation2 + $0xf0] sm:$0xff] %vm481, 0.0
          %513 = vst.msk [vmem:[#allocation2 + $0xf8] sm:$0xff] %vm481, 0.0
          %vm514 = vcmask 7168
          %515 = vst.msk [vmem:[#allocation3] sm:$0xff] %vm514, -inf
          %516 = vst.msk [vmem:[#allocation3 + $0x8] sm:$0xff] %vm514, -inf
          %517 = vst.msk [vmem:[#allocation3 + $0x10] sm:$0xff] %vm514, -inf
          %518 = vst.msk [vmem:[#allocation3 + $0x18] sm:$0xff] %vm514, -inf
          %519 = vst.msk [vmem:[#allocation3 + $0x20] sm:$0xff] %vm514, -inf
          %520 = vst.msk [vmem:[#allocation3 + $0x28] sm:$0xff] %vm514, -inf
          %521 = vst.msk [vmem:[#allocation3 + $0x30] sm:$0xff] %vm514, -inf
          %522 = vst.msk [vmem:[#allocation3 + $0x38] sm:$0xff] %vm514, -inf
          %523 = vst.msk [vmem:[#allocation3 + $0x40] sm:$0xff] %vm514, -inf
          %524 = vst.msk [vmem:[#allocation3 + $0x48] sm:$0xff] %vm514, -inf
          %525 = vst.msk [vmem:[#allocation3 + $0x50] sm:$0xff] %vm514, -inf
          %526 = vst.msk [vmem:[#allocation3 + $0x58] sm:$0xff] %vm514, -inf
          %527 = vst.msk [vmem:[#allocation3 + $0x60] sm:$0xff] %vm514, -inf
          %528 = vst.msk [vmem:[#allocation3 + $0x68] sm:$0xff] %vm514, -inf
          %529 = vst.msk [vmem:[#allocation3 + $0x70] sm:$0xff] %vm514, -inf
          %530 = vst.msk [vmem:[#allocation3 + $0x78] sm:$0xff] %vm514, -inf
          %531 = vst.msk [vmem:[#allocation3 + $0x80] sm:$0xff] %vm514, -inf
          %532 = vst.msk [vmem:[#allocation3 + $0x88] sm:$0xff] %vm514, -inf
          %533 = vst.msk [vmem:[#allocation3 + $0x90] sm:$0xff] %vm514, -inf
          %534 = vst.msk [vmem:[#allocation3 + $0x98] sm:$0xff] %vm514, -inf
          %535 = vst.msk [vmem:[#allocation3 + $0xa0] sm:$0xff] %vm514, -inf
          %536 = vst.msk [vmem:[#allocation3 + $0xa8] sm:$0xff] %vm514, -inf
          %537 = vst.msk [vmem:[#allocation3 + $0xb0] sm:$0xff] %vm514, -inf
          %538 = vst.msk [vmem:[#allocation3 + $0xb8] sm:$0xff] %vm514, -inf
          %539 = vst.msk [vmem:[#allocation3 + $0xc0] sm:$0xff] %vm514, -inf
          %540 = vst.msk [vmem:[#allocation3 + $0xc8] sm:$0xff] %vm514, -inf
          %541 = vst.msk [vmem:[#allocation3 + $0xd0] sm:$0xff] %vm514, -inf
          %542 = vst.msk [vmem:[#allocation3 + $0xd8] sm:$0xff] %vm514, -inf
          %543 = vst.msk [vmem:[#allocation3 + $0xe0] sm:$0xff] %vm514, -inf
          %544 = vst.msk [vmem:[#allocation3 + $0xe8] sm:$0xff] %vm514, -inf
          %545 = vst.msk [vmem:[#allocation3 + $0xf0] sm:$0xff] %vm514, -inf
          %546 = vst.msk [vmem:[#allocation3 + $0xf8] sm:$0xff] %vm514, -inf
          %547 = vst.msk [vmem:[#allocation4] sm:$0xff] %vm514, 0.0
          %548 = vst.msk [vmem:[#allocation4 + $0x8] sm:$0xff] %vm514, 0.0
          %549 = vst.msk [vmem:[#allocation4 + $0x10] sm:$0xff] %vm514, 0.0
          %550 = vst.msk [vmem:[#allocation4 + $0x18] sm:$0xff] %vm514, 0.0
          %551 = vst.msk [vmem:[#allocation4 + $0x20] sm:$0xff] %vm514, 0.0
          %552 = vst.msk [vmem:[#allocation4 + $0x28] sm:$0xff] %vm514, 0.0
          %553 = vst.msk [vmem:[#allocation4 + $0x30] sm:$0xff] %vm514, 0.0
          %554 = vst.msk [vmem:[#allocation4 + $0x38] sm:$0xff] %vm514, 0.0
          %555 = vst.msk [vmem:[#allocation4 + $0x40] sm:$0xff] %vm514, 0.0
          %556 = vst.msk [vmem:[#allocation4 + $0x48] sm:$0xff] %vm514, 0.0
          %557 = vst.msk [vmem:[#allocation4 + $0x50] sm:$0xff] %vm514, 0.0
          %558 = vst.msk [vmem:[#allocation4 + $0x58] sm:$0xff] %vm514, 0.0
          %559 = vst.msk [vmem:[#allocation4 + $0x60] sm:$0xff] %vm514, 0.0
          %560 = vst.msk [vmem:[#allocation4 + $0x68] sm:$0xff] %vm514, 0.0
          %561 = vst.msk [vmem:[#allocation4 + $0x70] sm:$0xff] %vm514, 0.0
          %562 = vst.msk [vmem:[#allocation4 + $0x78] sm:$0xff] %vm514, 0.0
          %563 = vst.msk [vmem:[#allocation4 + $0x80] sm:$0xff] %vm514, 0.0
          %564 = vst.msk [vmem:[#allocation4 + $0x88] sm:$0xff] %vm514, 0.0
          %565 = vst.msk [vmem:[#allocation4 + $0x90] sm:$0xff] %vm514, 0.0
          %566 = vst.msk [vmem:[#allocation4 + $0x98] sm:$0xff] %vm514, 0.0
          %567 = vst.msk [vmem:[#allocation4 + $0xa0] sm:$0xff] %vm514, 0.0
          %568 = vst.msk [vmem:[#allocation4 + $0xa8] sm:$0xff] %vm514, 0.0
          %569 = vst.msk [vmem:[#allocation4 + $0xb0] sm:$0xff] %vm514, 0.0
          %570 = vst.msk [vmem:[#allocation4 + $0xb8] sm:$0xff] %vm514, 0.0
          %571 = vst.msk [vmem:[#allocation4 + $0xc0] sm:$0xff] %vm514, 0.0
          %572 = vst.msk [vmem:[#allocation4 + $0xc8] sm:$0xff] %vm514, 0.0
          %573 = vst.msk [vmem:[#allocation4 + $0xd0] sm:$0xff] %vm514, 0.0
          %574 = vst.msk [vmem:[#allocation4 + $0xd8] sm:$0xff] %vm514, 0.0
          %575 = vst.msk [vmem:[#allocation4 + $0xe0] sm:$0xff] %vm514, 0.0
          %576 = vst.msk [vmem:[#allocation4 + $0xe8] sm:$0xff] %vm514, 0.0
          %577 = vst.msk [vmem:[#allocation4 + $0xf0] sm:$0xff] %vm514, 0.0
          %578 = vst.msk [vmem:[#allocation4 + $0xf8] sm:$0xff] %vm514, 0.0
        $region88: #{tpu_custom_call.1} parent=51 // pred_fallthru
          _
        %v579 = vld [vmem:[%s403] sm:$0xff]
        %v580 = vld [vmem:[%s403 + $0x8] sm:$0xff]
        %v581 = vld [vmem:[%s403 + $0x10] sm:$0xff]
        %v582 = vld [vmem:[%s403 + $0x18] sm:$0xff]
        %v583 = vld [vmem:[%s403 + $0x20] sm:$0xff]
        %v584 = vld [vmem:[%s403 + $0x28] sm:$0xff]
        %v585 = vld [vmem:[%s403 + $0x30] sm:$0xff]
        %v586 = vld [vmem:[%s403 + $0x38] sm:$0xff]
        %v587 = vld [vmem:[%s412] sm:$0xff]
        %v588 = vld [vmem:[%s412 + $0x8] sm:$0xff]
        %v589 = vld [vmem:[%s412 + $0x10] sm:$0xff]
        %v590 = vld [vmem:[%s412 + $0x18] sm:$0xff]
        %v591 = vld [vmem:[%s412 + $0x20] sm:$0xff]
        %v592 = vld [vmem:[%s412 + $0x28] sm:$0xff]
        %v593 = vld [vmem:[%s412 + $0x30] sm:$0xff]
        %v594 = vld [vmem:[%s412 + $0x38] sm:$0xff]
        %v595 = vld [vmem:[%s412 + $0x40] sm:$0xff]
        %v596 = vld [vmem:[%s412 + $0x48] sm:$0xff]
        %v597 = vld [vmem:[%s412 + $0x50] sm:$0xff]
        %v598 = vld [vmem:[%s412 + $0x58] sm:$0xff]
        %v599 = vld [vmem:[%s412 + $0x60] sm:$0xff]
        %v600 = vld [vmem:[%s412 + $0x68] sm:$0xff]
        %v601 = vld [vmem:[%s412 + $0x70] sm:$0xff]
        %v602 = vld [vmem:[%s412 + $0x78] sm:$0xff]
        %v603 = vld [vmem:[#allocation10] sm:$0xff]
        %v604 = vld [vmem:[#allocation10 + $0x8] sm:$0xff]
        %v605 = vld [vmem:[#allocation10 + $0x10] sm:$0xff]
        %v606 = vld [vmem:[#allocation10 + $0x18] sm:$0xff]
        %v607 = vld [vmem:[#allocation10 + $0x20] sm:$0xff]
        %v608 = vld [vmem:[#allocation10 + $0x28] sm:$0xff]
        %v609 = vld [vmem:[#allocation10 + $0x30] sm:$0xff]
        %v610 = vld [vmem:[#allocation10 + $0x38] sm:$0xff]
        %v611 = vld [vmem:[#allocation10 + $0x40] sm:$0xff]
        %v612 = vld [vmem:[#allocation10 + $0x48] sm:$0xff]
        %v613 = vld [vmem:[#allocation10 + $0x50] sm:$0xff]
        %v614 = vld [vmem:[#allocation10 + $0x58] sm:$0xff]
        %v615 = vld [vmem:[#allocation10 + $0x60] sm:$0xff]
        %v616 = vld [vmem:[#allocation10 + $0x68] sm:$0xff]
        %v617 = vld [vmem:[#allocation10 + $0x70] sm:$0xff]
        %v618 = vld [vmem:[#allocation10 + $0x78] sm:$0xff]
        %v619 = vld [vmem:[#allocation11] sm:$0x1]
        %v621 = vlaneseq
        %v622 = vshrl.u32 %v621, 7
        %v623 = vsub.s32 0, %v622
        %v624 = vrot.slane %v619, %v623
        %626 = vmatprep.subr.mxu0 0.0
        %627 = vmatpush1.msra.mxu0 %v603
        %628 = vmatprep.subr.mxu0 0.0
        %629 = vmatpush1.msra.mxu0 %v604
        %630 = vmatprep.subr.mxu0 0.0
        %631 = vmatpush1.msra.mxu0 %v605
        %632 = vmatprep.subr.mxu0 0.0
        %633 = vmatpush1.msra.mxu0 %v606
        %634 = vmatprep.subr.mxu0 0.0
        %635 = vmatpush1.msra.mxu0 %v607
        %636 = vmatprep.subr.mxu0 0.0
        %637 = vmatpush1.msra.mxu0 %v608
        %638 = vmatprep.subr.mxu0 0.0
        %639 = vmatpush1.msra.mxu0 %v609
        %640 = vmatprep.subr.mxu0 0.0
        %641 = vmatpush1.msra.mxu0 %v610
        %642 = vmatprep.subr.mxu0 0.0
        %643 = vmatpush1.msra.mxu0 %v611
        %644 = vmatprep.subr.mxu0 0.0
        %645 = vmatpush1.msra.mxu0 %v612
        %646 = vmatprep.subr.mxu0 0.0
        %647 = vmatpush1.msra.mxu0 %v613
        %648 = vmatprep.subr.mxu0 0.0
        %649 = vmatpush1.msra.mxu0 %v614
        %650 = vmatprep.subr.mxu0 0.0
        %651 = vmatpush1.msra.mxu0 %v615
        %652 = vmatprep.subr.mxu0 0.0
        %653 = vmatpush1.msra.mxu0 %v616
        %654 = vmatprep.subr.mxu0 0.0
        %655 = vmatpush1.msra.mxu0 %v617
        %656 = vmatprep.subr.mxu0 0.0
        %657 = vmatpush1.msra.mxu0 %v618
        %658 = vmatprep.subr.mxu0 0.0
        %659 = vmatpush1.msra.mxu0 0.0
        %660 = vmatprep.subr.mxu0 0.0
        %661 = vmatpush1.msra.mxu0 0.0
        %662 = vmatprep.subr.mxu0 0.0
        %663 = vmatpush1.msra.mxu0 0.0
        %664 = vmatprep.subr.mxu0 0.0
        %665 = vmatpush1.msra.mxu0 0.0
        %666 = vmatprep.subr.mxu0 0.0
        %667 = vmatpush1.msra.mxu0 0.0
        %668 = vmatprep.subr.mxu0 0.0
        %669 = vmatpush1.msra.mxu0 0.0
        %670 = vmatprep.subr.mxu0 0.0
        %671 = vmatpush1.msra.mxu0 0.0
        %672 = vmatprep.subr.mxu0 0.0
        %673 = vmatpush1.msra.mxu0 0.0
        %674 = vmatprep.subr.mxu0 0.0
        %675 = vmatpush1.msra.mxu0 0.0
        %676 = vmatprep.subr.mxu0 0.0
        %677 = vmatpush1.msra.mxu0 0.0
        %678 = vmatprep.subr.mxu0 0.0
        %679 = vmatpush1.msra.mxu0 0.0
        %680 = vmatprep.subr.mxu0 0.0
        %681 = vmatpush1.msra.mxu0 0.0
        %682 = vmatprep.subr.mxu0 0.0
        %683 = vmatpush1.msra.mxu0 0.0
        %684 = vmatprep.subr.mxu0 0.0
        %685 = vmatpush1.msra.mxu0 0.0
        %686 = vmatprep.subr.mxu0 0.0
        %687 = vmatpush1.msra.mxu0 0.0
        %688 = vmatprep.subr.mxu0 0.0
        %689 = vmatpush1.msra.mxu0 0.0
        %690 = vmatprep.mubr.f32.mxu0 0.0
        %691 = vmatmul.mubr.f32.gmra.mrb[0].mxu0 %v587
        %v692 = vpop.f32.mrb[0].mxu0
        %v693 = vadd.f32 %v624, %v692
        %v694 = vpop.f32.mrb[0].mxu0
        %695 = vmatprep.mubr.f32.mxu0 0.0
        %696 = vmatmul.mubr.f32.gmra.mrb[0].mxu0 %v588
        %v697 = vpop.f32.mrb[0].mxu0
        %v698 = vadd.f32 %v624, %v697
        %v699 = vpop.f32.mrb[0].mxu0
        %700 = vmatprep.mubr.f32.mxu0 0.0
        %701 = vmatmul.mubr.f32.gmra.mrb[0].mxu0 %v589
        %v702 = vpop.f32.mrb[0].mxu0
        %v703 = vadd.f32 %v624, %v702
        %v704 = vpop.f32.mrb[0].mxu0
        %705 = vmatprep.mubr.f32.mxu0 0.0
        %706 = vmatmul.mubr.f32.gmra.mrb[0].mxu0 %v590
        %v707 = vpop.f32.mrb[0].mxu0
        %v708 = vadd.f32 %v624, %v707
        %v709 = vpop.f32.mrb[0].mxu0
        %710 = vmatprep.mubr.f32.mxu0 0.0
        %711 = vmatmul.mubr.f32.gmra.mrb[0].mxu0 %v591
        %v712 = vpop.f32.mrb[0].mxu0
        %v713 = vadd.f32 %v624, %v712
        %v714 = vpop.f32.mrb[0].mxu0
        %715 = vmatprep.mubr.f32.mxu0 0.0
        %716 = vmatmul.mubr.f32.gmra.mrb[0].mxu0 %v592
        %v717 = vpop.f32.mrb[0].mxu0
        %v718 = vadd.f32 %v624, %v717
        %v719 = vpop.f32.mrb[0].mxu0
        %720 = vmatprep.mubr.f32.mxu0 0.0
        %721 = vmatmul.mubr.f32.gmra.mrb[0].mxu0 %v593
        %v722 = vpop.f32.mrb[0].mxu0
        %v723 = vadd.f32 %v624, %v722
        %v724 = vpop.f32.mrb[0].mxu0
        %725 = vmatprep.mubr.f32.mxu0 0.0
        %726 = vmatmul.mubr.f32.gmra.mrb[0].mxu0 %v594
        %v727 = vpop.f32.mrb[0].mxu0
        %v728 = vadd.f32 %v624, %v727
        %v729 = vpop.f32.mrb[0].mxu0
        %730 = vmatprep.mubr.f32.mxu0 0.0
        %731 = vmatmul.mubr.f32.gmra.mrb[0].mxu0 %v595
        %v732 = vpop.f32.mrb[0].mxu0
        %v733 = vadd.f32 %v624, %v732
        %v734 = vpop.f32.mrb[0].mxu0
        %735 = vmatprep.mubr.f32.mxu0 0.0
        %736 = vmatmul.mubr.f32.gmra.mrb[0].mxu0 %v596
        %v737 = vpop.f32.mrb[0].mxu0
        %v738 = vadd.f32 %v624, %v737
        %v739 = vpop.f32.mrb[0].mxu0
        %740 = vmatprep.mubr.f32.mxu0 0.0
        %741 = vmatmul.mubr.f32.gmra.mrb[0].mxu0 %v597
        %v742 = vpop.f32.mrb[0].mxu0
        %v743 = vadd.f32 %v624, %v742
        %v744 = vpop.f32.mrb[0].mxu0
        %745 = vmatprep.mubr.f32.mxu0 0.0
        %746 = vmatmul.mubr.f32.gmra.mrb[0].mxu0 %v598
        %v747 = vpop.f32.mrb[0].mxu0
        %v748 = vadd.f32 %v624, %v747
        %v749 = vpop.f32.mrb[0].mxu0
        %750 = vmatprep.mubr.f32.mxu0 0.0
        %751 = vmatmul.mubr.f32.gmra.mrb[0].mxu0 %v599
        %v752 = vpop.f32.mrb[0].mxu0
        %v753 = vadd.f32 %v624, %v752
        %v754 = vpop.f32.mrb[0].mxu0
        %755 = vmatprep.mubr.f32.mxu0 0.0
        %756 = vmatmul.mubr.f32.gmra.mrb[0].mxu0 %v600
        %v757 = vpop.f32.mrb[0].mxu0
        %v758 = vadd.f32 %v624, %v757
        %v759 = vpop.f32.mrb[0].mxu0
        %760 = vmatprep.mubr.f32.mxu0 0.0
        %761 = vmatmul.mubr.f32.gmra.mrb[0].mxu0 %v601
        %v762 = vpop.f32.mrb[0].mxu0
        %v763 = vadd.f32 %v624, %v762
        %v764 = vpop.f32.mrb[0].mxu0
        %765 = vmatprep.mubr.f32.mxu0 0.0
        %766 = vmatmul.mubr.f32.gmra.mrb[0].mxu0 %v602
        %v767 = vpop.f32.mrb[0].mxu0
        %v768 = vadd.f32 %v624, %v767
        %v769 = vpop.f32.mrb[0].mxu0
        %770 = vdwg.mxu0
        %v771 = vld [vmem:[#allocation13] sm:$0xff]
        %v772 = vld [vmem:[#allocation13 + $0x8] sm:$0xff]
        %v773 = vld [vmem:[#allocation13 + $0x10] sm:$0xff]
        %v774 = vld [vmem:[#allocation13 + $0x18] sm:$0xff]
        %v775 = vld [vmem:[#allocation13 + $0x20] sm:$0xff]
        %v776 = vld [vmem:[#allocation13 + $0x28] sm:$0xff]
        %v777 = vld [vmem:[#allocation13 + $0x30] sm:$0xff]
        %v778 = vld [vmem:[#allocation13 + $0x38] sm:$0xff]
        %v779 = vld [vmem:[#allocation13 + $0x40] sm:$0xff]
        %v780 = vld [vmem:[#allocation13 + $0x48] sm:$0xff]
        %v781 = vld [vmem:[#allocation13 + $0x50] sm:$0xff]
        %v782 = vld [vmem:[#allocation13 + $0x58] sm:$0xff]
        %v783 = vld [vmem:[#allocation13 + $0x60] sm:$0xff]
        %v784 = vld [vmem:[#allocation13 + $0x68] sm:$0xff]
        %v785 = vld [vmem:[#allocation13 + $0x70] sm:$0xff]
        %v786 = vld [vmem:[#allocation13 + $0x78] sm:$0xff]
        %v787 = vld [vmem:[#allocation14] sm:$0x1]
        %v789 = vlaneseq
        %v790 = vshrl.u32 %v789, 7
        %v791 = vsub.s32 0, %v790
        %v792 = vrot.slane %v787, %v791
        %794 = vmatprep.subr.mxu0 0.0
        %795 = vmatpush1.msra.mxu0 %v771
        %796 = vmatprep.subr.mxu0 0.0
        %797 = vmatpush1.msra.mxu0 %v772
        %798 = vmatprep.subr.mxu0 0.0
        %799 = vmatpush1.msra.mxu0 %v773
        %800 = vmatprep.subr.mxu0 0.0
        %801 = vmatpush1.msra.mxu0 %v774
        %802 = vmatprep.subr.mxu0 0.0
        %803 = vmatpush1.msra.mxu0 %v775
        %804 = vmatprep.subr.mxu0 0.0
        %805 = vmatpush1.msra.mxu0 %v776
        %806 = vmatprep.subr.mxu0 0.0
        %807 = vmatpush1.msra.mxu0 %v777
        %808 = vmatprep.subr.mxu0 0.0
        %809 = vmatpush1.msra.mxu0 %v778
        %810 = vmatprep.subr.mxu0 0.0
        %811 = vmatpush1.msra.mxu0 %v779
        %812 = vmatprep.subr.mxu0 0.0
        %813 = vmatpush1.msra.mxu0 %v780
        %814 = vmatprep.subr.mxu0 0.0
        %815 = vmatpush1.msra.mxu0 %v781
        %816 = vmatprep.subr.mxu0 0.0
        %817 = vmatpush1.msra.mxu0 %v782
        %818 = vmatprep.subr.mxu0 0.0
        %819 = vmatpush1.msra.mxu0 %v783
        %820 = vmatprep.subr.mxu0 0.0
        %821 = vmatpush1.msra.mxu0 %v784
        %822 = vmatprep.subr.mxu0 0.0
        %823 = vmatpush1.msra.mxu0 %v785
        %824 = vmatprep.subr.mxu0 0.0
        %825 = vmatpush1.msra.mxu0 %v786
        %826 = vmatprep.subr.mxu0 0.0
        %827 = vmatpush1.msra.mxu0 0.0
        %828 = vmatprep.subr.mxu0 0.0
        %829 = vmatpush1.msra.mxu0 0.0
        %830 = vmatprep.subr.mxu0 0.0
        %831 = vmatpush1.msra.mxu0 0.0
        %832 = vmatprep.subr.mxu0 0.0
        %833 = vmatpush1.msra.mxu0 0.0
        %834 = vmatprep.subr.mxu0 0.0
        %835 = vmatpush1.msra.mxu0 0.0
        %836 = vmatprep.subr.mxu0 0.0
        %837 = vmatpush1.msra.mxu0 0.0
        %838 = vmatprep.subr.mxu0 0.0
        %839 = vmatpush1.msra.mxu0 0.0
        %840 = vmatprep.subr.mxu0 0.0
        %841 = vmatpush1.msra.mxu0 0.0
        %842 = vmatprep.subr.mxu0 0.0
        %843 = vmatpush1.msra.mxu0 0.0
        %844 = vmatprep.subr.mxu0 0.0
        %845 = vmatpush1.msra.mxu0 0.0
        %846 = vmatprep.subr.mxu0 0.0
        %847 = vmatpush1.msra.mxu0 0.0
        %848 = vmatprep.subr.mxu0 0.0
        %849 = vmatpush1.msra.mxu0 0.0
        %850 = vmatprep.subr.mxu0 0.0
        %851 = vmatpush1.msra.mxu0 0.0
        %852 = vmatprep.subr.mxu0 0.0
        %853 = vmatpush1.msra.mxu0 0.0
        %854 = vmatprep.subr.mxu0 0.0
        %855 = vmatpush1.msra.mxu0 0.0
        %856 = vmatprep.subr.mxu0 0.0
        %857 = vmatpush1.msra.mxu0 0.0
        %858 = vmatprep.mubr.f32.mxu0 0.0
        %859 = vmatmul.mubr.f32.gmra.mrb[0].mxu0 %v587
        %v860 = vpop.f32.mrb[0].mxu0
        %v861 = vadd.f32 %v792, %v860
        %v862 = vpop.f32.mrb[0].mxu0
        %863 = vmatprep.mubr.f32.mxu0 0.0
        %864 = vmatmul.mubr.f32.gmra.mrb[0].mxu0 %v588
        %v865 = vpop.f32.mrb[0].mxu0
        %v866 = vadd.f32 %v792, %v865
        %v867 = vpop.f32.mrb[0].mxu0
        %868 = vmatprep.mubr.f32.mxu0 0.0
        %869 = vmatmul.mubr.f32.gmra.mrb[0].mxu0 %v589
        %v870 = vpop.f32.mrb[0].mxu0
        %v871 = vadd.f32 %v792, %v870
        %v872 = vpop.f32.mrb[0].mxu0
        %873 = vmatprep.mubr.f32.mxu0 0.0
        %874 = vmatmul.mubr.f32.gmra.mrb[0].mxu0 %v590
        %v875 = vpop.f32.mrb[0].mxu0
        %v876 = vadd.f32 %v792, %v875
        %v877 = vpop.f32.mrb[0].mxu0
        %878 = vmatprep.mubr.f32.mxu0 0.0
        %879 = vmatmul.mubr.f32.gmra.mrb[0].mxu0 %v591
        %v880 = vpop.f32.mrb[0].mxu0
        %v881 = vadd.f32 %v792, %v880
        %v882 = vpop.f32.mrb[0].mxu0
        %883 = vmatprep.mubr.f32.mxu0 0.0
        %884 = vmatmul.mubr.f32.gmra.mrb[0].mxu0 %v592
        %v885 = vpop.f32.mrb[0].mxu0
        %v886 = vadd.f32 %v792, %v885
        %v887 = vpop.f32.mrb[0].mxu0
        %888 = vmatprep.mubr.f32.mxu0 0.0
        %889 = vmatmul.mubr.f32.gmra.mrb[0].mxu0 %v593
        %v890 = vpop.f32.mrb[0].mxu0
        %v891 = vadd.f32 %v792, %v890
        %v892 = vpop.f32.mrb[0].mxu0
        %893 = vmatprep.mubr.f32.mxu0 0.0
        %894 = vmatmul.mubr.f32.gmra.mrb[0].mxu0 %v594
        %v895 = vpop.f32.mrb[0].mxu0
        %v896 = vadd.f32 %v792, %v895
        %v897 = vpop.f32.mrb[0].mxu0
        %898 = vmatprep.mubr.f32.mxu0 0.0
        %899 = vmatmul.mubr.f32.gmra.mrb[0].mxu0 %v595
        %v900 = vpop.f32.mrb[0].mxu0
        %v901 = vadd.f32 %v792, %v900
        %v902 = vpop.f32.mrb[0].mxu0
        %903 = vmatprep.mubr.f32.mxu0 0.0
        %904 = vmatmul.mubr.f32.gmra.mrb[0].mxu0 %v596
        %v905 = vpop.f32.mrb[0].mxu0
        %v906 = vadd.f32 %v792, %v905
        %v907 = vpop.f32.mrb[0].mxu0
        %908 = vmatprep.mubr.f32.mxu0 0.0
        %909 = vmatmul.mubr.f32.gmra.mrb[0].mxu0 %v597
        %v910 = vpop.f32.mrb[0].mxu0
        %v911 = vadd.f32 %v792, %v910
        %v912 = vpop.f32.mrb[0].mxu0
        %913 = vmatprep.mubr.f32.mxu0 0.0
        %914 = vmatmul.mubr.f32.gmra.mrb[0].mxu0 %v598
        %v915 = vpop.f32.mrb[0].mxu0
        %v916 = vadd.f32 %v792, %v915
        %v917 = vpop.f32.mrb[0].mxu0
        %918 = vmatprep.mubr.f32.mxu0 0.0
        %919 = vmatmul.mubr.f32.gmra.mrb[0].mxu0 %v599
        %v920 = vpop.f32.mrb[0].mxu0
        %v921 = vadd.f32 %v792, %v920
        %v922 = vpop.f32.mrb[0].mxu0
        %923 = vmatprep.mubr.f32.mxu0 0.0
        %924 = vmatmul.mubr.f32.gmra.mrb[0].mxu0 %v600
        %v925 = vpop.f32.mrb[0].mxu0
        %v926 = vadd.f32 %v792, %v925
        %v927 = vpop.f32.mrb[0].mxu0
        %928 = vmatprep.mubr.f32.mxu0 0.0
        %929 = vmatmul.mubr.f32.gmra.mrb[0].mxu0 %v601
        %v930 = vpop.f32.mrb[0].mxu0
        %v931 = vadd.f32 %v792, %v930
        %v932 = vpop.f32.mrb[0].mxu0
        %933 = vmatprep.mubr.f32.mxu0 0.0
        %934 = vmatmul.mubr.f32.gmra.mrb[0].mxu0 %v602
        %v935 = vpop.f32.mrb[0].mxu0
        %v936 = vadd.f32 %v792, %v935
        %v937 = vpop.f32.mrb[0].mxu0
        %938 = vdwg.mxu0
        %vm939 = vcmask 261120
        %v941 = vsel %vm939, %v579, 0
        %v944 = vsel %vm939, %v580, 0
        %v947 = vsel %vm939, %v581, 0
        %v950 = vsel %vm939, %v582, 0
        %v953 = vsel %vm939, %v583, 0
        %v956 = vsel %vm939, %v584, 0
        %v959 = vsel %vm939, %v585, 0
        %v962 = vsel %vm939, %v586, 0
        %v965 = vsel %vm939, %v693, 0
        %v968 = vsel %vm939, %v698, 0
        %v971 = vsel %vm939, %v703, 0
        %v974 = vsel %vm939, %v708, 0
        %v977 = vsel %vm939, %v713, 0
        %v980 = vsel %vm939, %v718, 0
        %v983 = vsel %vm939, %v723, 0
        %v986 = vsel %vm939, %v728, 0
        %v989 = vsel %vm939, %v733, 0
        %v992 = vsel %vm939, %v738, 0
        %v995 = vsel %vm939, %v743, 0
        %v998 = vsel %vm939, %v748, 0
        %v1001 = vsel %vm939, %v753, 0
        %v1004 = vsel %vm939, %v758, 0
        %v1007 = vsel %vm939, %v763, 0
        %v1010 = vsel %vm939, %v768, 0
        %1012 = vmatprep.subr.mxu0 0.0
        %1013 = vmatpush1.xpose.msra.mxu0 %v965
        %1014 = vmatprep.subr.mxu0 0.0
        %1015 = vmatpush1.xpose.msra.mxu0 %v968
        %1016 = vmatprep.subr.mxu0 0.0
        %1017 = vmatpush1.xpose.msra.mxu0 %v971
        %1018 = vmatprep.subr.mxu0 0.0
        %1019 = vmatpush1.xpose.msra.mxu0 %v974
        %1020 = vmatprep.subr.mxu0 0.0
        %1021 = vmatpush1.xpose.msra.mxu0 %v977
        %1022 = vmatprep.subr.mxu0 0.0
        %1023 = vmatpush1.xpose.msra.mxu0 %v980
        %1024 = vmatprep.subr.mxu0 0.0
        %1025 = vmatpush1.xpose.msra.mxu0 %v983
        %1026 = vmatprep.subr.mxu0 0.0
        %1027 = vmatpush1.xpose.msra.mxu0 %v986
        %1028 = vmatprep.subr.mxu0 0.0
        %1029 = vmatpush1.xpose.msra.mxu0 %v989
        %1030 = vmatprep.subr.mxu0 0.0
        %1031 = vmatpush1.xpose.msra.mxu0 %v992
        %1032 = vmatprep.subr.mxu0 0.0
        %1033 = vmatpush1.xpose.msra.mxu0 %v995
        %1034 = vmatprep.subr.mxu0 0.0
        %1035 = vmatpush1.xpose.msra.mxu0 %v998
        %1036 = vmatprep.subr.mxu0 0.0
        %1037 = vmatpush1.xpose.msra.mxu0 %v1001
        %1038 = vmatprep.subr.mxu0 0.0
        %1039 = vmatpush1.xpose.msra.mxu0 %v1004
        %1040 = vmatprep.subr.mxu0 0.0
        %1041 = vmatpush1.xpose.msra.mxu0 %v1007
        %1042 = vmatprep.subr.mxu0 0.0
        %1043 = vmatpush1.xpose.msra.mxu0 %v1010
        %1044 = vmatprep.subr.mxu0 0.0
        %1045 = vmatpush1.xpose.msra.mxu0 0.0
        %1046 = vmatprep.subr.mxu0 0.0
        %1047 = vmatpush1.xpose.msra.mxu0 0.0
        %1048 = vmatprep.subr.mxu0 0.0
        %1049 = vmatpush1.xpose.msra.mxu0 0.0
        %1050 = vmatprep.subr.mxu0 0.0
        %1051 = vmatpush1.xpose.msra.mxu0 0.0
        %1052 = vmatprep.subr.mxu0 0.0
        %1053 = vmatpush1.xpose.msra.mxu0 0.0
        %1054 = vmatprep.subr.mxu0 0.0
        %1055 = vmatpush1.xpose.msra.mxu0 0.0
        %1056 = vmatprep.subr.mxu0 0.0
        %1057 = vmatpush1.xpose.msra.mxu0 0.0
        %1058 = vmatprep.subr.mxu0 0.0
        %1059 = vmatpush1.xpose.msra.mxu0 0.0
        %1060 = vmatprep.subr.mxu0 0.0
        %1061 = vmatpush1.xpose.msra.mxu0 0.0
        %1062 = vmatprep.subr.mxu0 0.0
        %1063 = vmatpush1.xpose.msra.mxu0 0.0
        %1064 = vmatprep.subr.mxu0 0.0
        %1065 = vmatpush1.xpose.msra.mxu0 0.0
        %1066 = vmatprep.subr.mxu0 0.0
        %1067 = vmatpush1.xpose.msra.mxu0 0.0
        %1068 = vmatprep.subr.mxu0 0.0
        %1069 = vmatpush1.xpose.msra.mxu0 0.0
        %1070 = vmatprep.subr.mxu0 0.0
        %1071 = vmatpush1.xpose.msra.mxu0 0.0
        %1072 = vmatprep.subr.mxu0 0.0
        %1073 = vmatpush1.xpose.msra.mxu0 0.0
        %1074 = vmatprep.subr.mxu0 0.0
        %1075 = vmatpush1.xpose.msra.mxu0 0.0
        %1076 = vmatprep.mubr.f32.mxu0 0.0
        %1077 = vmatmul.mubr.f32.gmra.mrb[0].mxu0 %v941
        %v1078 = vpop.f32.mrb[0].mxu0
        %v1079 = vadd.f32 0.0, %v1078
        %v1080 = vpop.f32.mrb[0].mxu0
        %1081 = vmatprep.mubr.f32.mxu0 0.0
        %1082 = vmatmul.mubr.f32.gmra.mrb[0].mxu0 %v944
        %v1083 = vpop.f32.mrb[0].mxu0
        %v1084 = vadd.f32 0.0, %v1083
        %v1085 = vpop.f32.mrb[0].mxu0
        %1086 = vmatprep.mubr.f32.mxu0 0.0
        %1087 = vmatmul.mubr.f32.gmra.mrb[0].mxu0 %v947
        %v1088 = vpop.f32.mrb[0].mxu0
        %v1089 = vadd.f32 0.0, %v1088
        %v1090 = vpop.f32.mrb[0].mxu0
        %1091 = vmatprep.mubr.f32.mxu0 0.0
        %1092 = vmatmul.mubr.f32.gmra.mrb[0].mxu0 %v950
        %v1093 = vpop.f32.mrb[0].mxu0
        %v1094 = vadd.f32 0.0, %v1093
        %v1095 = vpop.f32.mrb[0].mxu0
        %1096 = vmatprep.mubr.f32.mxu0 0.0
        %1097 = vmatmul.mubr.f32.gmra.mrb[0].mxu0 %v953
        %v1098 = vpop.f32.mrb[0].mxu0
        %v1099 = vadd.f32 0.0, %v1098
        %v1100 = vpop.f32.mrb[0].mxu0
        %1101 = vmatprep.mubr.f32.mxu0 0.0
        %1102 = vmatmul.mubr.f32.gmra.mrb[0].mxu0 %v956
        %v1103 = vpop.f32.mrb[0].mxu0
        %v1104 = vadd.f32 0.0, %v1103
        %v1105 = vpop.f32.mrb[0].mxu0
        %1106 = vmatprep.mubr.f32.mxu0 0.0
        %1107 = vmatmul.mubr.f32.gmra.mrb[0].mxu0 %v959
        %v1108 = vpop.f32.mrb[0].mxu0
        %v1109 = vadd.f32 0.0, %v1108
        %v1110 = vpop.f32.mrb[0].mxu0
        %1111 = vmatprep.mubr.f32.mxu0 0.0
        %1112 = vmatmul.mubr.f32.gmra.mrb[0].mxu0 %v962
        %v1113 = vpop.f32.mrb[0].mxu0
        %v1114 = vadd.f32 0.0, %v1113
        %v1115 = vpop.f32.mrb[0].mxu0
        %1116 = vdwg.mxu0
        %v1117 = vld [vmem:[#allocation3] sm:$0xff]
        %v1118 = vld [vmem:[#allocation3 + $0x8] sm:$0xff]
        %v1119 = vld [vmem:[#allocation3 + $0x10] sm:$0xff]
        %v1120 = vld [vmem:[#allocation3 + $0x18] sm:$0xff]
        %v1121 = vld [vmem:[#allocation3 + $0x20] sm:$0xff]
        %v1122 = vld [vmem:[#allocation3 + $0x28] sm:$0xff]
        %v1123 = vld [vmem:[#allocation3 + $0x30] sm:$0xff]
        %v1124 = vld [vmem:[#allocation3 + $0x38] sm:$0xff]
        %1125 = vmax.xlane.f32.xlu0 %v1079
        %v1126 = vpop.xlane.xlu0 %1125
        %1127 = vmax.xlane.f32.xlu0 %v1084
        %v1128 = vpop.xlane.xlu0 %1127
        %1129 = vmax.xlane.f32.xlu0 %v1089
        %v1130 = vpop.xlane.xlu0 %1129
        %1131 = vmax.xlane.f32.xlu0 %v1094
        %v1132 = vpop.xlane.xlu0 %1131
        %1133 = vmax.xlane.f32.xlu0 %v1099
        %v1134 = vpop.xlane.xlu0 %1133
        %1135 = vmax.xlane.f32.xlu0 %v1104
        %v1136 = vpop.xlane.xlu0 %1135
        %1137 = vmax.xlane.f32.xlu0 %v1109
        %v1138 = vpop.xlane.xlu0 %1137
        %1139 = vmax.xlane.f32.xlu0 %v1114
        %v1140 = vpop.xlane.xlu0 %1139
        %v1141 = vmax.f32 %v1117, %v1126
        %v1142 = vmax.f32 %v1118, %v1128
        %v1143 = vmax.f32 %v1119, %v1130
        %v1144 = vmax.f32 %v1120, %v1132
        %v1145 = vmax.f32 %v1121, %v1134
        %v1146 = vmax.f32 %v1122, %v1136
        %v1147 = vmax.f32 %v1123, %v1138
        %v1148 = vmax.f32 %v1124, %v1140
        %v1149 = vsub.f32 %v1117, %v1141
        %v1150 = vsub.f32 %v1118, %v1142
        %v1151 = vsub.f32 %v1119, %v1143
        %v1152 = vsub.f32 %v1120, %v1144
        %v1153 = vsub.f32 %v1121, %v1145
        %v1154 = vsub.f32 %v1122, %v1146
        %v1155 = vsub.f32 %v1123, %v1147
        %v1156 = vsub.f32 %v1124, %v1148
        %v1157 = vmul.f32 %v1149, 1.442695
        %v1158 = vpow.pop %v1157
        %v1159 = vmul.f32 %v1150, 1.442695
        %v1160 = vpow.pop %v1159
        %v1161 = vmul.f32 %v1151, 1.442695
        %v1162 = vpow.pop %v1161
        %v1163 = vmul.f32 %v1152, 1.442695
        %v1164 = vpow.pop %v1163
        %v1165 = vmul.f32 %v1153, 1.442695
        %v1166 = vpow.pop %v1165
        %v1167 = vmul.f32 %v1154, 1.442695
        %v1168 = vpow.pop %v1167
        %v1169 = vmul.f32 %v1155, 1.442695
        %v1170 = vpow.pop %v1169
        %v1171 = vmul.f32 %v1156, 1.442695
        %v1172 = vpow.pop %v1171
        %1174 = vset.pattern.permute.xlu0 0
        %1175 = vperm.xlu0 %1174, %v1141
        %v1176 = vpop.permute.xlu0 %1175
        %1179 = vset.pattern.permute.xlu0 0
        %1180 = vperm.xlu0 %1179, %v1142
        %v1181 = vpop.permute.xlu0 %1180
        %1184 = vset.pattern.permute.xlu0 0
        %1185 = vperm.xlu0 %1184, %v1143
        %v1186 = vpop.permute.xlu0 %1185
        %1189 = vset.pattern.permute.xlu0 0
        %1190 = vperm.xlu0 %1189, %v1144
        %v1191 = vpop.permute.xlu0 %1190
        %1194 = vset.pattern.permute.xlu0 0
        %1195 = vperm.xlu0 %1194, %v1145
        %v1196 = vpop.permute.xlu0 %1195
        %1199 = vset.pattern.permute.xlu0 0
        %1200 = vperm.xlu0 %1199, %v1146
        %v1201 = vpop.permute.xlu0 %1200
        %1204 = vset.pattern.permute.xlu0 0
        %1205 = vperm.xlu0 %1204, %v1147
        %v1206 = vpop.permute.xlu0 %1205
        %1209 = vset.pattern.permute.xlu0 0
        %1210 = vperm.xlu0 %1209, %v1148
        %v1211 = vpop.permute.xlu0 %1210
        %v1213 = vsub.f32 %v1079, %v1176
        %v1214 = vsub.f32 %v1084, %v1181
        %v1215 = vsub.f32 %v1089, %v1186
        %v1216 = vsub.f32 %v1094, %v1191
        %v1217 = vsub.f32 %v1099, %v1196
        %v1218 = vsub.f32 %v1104, %v1201
        %v1219 = vsub.f32 %v1109, %v1206
        %v1220 = vsub.f32 %v1114, %v1211
        %v1221 = vmul.f32 %v1213, 1.442695
        %v1222 = vpow.pop %v1221
        %v1223 = vmul.f32 %v1214, 1.442695
        %v1224 = vpow.pop %v1223
        %v1225 = vmul.f32 %v1215, 1.442695
        %v1226 = vpow.pop %v1225
        %v1227 = vmul.f32 %v1216, 1.442695
        %v1228 = vpow.pop %v1227
        %v1229 = vmul.f32 %v1217, 1.442695
        %v1230 = vpow.pop %v1229
        %v1231 = vmul.f32 %v1218, 1.442695
        %v1232 = vpow.pop %v1231
        %v1233 = vmul.f32 %v1219, 1.442695
        %v1234 = vpow.pop %v1233
        %v1235 = vmul.f32 %v1220, 1.442695
        %v1236 = vpow.pop %v1235
        %v1237 = vld [vmem:[#allocation4] sm:$0xff]
        %v1238 = vld [vmem:[#allocation4 + $0x8] sm:$0xff]
        %v1239 = vld [vmem:[#allocation4 + $0x10] sm:$0xff]
        %v1240 = vld [vmem:[#allocation4 + $0x18] sm:$0xff]
        %v1241 = vld [vmem:[#allocation4 + $0x20] sm:$0xff]
        %v1242 = vld [vmem:[#allocation4 + $0x28] sm:$0xff]
        %v1243 = vld [vmem:[#allocation4 + $0x30] sm:$0xff]
        %v1244 = vld [vmem:[#allocation4 + $0x38] sm:$0xff]
        %v1245 = vmul.f32 %v1158, %v1237
        %v1246 = vmul.f32 %v1160, %v1238
        %v1247 = vmul.f32 %v1162, %v1239
        %v1248 = vmul.f32 %v1164, %v1240
        %v1249 = vmul.f32 %v1166, %v1241
        %v1250 = vmul.f32 %v1168, %v1242
        %v1251 = vmul.f32 %v1170, %v1243
        %v1252 = vmul.f32 %v1172, %v1244
        %1253 = vadd.xlane.f32.xlu0 %v1222
        %v1254 = vpop.xlane.xlu0 %1253
        %1255 = vadd.xlane.f32.xlu0 %v1224
        %v1256 = vpop.xlane.xlu0 %1255
        %1257 = vadd.xlane.f32.xlu0 %v1226
        %v1258 = vpop.xlane.xlu0 %1257
        %1259 = vadd.xlane.f32.xlu0 %v1228
        %v1260 = vpop.xlane.xlu0 %1259
        %1261 = vadd.xlane.f32.xlu0 %v1230
        %v1262 = vpop.xlane.xlu0 %1261
        %1263 = vadd.xlane.f32.xlu0 %v1232
        %v1264 = vpop.xlane.xlu0 %1263
        %1265 = vadd.xlane.f32.xlu0 %v1234
        %v1266 = vpop.xlane.xlu0 %1265
        %1267 = vadd.xlane.f32.xlu0 %v1236
        %v1268 = vpop.xlane.xlu0 %1267
        %v1269 = vadd.f32 %v1245, %v1254
        %v1270 = vadd.f32 %v1246, %v1256
        %v1271 = vadd.f32 %v1247, %v1258
        %v1272 = vadd.f32 %v1248, %v1260
        %v1273 = vadd.f32 %v1249, %v1262
        %v1274 = vadd.f32 %v1250, %v1264
        %v1275 = vadd.f32 %v1251, %v1266
        %v1276 = vadd.f32 %v1252, %v1268
        %vm1277 = vcmask 7168
        %1278 = vst.msk [vmem:[#allocation4] sm:$0xff] %vm1277, %v1269
        %1279 = vst.msk [vmem:[#allocation4 + $0x8] sm:$0xff] %vm1277, %v1270
        %1280 = vst.msk [vmem:[#allocation4 + $0x10] sm:$0xff] %vm1277, %v1271
        %1281 = vst.msk [vmem:[#allocation4 + $0x18] sm:$0xff] %vm1277, %v1272
        %1282 = vst.msk [vmem:[#allocation4 + $0x20] sm:$0xff] %vm1277, %v1273
        %1283 = vst.msk [vmem:[#allocation4 + $0x28] sm:$0xff] %vm1277, %v1274
        %1284 = vst.msk [vmem:[#allocation4 + $0x30] sm:$0xff] %vm1277, %v1275
        %1285 = vst.msk [vmem:[#allocation4 + $0x38] sm:$0xff] %vm1277, %v1276
        %v1286 = vld [vmem:[#allocation2] sm:$0xff]
        %v1287 = vld [vmem:[#allocation2 + $0x8] sm:$0xff]
        %v1288 = vld [vmem:[#allocation2 + $0x10] sm:$0xff]
        %v1289 = vld [vmem:[#allocation2 + $0x18] sm:$0xff]
        %v1290 = vld [vmem:[#allocation2 + $0x20] sm:$0xff]
        %v1291 = vld [vmem:[#allocation2 + $0x28] sm:$0xff]
        %v1292 = vld [vmem:[#allocation2 + $0x30] sm:$0xff]
        %v1293 = vld [vmem:[#allocation2 + $0x38] sm:$0xff]
        %1295 = vset.pattern.permute.xlu0 0
        %1296 = vperm.xlu0 %1295, %v1158
        %v1297 = vpop.permute.xlu0 %1296
        %1300 = vset.pattern.permute.xlu0 0
        %1301 = vperm.xlu0 %1300, %v1160
        %v1302 = vpop.permute.xlu0 %1301
        %1305 = vset.pattern.permute.xlu0 0
        %1306 = vperm.xlu0 %1305, %v1162
        %v1307 = vpop.permute.xlu0 %1306
        %1310 = vset.pattern.permute.xlu0 0
        %1311 = vperm.xlu0 %1310, %v1164
        %v1312 = vpop.permute.xlu0 %1311
        %1315 = vset.pattern.permute.xlu0 0
        %1316 = vperm.xlu0 %1315, %v1166
        %v1317 = vpop.permute.xlu0 %1316
        %1320 = vset.pattern.permute.xlu0 0
        %1321 = vperm.xlu0 %1320, %v1168
        %v1322 = vpop.permute.xlu0 %1321
        %1325 = vset.pattern.permute.xlu0 0
        %1326 = vperm.xlu0 %1325, %v1170
        %v1327 = vpop.permute.xlu0 %1326
        %1330 = vset.pattern.permute.xlu0 0
        %1331 = vperm.xlu0 %1330, %v1172
        %v1332 = vpop.permute.xlu0 %1331
        %v1334 = vmul.f32 %v1297, %v1286
        %v1335 = vmul.f32 %v1302, %v1287
        %v1336 = vmul.f32 %v1307, %v1288
        %v1337 = vmul.f32 %v1312, %v1289
        %v1338 = vmul.f32 %v1317, %v1290
        %v1339 = vmul.f32 %v1322, %v1291
        %v1340 = vmul.f32 %v1327, %v1292
        %v1341 = vmul.f32 %v1332, %v1293
        %1342 = vmatprep.subr.mxu0 0.0
        %1343 = vmatpush1.msra.mxu0 %v861
        %1344 = vmatprep.subr.mxu0 0.0
        %1345 = vmatpush1.msra.mxu0 %v866
        %1346 = vmatprep.subr.mxu0 0.0
        %1347 = vmatpush1.msra.mxu0 %v871
        %1348 = vmatprep.subr.mxu0 0.0
        %1349 = vmatpush1.msra.mxu0 %v876
        %1350 = vmatprep.subr.mxu0 0.0
        %1351 = vmatpush1.msra.mxu0 %v881
        %1352 = vmatprep.subr.mxu0 0.0
        %1353 = vmatpush1.msra.mxu0 %v886
        %1354 = vmatprep.subr.mxu0 0.0
        %1355 = vmatpush1.msra.mxu0 %v891
        %1356 = vmatprep.subr.mxu0 0.0
        %1357 = vmatpush1.msra.mxu0 %v896
        %1358 = vmatprep.subr.mxu0 0.0
        %1359 = vmatpush1.msra.mxu0 %v901
        %1360 = vmatprep.subr.mxu0 0.0
        %1361 = vmatpush1.msra.mxu0 %v906
        %1362 = vmatprep.subr.mxu0 0.0
        %1363 = vmatpush1.msra.mxu0 %v911
        %1364 = vmatprep.subr.mxu0 0.0
        %1365 = vmatpush1.msra.mxu0 %v916
        %1366 = vmatprep.subr.mxu0 0.0
        %1367 = vmatpush1.msra.mxu0 %v921
        %1368 = vmatprep.subr.mxu0 0.0
        %1369 = vmatpush1.msra.mxu0 %v926
        %1370 = vmatprep.subr.mxu0 0.0
        %1371 = vmatpush1.msra.mxu0 %v931
        %1372 = vmatprep.subr.mxu0 0.0
        %1373 = vmatpush1.msra.mxu0 %v936
        %1374 = vmatprep.subr.mxu0 0.0
        %1375 = vmatpush1.msra.mxu0 0.0
        %1376 = vmatprep.subr.mxu0 0.0
        %1377 = vmatpush1.msra.mxu0 0.0
        %1378 = vmatprep.subr.mxu0 0.0
        %1379 = vmatpush1.msra.mxu0 0.0
        %1380 = vmatprep.subr.mxu0 0.0
        %1381 = vmatpush1.msra.mxu0 0.0
        %1382 = vmatprep.subr.mxu0 0.0
        %1383 = vmatpush1.msra.mxu0 0.0
        %1384 = vmatprep.subr.mxu0 0.0
        %1385 = vmatpush1.msra.mxu0 0.0
        %1386 = vmatprep.subr.mxu0 0.0
        %1387 = vmatpush1.msra.mxu0 0.0
        %1388 = vmatprep.subr.mxu0 0.0
        %1389 = vmatpush1.msra.mxu0 0.0
        %1390 = vmatprep.subr.mxu0 0.0
        %1391 = vmatpush1.msra.mxu0 0.0
        %1392 = vmatprep.subr.mxu0 0.0
        %1393 = vmatpush1.msra.mxu0 0.0
        %1394 = vmatprep.subr.mxu0 0.0
        %1395 = vmatpush1.msra.mxu0 0.0
        %1396 = vmatprep.subr.mxu0 0.0
        %1397 = vmatpush1.msra.mxu0 0.0
        %1398 = vmatprep.subr.mxu0 0.0
        %1399 = vmatpush1.msra.mxu0 0.0
        %1400 = vmatprep.subr.mxu0 0.0
        %1401 = vmatpush1.msra.mxu0 0.0
        %1402 = vmatprep.subr.mxu0 0.0
        %1403 = vmatpush1.msra.mxu0 0.0
        %1404 = vmatprep.subr.mxu0 0.0
        %1405 = vmatpush1.msra.mxu0 0.0
        %1406 = vmatprep.mubr.f32.mxu0 0.0
        %1407 = vmatmul.mubr.f32.gmra.mrb[0].mxu0 %v1222
        %v1408 = vpop.f32.mrb[0].mxu0
        %v1409 = vadd.f32 0.0, %v1408
        %v1410 = vpop.f32.mrb[0].mxu0
        %1411 = vmatprep.mubr.f32.mxu0 0.0
        %1412 = vmatmul.mubr.f32.gmra.mrb[0].mxu0 %v1224
        %v1413 = vpop.f32.mrb[0].mxu0
        %v1414 = vadd.f32 0.0, %v1413
        %v1415 = vpop.f32.mrb[0].mxu0
        %1416 = vmatprep.mubr.f32.mxu0 0.0
        %1417 = vmatmul.mubr.f32.gmra.mrb[0].mxu0 %v1226
        %v1418 = vpop.f32.mrb[0].mxu0
        %v1419 = vadd.f32 0.0, %v1418
        %v1420 = vpop.f32.mrb[0].mxu0
        %1421 = vmatprep.mubr.f32.mxu0 0.0
        %1422 = vmatmul.mubr.f32.gmra.mrb[0].mxu0 %v1228
        %v1423 = vpop.f32.mrb[0].mxu0
        %v1424 = vadd.f32 0.0, %v1423
        %v1425 = vpop.f32.mrb[0].mxu0
        %1426 = vmatprep.mubr.f32.mxu0 0.0
        %1427 = vmatmul.mubr.f32.gmra.mrb[0].mxu0 %v1230
        %v1428 = vpop.f32.mrb[0].mxu0
        %v1429 = vadd.f32 0.0, %v1428
        %v1430 = vpop.f32.mrb[0].mxu0
        %1431 = vmatprep.mubr.f32.mxu0 0.0
        %1432 = vmatmul.mubr.f32.gmra.mrb[0].mxu0 %v1232
        %v1433 = vpop.f32.mrb[0].mxu0
        %v1434 = vadd.f32 0.0, %v1433
        %v1435 = vpop.f32.mrb[0].mxu0
        %1436 = vmatprep.mubr.f32.mxu0 0.0
        %1437 = vmatmul.mubr.f32.gmra.mrb[0].mxu0 %v1234
        %v1438 = vpop.f32.mrb[0].mxu0
        %v1439 = vadd.f32 0.0, %v1438
        %v1440 = vpop.f32.mrb[0].mxu0
        %1441 = vmatprep.mubr.f32.mxu0 0.0
        %1442 = vmatmul.mubr.f32.gmra.mrb[0].mxu0 %v1236
        %v1443 = vpop.f32.mrb[0].mxu0
        %v1444 = vadd.f32 0.0, %v1443
        %v1445 = vpop.f32.mrb[0].mxu0
        %1446 = vdwg.mxu0
        %v1447 = vadd.f32 %v1334, %v1409
        %v1448 = vadd.f32 %v1335, %v1414
        %v1449 = vadd.f32 %v1336, %v1419
        %v1450 = vadd.f32 %v1337, %v1424
        %v1451 = vadd.f32 %v1338, %v1429
        %v1452 = vadd.f32 %v1339, %v1434
        %v1453 = vadd.f32 %v1340, %v1439
        %v1454 = vadd.f32 %v1341, %v1444
        %1455 = vst.msk [vmem:[#allocation2] sm:$0xff] %vm939, %v1447
        %1456 = vst.msk [vmem:[#allocation2 + $0x8] sm:$0xff] %vm939, %v1448
        %1457 = vst.msk [vmem:[#allocation2 + $0x10] sm:$0xff] %vm939, %v1449
        %1458 = vst.msk [vmem:[#allocation2 + $0x18] sm:$0xff] %vm939, %v1450
        %1459 = vst.msk [vmem:[#allocation2 + $0x20] sm:$0xff] %vm939, %v1451
        %1460 = vst.msk [vmem:[#allocation2 + $0x28] sm:$0xff] %vm939, %v1452
        %1461 = vst.msk [vmem:[#allocation2 + $0x30] sm:$0xff] %vm939, %v1453
        %1462 = vst.msk [vmem:[#allocation2 + $0x38] sm:$0xff] %vm939, %v1454
        %1463 = vst.msk [vmem:[#allocation3] sm:$0xff] %vm1277, %v1141
        %1464 = vst.msk [vmem:[#allocation3 + $0x8] sm:$0xff] %vm1277, %v1142
        %1465 = vst.msk [vmem:[#allocation3 + $0x10] sm:$0xff] %vm1277, %v1143
        %1466 = vst.msk [vmem:[#allocation3 + $0x18] sm:$0xff] %vm1277, %v1144
        %1467 = vst.msk [vmem:[#allocation3 + $0x20] sm:$0xff] %vm1277, %v1145
        %1468 = vst.msk [vmem:[#allocation3 + $0x28] sm:$0xff] %vm1277, %v1146
        %1469 = vst.msk [vmem:[#allocation3 + $0x30] sm:$0xff] %vm1277, %v1147
        %1470 = vst.msk [vmem:[#allocation3 + $0x38] sm:$0xff] %vm1277, %v1148
        %1471 = vrot.lane.b32.xlu0 %v579, 96
        %v1472 = vpop.permute.xlu0 %1471
        %1473 = vrot.lane.b32.xlu0 %v580, 96
        %v1474 = vpop.permute.xlu0 %1473
        %1475 = vrot.lane.b32.xlu0 %v581, 96
        %v1476 = vpop.permute.xlu0 %1475
        %1477 = vrot.lane.b32.xlu0 %v582, 96
        %v1478 = vpop.permute.xlu0 %1477
        %1479 = vrot.lane.b32.xlu0 %v583, 96
        %v1480 = vpop.permute.xlu0 %1479
        %1481 = vrot.lane.b32.xlu0 %v584, 96
        %v1482 = vpop.permute.xlu0 %1481
        %1483 = vrot.lane.b32.xlu0 %v585, 96
        %v1484 = vpop.permute.xlu0 %1483
        %1485 = vrot.lane.b32.xlu0 %v586, 96
        %v1486 = vpop.permute.xlu0 %1485
        %1487 = vrot.lane.b32.xlu0 %v693, 96
        %v1488 = vpop.permute.xlu0 %1487
        %1489 = vrot.lane.b32.xlu0 %v698, 96
        %v1490 = vpop.permute.xlu0 %1489
        %1491 = vrot.lane.b32.xlu0 %v703, 96
        %v1492 = vpop.permute.xlu0 %1491
        %1493 = vrot.lane.b32.xlu0 %v708, 96
        %v1494 = vpop.permute.xlu0 %1493
        %1495 = vrot.lane.b32.xlu0 %v713, 96
        %v1496 = vpop.permute.xlu0 %1495
        %1497 = vrot.lane.b32.xlu0 %v718, 96
        %v1498 = vpop.permute.xlu0 %1497
        %1499 = vrot.lane.b32.xlu0 %v723, 96
        %v1500 = vpop.permute.xlu0 %1499
        %1501 = vrot.lane.b32.xlu0 %v728, 96
        %v1502 = vpop.permute.xlu0 %1501
        %1503 = vrot.lane.b32.xlu0 %v733, 96
        %v1504 = vpop.permute.xlu0 %1503
        %1505 = vrot.lane.b32.xlu0 %v738, 96
        %v1506 = vpop.permute.xlu0 %1505
        %1507 = vrot.lane.b32.xlu0 %v743, 96
        %v1508 = vpop.permute.xlu0 %1507
        %1509 = vrot.lane.b32.xlu0 %v748, 96
        %v1510 = vpop.permute.xlu0 %1509
        %1511 = vrot.lane.b32.xlu0 %v753, 96
        %v1512 = vpop.permute.xlu0 %1511
        %1513 = vrot.lane.b32.xlu0 %v758, 96
        %v1514 = vpop.permute.xlu0 %1513
        %1515 = vrot.lane.b32.xlu0 %v763, 96
        %v1516 = vpop.permute.xlu0 %1515
        %1517 = vrot.lane.b32.xlu0 %v768, 96
        %v1518 = vpop.permute.xlu0 %1517
        %v1519 = vsel %vm939, %v1472, 0
        %v1521 = vsel %vm939, %v1474, 0
        %v1523 = vsel %vm939, %v1476, 0
        %v1525 = vsel %vm939, %v1478, 0
        %v1527 = vsel %vm939, %v1480, 0
        %v1529 = vsel %vm939, %v1482, 0
        %v1531 = vsel %vm939, %v1484, 0
        %v1533 = vsel %vm939, %v1486, 0
        %v1535 = vsel %vm939, %v1488, 0
        %v1537 = vsel %vm939, %v1490, 0
        %v1539 = vsel %vm939, %v1492, 0
        %v1541 = vsel %vm939, %v1494, 0
        %v1543 = vsel %vm939, %v1496, 0
        %v1545 = vsel %vm939, %v1498, 0
        %v1547 = vsel %vm939, %v1500, 0
        %v1549 = vsel %vm939, %v1502, 0
        %v1551 = vsel %vm939, %v1504, 0
        %v1553 = vsel %vm939, %v1506, 0
        %v1555 = vsel %vm939, %v1508, 0
        %v1557 = vsel %vm939, %v1510, 0
        %v1559 = vsel %vm939, %v1512, 0
        %v1561 = vsel %vm939, %v1514, 0
        %v1563 = vsel %vm939, %v1516, 0
        %v1565 = vsel %vm939, %v1518, 0
        %1567 = vmatprep.subr.mxu0 0.0
        %1568 = vmatpush1.xpose.msra.mxu0 %v1535
        %1569 = vmatprep.subr.mxu0 0.0
        %1570 = vmatpush1.xpose.msra.mxu0 %v1537
        %1571 = vmatprep.subr.mxu0 0.0
        %1572 = vmatpush1.xpose.msra.mxu0 %v1539
        %1573 = vmatprep.subr.mxu0 0.0
        %1574 = vmatpush1.xpose.msra.mxu0 %v1541
        %1575 = vmatprep.subr.mxu0 0.0
        %1576 = vmatpush1.xpose.msra.mxu0 %v1543
        %1577 = vmatprep.subr.mxu0 0.0
        %1578 = vmatpush1.xpose.msra.mxu0 %v1545
        %1579 = vmatprep.subr.mxu0 0.0
        %1580 = vmatpush1.xpose.msra.mxu0 %v1547
        %1581 = vmatprep.subr.mxu0 0.0
        %1582 = vmatpush1.xpose.msra.mxu0 %v1549
        %1583 = vmatprep.subr.mxu0 0.0
        %1584 = vmatpush1.xpose.msra.mxu0 %v1551
        %1585 = vmatprep.subr.mxu0 0.0
        %1586 = vmatpush1.xpose.msra.mxu0 %v1553
        %1587 = vmatprep.subr.mxu0 0.0
        %1588 = vmatpush1.xpose.msra.mxu0 %v1555
        %1589 = vmatprep.subr.mxu0 0.0
        %1590 = vmatpush1.xpose.msra.mxu0 %v1557
        %1591 = vmatprep.subr.mxu0 0.0
        %1592 = vmatpush1.xpose.msra.mxu0 %v1559
        %1593 = vmatprep.subr.mxu0 0.0
        %1594 = vmatpush1.xpose.msra.mxu0 %v1561
        %1595 = vmatprep.subr.mxu0 0.0
        %1596 = vmatpush1.xpose.msra.mxu0 %v1563
        %1597 = vmatprep.subr.mxu0 0.0
        %1598 = vmatpush1.xpose.msra.mxu0 %v1565
        %1599 = vmatprep.subr.mxu0 0.0
        %1600 = vmatpush1.xpose.msra.mxu0 0.0
        %1601 = vmatprep.subr.mxu0 0.0
        %1602 = vmatpush1.xpose.msra.mxu0 0.0
        %1603 = vmatprep.subr.mxu0 0.0
        %1604 = vmatpush1.xpose.msra.mxu0 0.0
        %1605 = vmatprep.subr.mxu0 0.0
        %1606 = vmatpush1.xpose.msra.mxu0 0.0
        %1607 = vmatprep.subr.mxu0 0.0
        %1608 = vmatpush1.xpose.msra.mxu0 0.0
        %1609 = vmatprep.subr.mxu0 0.0
        %1610 = vmatpush1.xpose.msra.mxu0 0.0
        %1611 = vmatprep.subr.mxu0 0.0
        %1612 = vmatpush1.xpose.msra.mxu0 0.0
        %1613 = vmatprep.subr.mxu0 0.0
        %1614 = vmatpush1.xpose.msra.mxu0 0.0
        %1615 = vmatprep.subr.mxu0 0.0
        %1616 = vmatpush1.xpose.msra.mxu0 0.0
        %1617 = vmatprep.subr.mxu0 0.0
        %1618 = vmatpush1.xpose.msra.mxu0 0.0
        %1619 = vmatprep.subr.mxu0 0.0
        %1620 = vmatpush1.xpose.msra.mxu0 0.0
        %1621 = vmatprep.subr.mxu0 0.0
        %1622 = vmatpush1.xpose.msra.mxu0 0.0
        %1623 = vmatprep.subr.mxu0 0.0
        %1624 = vmatpush1.xpose.msra.mxu0 0.0
        %1625 = vmatprep.subr.mxu0 0.0
        %1626 = vmatpush1.xpose.msra.mxu0 0.0
        %1627 = vmatprep.subr.mxu0 0.0
        %1628 = vmatpush1.xpose.msra.mxu0 0.0
        %1629 = vmatprep.subr.mxu0 0.0
        %1630 = vmatpush1.xpose.msra.mxu0 0.0
        %1631 = vmatprep.mubr.f32.mxu0 0.0
        %1632 = vmatmul.mubr.f32.gmra.mrb[0].mxu0 %v1519
        %v1633 = vpop.f32.mrb[0].mxu0
        %v1634 = vadd.f32 0.0, %v1633
        %v1635 = vpop.f32.mrb[0].mxu0
        %1636 = vmatprep.mubr.f32.mxu0 0.0
        %1637 = vmatmul.mubr.f32.gmra.mrb[0].mxu0 %v1521
        %v1638 = vpop.f32.mrb[0].mxu0
        %v1639 = vadd.f32 0.0, %v1638
        %v1640 = vpop.f32.mrb[0].mxu0
        %1641 = vmatprep.mubr.f32.mxu0 0.0
        %1642 = vmatmul.mubr.f32.gmra.mrb[0].mxu0 %v1523
        %v1643 = vpop.f32.mrb[0].mxu0
        %v1644 = vadd.f32 0.0, %v1643
        %v1645 = vpop.f32.mrb[0].mxu0
        %1646 = vmatprep.mubr.f32.mxu0 0.0
        %1647 = vmatmul.mubr.f32.gmra.mrb[0].mxu0 %v1525
        %v1648 = vpop.f32.mrb[0].mxu0
        %v1649 = vadd.f32 0.0, %v1648
        %v1650 = vpop.f32.mrb[0].mxu0
        %1651 = vmatprep.mubr.f32.mxu0 0.0
        %1652 = vmatmul.mubr.f32.gmra.mrb[0].mxu0 %v1527
        %v1653 = vpop.f32.mrb[0].mxu0
        %v1654 = vadd.f32 0.0, %v1653
        %v1655 = vpop.f32.mrb[0].mxu0
        %1656 = vmatprep.mubr.f32.mxu0 0.0
        %1657 = vmatmul.mubr.f32.gmra.mrb[0].mxu0 %v1529
        %v1658 = vpop.f32.mrb[0].mxu0
        %v1659 = vadd.f32 0.0, %v1658
        %v1660 = vpop.f32.mrb[0].mxu0
        %1661 = vmatprep.mubr.f32.mxu0 0.0
        %1662 = vmatmul.mubr.f32.gmra.mrb[0].mxu0 %v1531
        %v1663 = vpop.f32.mrb[0].mxu0
        %v1664 = vadd.f32 0.0, %v1663
        %v1665 = vpop.f32.mrb[0].mxu0
        %1666 = vmatprep.mubr.f32.mxu0 0.0
        %1667 = vmatmul.mubr.f32.gmra.mrb[0].mxu0 %v1533
        %v1668 = vpop.f32.mrb[0].mxu0
        %v1669 = vadd.f32 0.0, %v1668
        %v1670 = vpop.f32.mrb[0].mxu0
        %1671 = vdwg.mxu0
        %s1672 = scalar_lea.vmem [#allocation3], 64
        %v1673 = vld [vmem:[%s1672] sm:$0xff]
        %v1674 = vld [vmem:[%s1672 + $0x8] sm:$0xff]
        %v1675 = vld [vmem:[%s1672 + $0x10] sm:$0xff]
        %v1676 = vld [vmem:[%s1672 + $0x18] sm:$0xff]
        %v1677 = vld [vmem:[%s1672 + $0x20] sm:$0xff]
        %v1678 = vld [vmem:[%s1672 + $0x28] sm:$0xff]
        %v1679 = vld [vmem:[%s1672 + $0x30] sm:$0xff]
        %v1680 = vld [vmem:[%s1672 + $0x38] sm:$0xff]
        %1681 = vmax.xlane.f32.xlu0 %v1634
        %v1682 = vpop.xlane.xlu0 %1681
        %1683 = vmax.xlane.f32.xlu0 %v1639
        %v1684 = vpop.xlane.xlu0 %1683
        %1685 = vmax.xlane.f32.xlu0 %v1644
        %v1686 = vpop.xlane.xlu0 %1685
        %1687 = vmax.xlane.f32.xlu0 %v1649
        %v1688 = vpop.xlane.xlu0 %1687
        %1689 = vmax.xlane.f32.xlu0 %v1654
        %v1690 = vpop.xlane.xlu0 %1689
        %1691 = vmax.xlane.f32.xlu0 %v1659
        %v1692 = vpop.xlane.xlu0 %1691
        %1693 = vmax.xlane.f32.xlu0 %v1664
        %v1694 = vpop.xlane.xlu0 %1693
        %1695 = vmax.xlane.f32.xlu0 %v1669
        %v1696 = vpop.xlane.xlu0 %1695
        %v1697 = vmax.f32 %v1673, %v1682
        %v1698 = vmax.f32 %v1674, %v1684
        %v1699 = vmax.f32 %v1675, %v1686
        %v1700 = vmax.f32 %v1676, %v1688
        %v1701 = vmax.f32 %v1677, %v1690
        %v1702 = vmax.f32 %v1678, %v1692
        %v1703 = vmax.f32 %v1679, %v1694
        %v1704 = vmax.f32 %v1680, %v1696
        %v1705 = vsub.f32 %v1673, %v1697
        %v1706 = vsub.f32 %v1674, %v1698
        %v1707 = vsub.f32 %v1675, %v1699
        %v1708 = vsub.f32 %v1676, %v1700
        %v1709 = vsub.f32 %v1677, %v1701
        %v1710 = vsub.f32 %v1678, %v1702
        %v1711 = vsub.f32 %v1679, %v1703
        %v1712 = vsub.f32 %v1680, %v1704
        %v1713 = vmul.f32 %v1705, 1.442695
        %v1714 = vpow.pop %v1713
        %v1715 = vmul.f32 %v1706, 1.442695
        %v1716 = vpow.pop %v1715
        %v1717 = vmul.f32 %v1707, 1.442695
        %v1718 = vpow.pop %v1717
        %v1719 = vmul.f32 %v1708, 1.442695
        %v1720 = vpow.pop %v1719
        %v1721 = vmul.f32 %v1709, 1.442695
        %v1722 = vpow.pop %v1721
        %v1723 = vmul.f32 %v1710, 1.442695
        %v1724 = vpow.pop %v1723
        %v1725 = vmul.f32 %v1711, 1.442695
        %v1726 = vpow.pop %v1725
        %v1727 = vmul.f32 %v1712, 1.442695
        %v1728 = vpow.pop %v1727
        %1730 = vset.pattern.permute.xlu0 0
        %1731 = vperm.xlu0 %1730, %v1697
        %v1732 = vpop.permute.xlu0 %1731
        %1735 = vset.pattern.permute.xlu0 0
        %1736 = vperm.xlu0 %1735, %v1698
        %v1737 = vpop.permute.xlu0 %1736
        %1740 = vset.pattern.permute.xlu0 0
        %1741 = vperm.xlu0 %1740, %v1699
        %v1742 = vpop.permute.xlu0 %1741
        %1745 = vset.pattern.permute.xlu0 0
        %1746 = vperm.xlu0 %1745, %v1700
        %v1747 = vpop.permute.xlu0 %1746
        %1750 = vset.pattern.permute.xlu0 0
        %1751 = vperm.xlu0 %1750, %v1701
        %v1752 = vpop.permute.xlu0 %1751
        %1755 = vset.pattern.permute.xlu0 0
        %1756 = vperm.xlu0 %1755, %v1702
        %v1757 = vpop.permute.xlu0 %1756
        %1760 = vset.pattern.permute.xlu0 0
        %1761 = vperm.xlu0 %1760, %v1703
        %v1762 = vpop.permute.xlu0 %1761
        %1765 = vset.pattern.permute.xlu0 0
        %1766 = vperm.xlu0 %1765, %v1704
        %v1767 = vpop.permute.xlu0 %1766
        %v1769 = vsub.f32 %v1634, %v1732
        %v1770 = vsub.f32 %v1639, %v1737
        %v1771 = vsub.f32 %v1644, %v1742
        %v1772 = vsub.f32 %v1649, %v1747
        %v1773 = vsub.f32 %v1654, %v1752
        %v1774 = vsub.f32 %v1659, %v1757
        %v1775 = vsub.f32 %v1664, %v1762
        %v1776 = vsub.f32 %v1669, %v1767
        %v1777 = vmul.f32 %v1769, 1.442695
        %v1778 = vpow.pop %v1777
        %v1779 = vmul.f32 %v1770, 1.442695
        %v1780 = vpow.pop %v1779
        %v1781 = vmul.f32 %v1771, 1.442695
        %v1782 = vpow.pop %v1781
        %v1783 = vmul.f32 %v1772, 1.442695
        %v1784 = vpow.pop %v1783
        %v1785 = vmul.f32 %v1773, 1.442695
        %v1786 = vpow.pop %v1785
        %v1787 = vmul.f32 %v1774, 1.442695
        %v1788 = vpow.pop %v1787
        %v1789 = vmul.f32 %v1775, 1.442695
        %v1790 = vpow.pop %v1789
        %v1791 = vmul.f32 %v1776, 1.442695
        %v1792 = vpow.pop %v1791
        %s1793 = scalar_lea.vmem [#allocation4], 64
        %v1794 = vld [vmem:[%s1793] sm:$0xff]
        %v1795 = vld [vmem:[%s1793 + $0x8] sm:$0xff]
        %v1796 = vld [vmem:[%s1793 + $0x10] sm:$0xff]
        %v1797 = vld [vmem:[%s1793 + $0x18] sm:$0xff]
        %v1798 = vld [vmem:[%s1793 + $0x20] sm:$0xff]
        %v1799 = vld [vmem:[%s1793 + $0x28] sm:$0xff]
        %v1800 = vld [vmem:[%s1793 + $0x30] sm:$0xff]
        %v1801 = vld [vmem:[%s1793 + $0x38] sm:$0xff]
        %v1802 = vmul.f32 %v1714, %v1794
        %v1803 = vmul.f32 %v1716, %v1795
        %v1804 = vmul.f32 %v1718, %v1796
        %v1805 = vmul.f32 %v1720, %v1797
        %v1806 = vmul.f32 %v1722, %v1798
        %v1807 = vmul.f32 %v1724, %v1799
        %v1808 = vmul.f32 %v1726, %v1800
        %v1809 = vmul.f32 %v1728, %v1801
        %1810 = vadd.xlane.f32.xlu0 %v1778
        %v1811 = vpop.xlane.xlu0 %1810
        %1812 = vadd.xlane.f32.xlu0 %v1780
        %v1813 = vpop.xlane.xlu0 %1812
        %1814 = vadd.xlane.f32.xlu0 %v1782
        %v1815 = vpop.xlane.xlu0 %1814
        %1816 = vadd.xlane.f32.xlu0 %v1784
        %v1817 = vpop.xlane.xlu0 %1816
        %1818 = vadd.xlane.f32.xlu0 %v1786
        %v1819 = vpop.xlane.xlu0 %1818
        %1820 = vadd.xlane.f32.xlu0 %v1788
        %v1821 = vpop.xlane.xlu0 %1820
        %1822 = vadd.xlane.f32.xlu0 %v1790
        %v1823 = vpop.xlane.xlu0 %1822
        %1824 = vadd.xlane.f32.xlu0 %v1792
        %v1825 = vpop.xlane.xlu0 %1824
        %v1826 = vadd.f32 %v1802, %v1811
        %v1827 = vadd.f32 %v1803, %v1813
        %v1828 = vadd.f32 %v1804, %v1815
        %v1829 = vadd.f32 %v1805, %v1817
        %v1830 = vadd.f32 %v1806, %v1819
        %v1831 = vadd.f32 %v1807, %v1821
        %v1832 = vadd.f32 %v1808, %v1823
        %v1833 = vadd.f32 %v1809, %v1825
        %1834 = vst.msk [vmem:[%s1793] sm:$0xff] %vm1277, %v1826
        %1835 = vst.msk [vmem:[%s1793 + $0x8] sm:$0xff] %vm1277, %v1827
        %1836 = vst.msk [vmem:[%s1793 + $0x10] sm:$0xff] %vm1277, %v1828
        %1837 = vst.msk [vmem:[%s1793 + $0x18] sm:$0xff] %vm1277, %v1829
        %1838 = vst.msk [vmem:[%s1793 + $0x20] sm:$0xff] %vm1277, %v1830
        %1839 = vst.msk [vmem:[%s1793 + $0x28] sm:$0xff] %vm1277, %v1831
        %1840 = vst.msk [vmem:[%s1793 + $0x30] sm:$0xff] %vm1277, %v1832
        %1841 = vst.msk [vmem:[%s1793 + $0x38] sm:$0xff] %vm1277, %v1833
        %s1842 = scalar_lea.vmem [#allocation2], 64
        %v1843 = vld [vmem:[%s1842] sm:$0xff]
        %v1844 = vld [vmem:[%s1842 + $0x8] sm:$0xff]
        %v1845 = vld [vmem:[%s1842 + $0x10] sm:$0xff]
        %v1846 = vld [vmem:[%s1842 + $0x18] sm:$0xff]
        %v1847 = vld [vmem:[%s1842 + $0x20] sm:$0xff]
        %v1848 = vld [vmem:[%s1842 + $0x28] sm:$0xff]
        %v1849 = vld [vmem:[%s1842 + $0x30] sm:$0xff]
        %v1850 = vld [vmem:[%s1842 + $0x38] sm:$0xff]
        %1852 = vset.pattern.permute.xlu0 0
        %1853 = vperm.xlu0 %1852, %v1714
        %v1854 = vpop.permute.xlu0 %1853
        %1857 = vset.pattern.permute.xlu0 0
        %1858 = vperm.xlu0 %1857, %v1716
        %v1859 = vpop.permute.xlu0 %1858
        %1862 = vset.pattern.permute.xlu0 0
        %1863 = vperm.xlu0 %1862, %v1718
        %v1864 = vpop.permute.xlu0 %1863
        %1867 = vset.pattern.permute.xlu0 0
        %1868 = vperm.xlu0 %1867, %v1720
        %v1869 = vpop.permute.xlu0 %1868
        %1872 = vset.pattern.permute.xlu0 0
        %1873 = vperm.xlu0 %1872, %v1722
        %v1874 = vpop.permute.xlu0 %1873
        %1877 = vset.pattern.permute.xlu0 0
        %1878 = vperm.xlu0 %1877, %v1724
        %v1879 = vpop.permute.xlu0 %1878
        %1882 = vset.pattern.permute.xlu0 0
        %1883 = vperm.xlu0 %1882, %v1726
        %v1884 = vpop.permute.xlu0 %1883
        %1887 = vset.pattern.permute.xlu0 0
        %1888 = vperm.xlu0 %1887, %v1728
        %v1889 = vpop.permute.xlu0 %1888
        %v1891 = vmul.f32 %v1854, %v1843
        %v1892 = vmul.f32 %v1859, %v1844
        %v1893 = vmul.f32 %v1864, %v1845
        %v1894 = vmul.f32 %v1869, %v1846
        %v1895 = vmul.f32 %v1874, %v1847
        %v1896 = vmul.f32 %v1879, %v1848
        %v1897 = vmul.f32 %v1884, %v1849
        %v1898 = vmul.f32 %v1889, %v1850
        %1915 = vrot.lane.b32.xlu0 %v861, 96
        %v1916 = vpop.permute.xlu0 %1915
        %1917 = vrot.lane.b32.xlu0 %v866, 96
        %v1918 = vpop.permute.xlu0 %1917
        %1919 = vrot.lane.b32.xlu0 %v871, 96
        %v1920 = vpop.permute.xlu0 %1919
        %1921 = vrot.lane.b32.xlu0 %v876, 96
        %v1922 = vpop.permute.xlu0 %1921
        %1923 = vrot.lane.b32.xlu0 %v881, 96
        %v1924 = vpop.permute.xlu0 %1923
        %1925 = vrot.lane.b32.xlu0 %v886, 96
        %v1926 = vpop.permute.xlu0 %1925
        %1927 = vrot.lane.b32.xlu0 %v891, 96
        %v1928 = vpop.permute.xlu0 %1927
        %1929 = vrot.lane.b32.xlu0 %v896, 96
        %v1930 = vpop.permute.xlu0 %1929
        %1931 = vrot.lane.b32.xlu0 %v901, 96
        %v1932 = vpop.permute.xlu0 %1931
        %1933 = vrot.lane.b32.xlu0 %v906, 96
        %v1934 = vpop.permute.xlu0 %1933
        %1935 = vrot.lane.b32.xlu0 %v911, 96
        %v1936 = vpop.permute.xlu0 %1935
        %1937 = vrot.lane.b32.xlu0 %v916, 96
        %v1938 = vpop.permute.xlu0 %1937
        %1939 = vrot.lane.b32.xlu0 %v921, 96
        %v1940 = vpop.permute.xlu0 %1939
        %1941 = vrot.lane.b32.xlu0 %v926, 96
        %v1942 = vpop.permute.xlu0 %1941
        %1943 = vrot.lane.b32.xlu0 %v931, 96
        %v1944 = vpop.permute.xlu0 %1943
        %1945 = vrot.lane.b32.xlu0 %v936, 96
        %v1946 = vpop.permute.xlu0 %1945
        %1963 = vmatprep.subr.mxu0 0.0
        %1964 = vmatpush1.msra.mxu0 %v1916
        %1965 = vmatprep.subr.mxu0 0.0
        %1966 = vmatpush1.msra.mxu0 %v1918
        %1967 = vmatprep.subr.mxu0 0.0
        %1968 = vmatpush1.msra.mxu0 %v1920
        %1969 = vmatprep.subr.mxu0 0.0
        %1970 = vmatpush1.msra.mxu0 %v1922
        %1971 = vmatprep.subr.mxu0 0.0
        %1972 = vmatpush1.msra.mxu0 %v1924
        %1973 = vmatprep.subr.mxu0 0.0
        %1974 = vmatpush1.msra.mxu0 %v1926
        %1975 = vmatprep.subr.mxu0 0.0
        %1976 = vmatpush1.msra.mxu0 %v1928
        %1977 = vmatprep.subr.mxu0 0.0
        %1978 = vmatpush1.msra.mxu0 %v1930
        %1979 = vmatprep.subr.mxu0 0.0
        %1980 = vmatpush1.msra.mxu0 %v1932
        %1981 = vmatprep.subr.mxu0 0.0
        %1982 = vmatpush1.msra.mxu0 %v1934
        %1983 = vmatprep.subr.mxu0 0.0
        %1984 = vmatpush1.msra.mxu0 %v1936
        %1985 = vmatprep.subr.mxu0 0.0
        %1986 = vmatpush1.msra.mxu0 %v1938
        %1987 = vmatprep.subr.mxu0 0.0
        %1988 = vmatpush1.msra.mxu0 %v1940
        %1989 = vmatprep.subr.mxu0 0.0
        %1990 = vmatpush1.msra.mxu0 %v1942
        %1991 = vmatprep.subr.mxu0 0.0
        %1992 = vmatpush1.msra.mxu0 %v1944
        %1993 = vmatprep.subr.mxu0 0.0
        %1994 = vmatpush1.msra.mxu0 %v1946
        %1995 = vmatprep.subr.mxu0 0.0
        %1996 = vmatpush1.msra.mxu0 0.0
        %1997 = vmatprep.subr.mxu0 0.0
        %1998 = vmatpush1.msra.mxu0 0.0
        %1999 = vmatprep.subr.mxu0 0.0
        %2000 = vmatpush1.msra.mxu0 0.0
        %2001 = vmatprep.subr.mxu0 0.0
        %2002 = vmatpush1.msra.mxu0 0.0
        %2003 = vmatprep.subr.mxu0 0.0
        %2004 = vmatpush1.msra.mxu0 0.0
        %2005 = vmatprep.subr.mxu0 0.0
        %2006 = vmatpush1.msra.mxu0 0.0
        %2007 = vmatprep.subr.mxu0 0.0
        %2008 = vmatpush1.msra.mxu0 0.0
        %2009 = vmatprep.subr.mxu0 0.0
        %2010 = vmatpush1.msra.mxu0 0.0
        %2011 = vmatprep.subr.mxu0 0.0
        %2012 = vmatpush1.msra.mxu0 0.0
        %2013 = vmatprep.subr.mxu0 0.0
        %2014 = vmatpush1.msra.mxu0 0.0
        %2015 = vmatprep.subr.mxu0 0.0
        %2016 = vmatpush1.msra.mxu0 0.0
        %2017 = vmatprep.subr.mxu0 0.0
        %2018 = vmatpush1.msra.mxu0 0.0
        %2019 = vmatprep.subr.mxu0 0.0
        %2020 = vmatpush1.msra.mxu0 0.0
        %2021 = vmatprep.subr.mxu0 0.0
        %2022 = vmatpush1.msra.mxu0 0.0
        %2023 = vmatprep.subr.mxu0 0.0
        %2024 = vmatpush1.msra.mxu0 0.0
        %2025 = vmatprep.subr.mxu0 0.0
        %2026 = vmatpush1.msra.mxu0 0.0
        %2027 = vmatprep.mubr.f32.mxu0 0.0
        %2028 = vmatmul.mubr.f32.gmra.mrb[0].mxu0 %v1778
        %v2029 = vpop.f32.mrb[0].mxu0
        %v2030 = vadd.f32 0.0, %v2029
        %v2031 = vpop.f32.mrb[0].mxu0
        %2032 = vmatprep.mubr.f32.mxu0 0.0
        %2033 = vmatmul.mubr.f32.gmra.mrb[0].mxu0 %v1780
        %v2034 = vpop.f32.mrb[0].mxu0
        %v2035 = vadd.f32 0.0, %v2034
        %v2036 = vpop.f32.mrb[0].mxu0
        %2037 = vmatprep.mubr.f32.mxu0 0.0
        %2038 = vmatmul.mubr.f32.gmra.mrb[0].mxu0 %v1782
        %v2039 = vpop.f32.mrb[0].mxu0
        %v2040 = vadd.f32 0.0, %v2039
        %v2041 = vpop.f32.mrb[0].mxu0
        %2042 = vmatprep.mubr.f32.mxu0 0.0
        %2043 = vmatmul.mubr.f32.gmra.mrb[0].mxu0 %v1784
        %v2044 = vpop.f32.mrb[0].mxu0
        %v2045 = vadd.f32 0.0, %v2044
        %v2046 = vpop.f32.mrb[0].mxu0
        %2047 = vmatprep.mubr.f32.mxu0 0.0
        %2048 = vmatmul.mubr.f32.gmra.mrb[0].mxu0 %v1786
        %v2049 = vpop.f32.mrb[0].mxu0
        %v2050 = vadd.f32 0.0, %v2049
        %v2051 = vpop.f32.mrb[0].mxu0
        %2052 = vmatprep.mubr.f32.mxu0 0.0
        %2053 = vmatmul.mubr.f32.gmra.mrb[0].mxu0 %v1788
        %v2054 = vpop.f32.mrb[0].mxu0
        %v2055 = vadd.f32 0.0, %v2054
        %v2056 = vpop.f32.mrb[0].mxu0
        %2057 = vmatprep.mubr.f32.mxu0 0.0
        %2058 = vmatmul.mubr.f32.gmra.mrb[0].mxu0 %v1790
        %v2059 = vpop.f32.mrb[0].mxu0
        %v2060 = vadd.f32 0.0, %v2059
        %v2061 = vpop.f32.mrb[0].mxu0
        %2062 = vmatprep.mubr.f32.mxu0 0.0
        %2063 = vmatmul.mubr.f32.gmra.mrb[0].mxu0 %v1792
        %v2064 = vpop.f32.mrb[0].mxu0
        %v2065 = vadd.f32 0.0, %v2064
        %v2066 = vpop.f32.mrb[0].mxu0
        %2067 = vdwg.mxu0
        %v2068 = vadd.f32 %v1891, %v2030
        %v2069 = vadd.f32 %v1892, %v2035
        %v2070 = vadd.f32 %v1893, %v2040
        %v2071 = vadd.f32 %v1894, %v2045
        %v2072 = vadd.f32 %v1895, %v2050
        %v2073 = vadd.f32 %v1896, %v2055
        %v2074 = vadd.f32 %v1897, %v2060
        %v2075 = vadd.f32 %v1898, %v2065
        %2076 = vst.msk [vmem:[%s1842] sm:$0xff] %vm939, %v2068
        %2077 = vst.msk [vmem:[%s1842 + $0x8] sm:$0xff] %vm939, %v2069
        %2078 = vst.msk [vmem:[%s1842 + $0x10] sm:$0xff] %vm939, %v2070
        %2079 = vst.msk [vmem:[%s1842 + $0x18] sm:$0xff] %vm939, %v2071
        %2080 = vst.msk [vmem:[%s1842 + $0x20] sm:$0xff] %vm939, %v2072
        %2081 = vst.msk [vmem:[%s1842 + $0x28] sm:$0xff] %vm939, %v2073
        %2082 = vst.msk [vmem:[%s1842 + $0x30] sm:$0xff] %vm939, %v2074
        %2083 = vst.msk [vmem:[%s1842 + $0x38] sm:$0xff] %vm939, %v2075
        %2084 = vst.msk [vmem:[%s1672] sm:$0xff] %vm1277, %v1697
        %2085 = vst.msk [vmem:[%s1672 + $0x8] sm:$0xff] %vm1277, %v1698
        %2086 = vst.msk [vmem:[%s1672 + $0x10] sm:$0xff] %vm1277, %v1699
        %2087 = vst.msk [vmem:[%s1672 + $0x18] sm:$0xff] %vm1277, %v1700
        %2088 = vst.msk [vmem:[%s1672 + $0x20] sm:$0xff] %vm1277, %v1701
        %2089 = vst.msk [vmem:[%s1672 + $0x28] sm:$0xff] %vm1277, %v1702
        %2090 = vst.msk [vmem:[%s1672 + $0x30] sm:$0xff] %vm1277, %v1703
        %2091 = vst.msk [vmem:[%s1672 + $0x38] sm:$0xff] %vm1277, %v1704
        %2092 = vrot.lane.b32.xlu0 %v579, 64
        %v2093 = vpop.permute.xlu0 %2092
        %2094 = vrot.lane.b32.xlu0 %v580, 64
        %v2095 = vpop.permute.xlu0 %2094
        %2096 = vrot.lane.b32.xlu0 %v581, 64
        %v2097 = vpop.permute.xlu0 %2096
        %2098 = vrot.lane.b32.xlu0 %v582, 64
        %v2099 = vpop.permute.xlu0 %2098
        %2100 = vrot.lane.b32.xlu0 %v583, 64
        %v2101 = vpop.permute.xlu0 %2100
        %2102 = vrot.lane.b32.xlu0 %v584, 64
        %v2103 = vpop.permute.xlu0 %2102
        %2104 = vrot.lane.b32.xlu0 %v585, 64
        %v2105 = vpop.permute.xlu0 %2104
        %2106 = vrot.lane.b32.xlu0 %v586, 64
        %v2107 = vpop.permute.xlu0 %2106
        %2108 = vrot.lane.b32.xlu0 %v693, 64
        %v2109 = vpop.permute.xlu0 %2108
        %2110 = vrot.lane.b32.xlu0 %v698, 64
        %v2111 = vpop.permute.xlu0 %2110
        %2112 = vrot.lane.b32.xlu0 %v703, 64
        %v2113 = vpop.permute.xlu0 %2112
        %2114 = vrot.lane.b32.xlu0 %v708, 64
        %v2115 = vpop.permute.xlu0 %2114
        %2116 = vrot.lane.b32.xlu0 %v713, 64
        %v2117 = vpop.permute.xlu0 %2116
        %2118 = vrot.lane.b32.xlu0 %v718, 64
        %v2119 = vpop.permute.xlu0 %2118
        %2120 = vrot.lane.b32.xlu0 %v723, 64
        %v2121 = vpop.permute.xlu0 %2120
        %2122 = vrot.lane.b32.xlu0 %v728, 64
        %v2123 = vpop.permute.xlu0 %2122
        %2124 = vrot.lane.b32.xlu0 %v733, 64
        %v2125 = vpop.permute.xlu0 %2124
        %2126 = vrot.lane.b32.xlu0 %v738, 64
        %v2127 = vpop.permute.xlu0 %2126
        %2128 = vrot.lane.b32.xlu0 %v743, 64
        %v2129 = vpop.permute.xlu0 %2128
        %2130 = vrot.lane.b32.xlu0 %v748, 64
        %v2131 = vpop.permute.xlu0 %2130
        %2132 = vrot.lane.b32.xlu0 %v753, 64
        %v2133 = vpop.permute.xlu0 %2132
        %2134 = vrot.lane.b32.xlu0 %v758, 64
        %v2135 = vpop.permute.xlu0 %2134
        %2136 = vrot.lane.b32.xlu0 %v763, 64
        %v2137 = vpop.permute.xlu0 %2136
        %2138 = vrot.lane.b32.xlu0 %v768, 64
        %v2139 = vpop.permute.xlu0 %2138
        %v2140 = vsel %vm939, %v2093, 0
        %v2142 = vsel %vm939, %v2095, 0
        %v2144 = vsel %vm939, %v2097, 0
        %v2146 = vsel %vm939, %v2099, 0
        %v2148 = vsel %vm939, %v2101, 0
        %v2150 = vsel %vm939, %v2103, 0
        %v2152 = vsel %vm939, %v2105, 0
        %v2154 = vsel %vm939, %v2107, 0
        %v2156 = vsel %vm939, %v2109, 0
        %v2158 = vsel %vm939, %v2111, 0
        %v2160 = vsel %vm939, %v2113, 0
        %v2162 = vsel %vm939, %v2115, 0
        %v2164 = vsel %vm939, %v2117, 0
        %v2166 = vsel %vm939, %v2119, 0
        %v2168 = vsel %vm939, %v2121, 0
        %v2170 = vsel %vm939, %v2123, 0
        %v2172 = vsel %vm939, %v2125, 0
        %v2174 = vsel %vm939, %v2127, 0
        %v2176 = vsel %vm939, %v2129, 0
        %v2178 = vsel %vm939, %v2131, 0
        %v2180 = vsel %vm939, %v2133, 0
        %v2182 = vsel %vm939, %v2135, 0
        %v2184 = vsel %vm939, %v2137, 0
        %v2186 = vsel %vm939, %v2139, 0
        %2188 = vmatprep.subr.mxu0 0.0
        %2189 = vmatpush1.xpose.msra.mxu0 %v2156
        %2190 = vmatprep.subr.mxu0 0.0
        %2191 = vmatpush1.xpose.msra.mxu0 %v2158
        %2192 = vmatprep.subr.mxu0 0.0
        %2193 = vmatpush1.xpose.msra.mxu0 %v2160
        %2194 = vmatprep.subr.mxu0 0.0
        %2195 = vmatpush1.xpose.msra.mxu0 %v2162
        %2196 = vmatprep.subr.mxu0 0.0
        %2197 = vmatpush1.xpose.msra.mxu0 %v2164
        %2198 = vmatprep.subr.mxu0 0.0
        %2199 = vmatpush1.xpose.msra.mxu0 %v2166
        %2200 = vmatprep.subr.mxu0 0.0
        %2201 = vmatpush1.xpose.msra.mxu0 %v2168
        %2202 = vmatprep.subr.mxu0 0.0
        %2203 = vmatpush1.xpose.msra.mxu0 %v2170
        %2204 = vmatprep.subr.mxu0 0.0
        %2205 = vmatpush1.xpose.msra.mxu0 %v2172
        %2206 = vmatprep.subr.mxu0 0.0
        %2207 = vmatpush1.xpose.msra.mxu0 %v2174
        %2208 = vmatprep.subr.mxu0 0.0
        %2209 = vmatpush1.xpose.msra.mxu0 %v2176
        %2210 = vmatprep.subr.mxu0 0.0
        %2211 = vmatpush1.xpose.msra.mxu0 %v2178
        %2212 = vmatprep.subr.mxu0 0.0
        %2213 = vmatpush1.xpose.msra.mxu0 %v2180
        %2214 = vmatprep.subr.mxu0 0.0
        %2215 = vmatpush1.xpose.msra.mxu0 %v2182
        %2216 = vmatprep.subr.mxu0 0.0
        %2217 = vmatpush1.xpose.msra.mxu0 %v2184
        %2218 = vmatprep.subr.mxu0 0.0
        %2219 = vmatpush1.xpose.msra.mxu0 %v2186
        %2220 = vmatprep.subr.mxu0 0.0
        %2221 = vmatpush1.xpose.msra.mxu0 0.0
        %2222 = vmatprep.subr.mxu0 0.0
        %2223 = vmatpush1.xpose.msra.mxu0 0.0
        %2224 = vmatprep.subr.mxu0 0.0
        %2225 = vmatpush1.xpose.msra.mxu0 0.0
        %2226 = vmatprep.subr.mxu0 0.0
        %2227 = vmatpush1.xpose.msra.mxu0 0.0
        %2228 = vmatprep.subr.mxu0 0.0
        %2229 = vmatpush1.xpose.msra.mxu0 0.0
        %2230 = vmatprep.subr.mxu0 0.0
        %2231 = vmatpush1.xpose.msra.mxu0 0.0
        %2232 = vmatprep.subr.mxu0 0.0
        %2233 = vmatpush1.xpose.msra.mxu0 0.0
        %2234 = vmatprep.subr.mxu0 0.0
        %2235 = vmatpush1.xpose.msra.mxu0 0.0
        %2236 = vmatprep.subr.mxu0 0.0
        %2237 = vmatpush1.xpose.msra.mxu0 0.0
        %2238 = vmatprep.subr.mxu0 0.0
        %2239 = vmatpush1.xpose.msra.mxu0 0.0
        %2240 = vmatprep.subr.mxu0 0.0
        %2241 = vmatpush1.xpose.msra.mxu0 0.0
        %2242 = vmatprep.subr.mxu0 0.0
        %2243 = vmatpush1.xpose.msra.mxu0 0.0
        %2244 = vmatprep.subr.mxu0 0.0
        %2245 = vmatpush1.xpose.msra.mxu0 0.0
        %2246 = vmatprep.subr.mxu0 0.0
        %2247 = vmatpush1.xpose.msra.mxu0 0.0
        %2248 = vmatprep.subr.mxu0 0.0
        %2249 = vmatpush1.xpose.msra.mxu0 0.0
        %2250 = vmatprep.subr.mxu0 0.0
        %2251 = vmatpush1.xpose.msra.mxu0 0.0
        %2252 = vmatprep.mubr.f32.mxu0 0.0
        %2253 = vmatmul.mubr.f32.gmra.mrb[0].mxu0 %v2140
        %v2254 = vpop.f32.mrb[0].mxu0
        %v2255 = vadd.f32 0.0, %v2254
        %v2256 = vpop.f32.mrb[0].mxu0
        %2257 = vmatprep.mubr.f32.mxu0 0.0
        %2258 = vmatmul.mubr.f32.gmra.mrb[0].mxu0 %v2142
        %v2259 = vpop.f32.mrb[0].mxu0
        %v2260 = vadd.f32 0.0, %v2259
        %v2261 = vpop.f32.mrb[0].mxu0
        %2262 = vmatprep.mubr.f32.mxu0 0.0
        %2263 = vmatmul.mubr.f32.gmra.mrb[0].mxu0 %v2144
        %v2264 = vpop.f32.mrb[0].mxu0
        %v2265 = vadd.f32 0.0, %v2264
        %v2266 = vpop.f32.mrb[0].mxu0
        %2267 = vmatprep.mubr.f32.mxu0 0.0
        %2268 = vmatmul.mubr.f32.gmra.mrb[0].mxu0 %v2146
        %v2269 = vpop.f32.mrb[0].mxu0
        %v2270 = vadd.f32 0.0, %v2269
        %v2271 = vpop.f32.mrb[0].mxu0
        %2272 = vmatprep.mubr.f32.mxu0 0.0
        %2273 = vmatmul.mubr.f32.gmra.mrb[0].mxu0 %v2148
        %v2274 = vpop.f32.mrb[0].mxu0
        %v2275 = vadd.f32 0.0, %v2274
        %v2276 = vpop.f32.mrb[0].mxu0
        %2277 = vmatprep.mubr.f32.mxu0 0.0
        %2278 = vmatmul.mubr.f32.gmra.mrb[0].mxu0 %v2150
        %v2279 = vpop.f32.mrb[0].mxu0
        %v2280 = vadd.f32 0.0, %v2279
        %v2281 = vpop.f32.mrb[0].mxu0
        %2282 = vmatprep.mubr.f32.mxu0 0.0
        %2283 = vmatmul.mubr.f32.gmra.mrb[0].mxu0 %v2152
        %v2284 = vpop.f32.mrb[0].mxu0
        %v2285 = vadd.f32 0.0, %v2284
        %v2286 = vpop.f32.mrb[0].mxu0
        %2287 = vmatprep.mubr.f32.mxu0 0.0
        %2288 = vmatmul.mubr.f32.gmra.mrb[0].mxu0 %v2154
        %v2289 = vpop.f32.mrb[0].mxu0
        %v2290 = vadd.f32 0.0, %v2289
        %v2291 = vpop.f32.mrb[0].mxu0
        %2292 = vdwg.mxu0
        %s2293 = scalar_lea.vmem [#allocation3], 128
        %v2294 = vld [vmem:[%s2293] sm:$0xff]
        %v2295 = vld [vmem:[%s2293 + $0x8] sm:$0xff]
        %v2296 = vld [vmem:[%s2293 + $0x10] sm:$0xff]
        %v2297 = vld [vmem:[%s2293 + $0x18] sm:$0xff]
        %v2298 = vld [vmem:[%s2293 + $0x20] sm:$0xff]
        %v2299 = vld [vmem:[%s2293 + $0x28] sm:$0xff]
        %v2300 = vld [vmem:[%s2293 + $0x30] sm:$0xff]
        %v2301 = vld [vmem:[%s2293 + $0x38] sm:$0xff]
        %2302 = vmax.xlane.f32.xlu0 %v2255
        %v2303 = vpop.xlane.xlu0 %2302
        %2304 = vmax.xlane.f32.xlu0 %v2260
        %v2305 = vpop.xlane.xlu0 %2304
        %2306 = vmax.xlane.f32.xlu0 %v2265
        %v2307 = vpop.xlane.xlu0 %2306
        %2308 = vmax.xlane.f32.xlu0 %v2270
        %v2309 = vpop.xlane.xlu0 %2308
        %2310 = vmax.xlane.f32.xlu0 %v2275
        %v2311 = vpop.xlane.xlu0 %2310
        %2312 = vmax.xlane.f32.xlu0 %v2280
        %v2313 = vpop.xlane.xlu0 %2312
        %2314 = vmax.xlane.f32.xlu0 %v2285
        %v2315 = vpop.xlane.xlu0 %2314
        %2316 = vmax.xlane.f32.xlu0 %v2290
        %v2317 = vpop.xlane.xlu0 %2316
        %v2318 = vmax.f32 %v2294, %v2303
        %v2319 = vmax.f32 %v2295, %v2305
        %v2320 = vmax.f32 %v2296, %v2307
        %v2321 = vmax.f32 %v2297, %v2309
        %v2322 = vmax.f32 %v2298, %v2311
        %v2323 = vmax.f32 %v2299, %v2313
        %v2324 = vmax.f32 %v2300, %v2315
        %v2325 = vmax.f32 %v2301, %v2317
        %v2326 = vsub.f32 %v2294, %v2318
        %v2327 = vsub.f32 %v2295, %v2319
        %v2328 = vsub.f32 %v2296, %v2320
        %v2329 = vsub.f32 %v2297, %v2321
        %v2330 = vsub.f32 %v2298, %v2322
        %v2331 = vsub.f32 %v2299, %v2323
        %v2332 = vsub.f32 %v2300, %v2324
        %v2333 = vsub.f32 %v2301, %v2325
        %v2334 = vmul.f32 %v2326, 1.442695
        %v2335 = vpow.pop %v2334
        %v2336 = vmul.f32 %v2327, 1.442695
        %v2337 = vpow.pop %v2336
        %v2338 = vmul.f32 %v2328, 1.442695
        %v2339 = vpow.pop %v2338
        %v2340 = vmul.f32 %v2329, 1.442695
        %v2341 = vpow.pop %v2340
        %v2342 = vmul.f32 %v2330, 1.442695
        %v2343 = vpow.pop %v2342
        %v2344 = vmul.f32 %v2331, 1.442695
        %v2345 = vpow.pop %v2344
        %v2346 = vmul.f32 %v2332, 1.442695
        %v2347 = vpow.pop %v2346
        %v2348 = vmul.f32 %v2333, 1.442695
        %v2349 = vpow.pop %v2348
        %2351 = vset.pattern.permute.xlu0 0
        %2352 = vperm.xlu0 %2351, %v2318
        %v2353 = vpop.permute.xlu0 %2352
        %2356 = vset.pattern.permute.xlu0 0
        %2357 = vperm.xlu0 %2356, %v2319
        %v2358 = vpop.permute.xlu0 %2357
        %2361 = vset.pattern.permute.xlu0 0
        %2362 = vperm.xlu0 %2361, %v2320
        %v2363 = vpop.permute.xlu0 %2362
        %2366 = vset.pattern.permute.xlu0 0
        %2367 = vperm.xlu0 %2366, %v2321
        %v2368 = vpop.permute.xlu0 %2367
        %2371 = vset.pattern.permute.xlu0 0
        %2372 = vperm.xlu0 %2371, %v2322
        %v2373 = vpop.permute.xlu0 %2372
        %2376 = vset.pattern.permute.xlu0 0
        %2377 = vperm.xlu0 %2376, %v2323
        %v2378 = vpop.permute.xlu0 %2377
        %2381 = vset.pattern.permute.xlu0 0
        %2382 = vperm.xlu0 %2381, %v2324
        %v2383 = vpop.permute.xlu0 %2382
        %2386 = vset.pattern.permute.xlu0 0
        %2387 = vperm.xlu0 %2386, %v2325
        %v2388 = vpop.permute.xlu0 %2387
        %v2390 = vsub.f32 %v2255, %v2353
        %v2391 = vsub.f32 %v2260, %v2358
        %v2392 = vsub.f32 %v2265, %v2363
        %v2393 = vsub.f32 %v2270, %v2368
        %v2394 = vsub.f32 %v2275, %v2373
        %v2395 = vsub.f32 %v2280, %v2378
        %v2396 = vsub.f32 %v2285, %v2383
        %v2397 = vsub.f32 %v2290, %v2388
        %v2398 = vmul.f32 %v2390, 1.442695
        %v2399 = vpow.pop %v2398
        %v2400 = vmul.f32 %v2391, 1.442695
        %v2401 = vpow.pop %v2400
        %v2402 = vmul.f32 %v2392, 1.442695
        %v2403 = vpow.pop %v2402
        %v2404 = vmul.f32 %v2393, 1.442695
        %v2405 = vpow.pop %v2404
        %v2406 = vmul.f32 %v2394, 1.442695
        %v2407 = vpow.pop %v2406
        %v2408 = vmul.f32 %v2395, 1.442695
        %v2409 = vpow.pop %v2408
        %v2410 = vmul.f32 %v2396, 1.442695
        %v2411 = vpow.pop %v2410
        %v2412 = vmul.f32 %v2397, 1.442695
        %v2413 = vpow.pop %v2412
        %s2414 = scalar_lea.vmem [#allocation4], 128
        %v2415 = vld [vmem:[%s2414] sm:$0xff]
        %v2416 = vld [vmem:[%s2414 + $0x8] sm:$0xff]
        %v2417 = vld [vmem:[%s2414 + $0x10] sm:$0xff]
        %v2418 = vld [vmem:[%s2414 + $0x18] sm:$0xff]
        %v2419 = vld [vmem:[%s2414 + $0x20] sm:$0xff]
        %v2420 = vld [vmem:[%s2414 + $0x28] sm:$0xff]
        %v2421 = vld [vmem:[%s2414 + $0x30] sm:$0xff]
        %v2422 = vld [vmem:[%s2414 + $0x38] sm:$0xff]
        %v2423 = vmul.f32 %v2335, %v2415
        %v2424 = vmul.f32 %v2337, %v2416
        %v2425 = vmul.f32 %v2339, %v2417
        %v2426 = vmul.f32 %v2341, %v2418
        %v2427 = vmul.f32 %v2343, %v2419
        %v2428 = vmul.f32 %v2345, %v2420
        %v2429 = vmul.f32 %v2347, %v2421
        %v2430 = vmul.f32 %v2349, %v2422
        %2431 = vadd.xlane.f32.xlu0 %v2399
        %v2432 = vpop.xlane.xlu0 %2431
        %2433 = vadd.xlane.f32.xlu0 %v2401
        %v2434 = vpop.xlane.xlu0 %2433
        %2435 = vadd.xlane.f32.xlu0 %v2403
        %v2436 = vpop.xlane.xlu0 %2435
        %2437 = vadd.xlane.f32.xlu0 %v2405
        %v2438 = vpop.xlane.xlu0 %2437
        %2439 = vadd.xlane.f32.xlu0 %v2407
        %v2440 = vpop.xlane.xlu0 %2439
        %2441 = vadd.xlane.f32.xlu0 %v2409
        %v2442 = vpop.xlane.xlu0 %2441
        %2443 = vadd.xlane.f32.xlu0 %v2411
        %v2444 = vpop.xlane.xlu0 %2443
        %2445 = vadd.xlane.f32.xlu0 %v2413
        %v2446 = vpop.xlane.xlu0 %2445
        %v2447 = vadd.f32 %v2423, %v2432
        %v2448 = vadd.f32 %v2424, %v2434
        %v2449 = vadd.f32 %v2425, %v2436
        %v2450 = vadd.f32 %v2426, %v2438
        %v2451 = vadd.f32 %v2427, %v2440
        %v2452 = vadd.f32 %v2428, %v2442
        %v2453 = vadd.f32 %v2429, %v2444
        %v2454 = vadd.f32 %v2430, %v2446
        %2455 = vst.msk [vmem:[%s2414] sm:$0xff] %vm1277, %v2447
        %2456 = vst.msk [vmem:[%s2414 + $0x8] sm:$0xff] %vm1277, %v2448
        %2457 = vst.msk [vmem:[%s2414 + $0x10] sm:$0xff] %vm1277, %v2449
        %2458 = vst.msk [vmem:[%s2414 + $0x18] sm:$0xff] %vm1277, %v2450
        %2459 = vst.msk [vmem:[%s2414 + $0x20] sm:$0xff] %vm1277, %v2451
        %2460 = vst.msk [vmem:[%s2414 + $0x28] sm:$0xff] %vm1277, %v2452
        %2461 = vst.msk [vmem:[%s2414 + $0x30] sm:$0xff] %vm1277, %v2453
        %2462 = vst.msk [vmem:[%s2414 + $0x38] sm:$0xff] %vm1277, %v2454
        %s2463 = scalar_lea.vmem [#allocation2], 128
        %v2464 = vld [vmem:[%s2463] sm:$0xff]
        %v2465 = vld [vmem:[%s2463 + $0x8] sm:$0xff]
        %v2466 = vld [vmem:[%s2463 + $0x10] sm:$0xff]
        %v2467 = vld [vmem:[%s2463 + $0x18] sm:$0xff]
        %v2468 = vld [vmem:[%s2463 + $0x20] sm:$0xff]
        %v2469 = vld [vmem:[%s2463 + $0x28] sm:$0xff]
        %v2470 = vld [vmem:[%s2463 + $0x30] sm:$0xff]
        %v2471 = vld [vmem:[%s2463 + $0x38] sm:$0xff]
        %2473 = vset.pattern.permute.xlu0 0
        %2474 = vperm.xlu0 %2473, %v2335
        %v2475 = vpop.permute.xlu0 %2474
        %2478 = vset.pattern.permute.xlu0 0
        %2479 = vperm.xlu0 %2478, %v2337
        %v2480 = vpop.permute.xlu0 %2479
        %2483 = vset.pattern.permute.xlu0 0
        %2484 = vperm.xlu0 %2483, %v2339
        %v2485 = vpop.permute.xlu0 %2484
        %2488 = vset.pattern.permute.xlu0 0
        %2489 = vperm.xlu0 %2488, %v2341
        %v2490 = vpop.permute.xlu0 %2489
        %2493 = vset.pattern.permute.xlu0 0
        %2494 = vperm.xlu0 %2493, %v2343
        %v2495 = vpop.permute.xlu0 %2494
        %2498 = vset.pattern.permute.xlu0 0
        %2499 = vperm.xlu0 %2498, %v2345
        %v2500 = vpop.permute.xlu0 %2499
        %2503 = vset.pattern.permute.xlu0 0
        %2504 = vperm.xlu0 %2503, %v2347
        %v2505 = vpop.permute.xlu0 %2504
        %2508 = vset.pattern.permute.xlu0 0
        %2509 = vperm.xlu0 %2508, %v2349
        %v2510 = vpop.permute.xlu0 %2509
        %v2512 = vmul.f32 %v2475, %v2464
        %v2513 = vmul.f32 %v2480, %v2465
        %v2514 = vmul.f32 %v2485, %v2466
        %v2515 = vmul.f32 %v2490, %v2467
        %v2516 = vmul.f32 %v2495, %v2468
        %v2517 = vmul.f32 %v2500, %v2469
        %v2518 = vmul.f32 %v2505, %v2470
        %v2519 = vmul.f32 %v2510, %v2471
        %2520 = vrot.lane.b32.xlu0 %v861, 64
        %v2521 = vpop.permute.xlu0 %2520
        %2522 = vrot.lane.b32.xlu0 %v866, 64
        %v2523 = vpop.permute.xlu0 %2522
        %2524 = vrot.lane.b32.xlu0 %v871, 64
        %v2525 = vpop.permute.xlu0 %2524
        %2526 = vrot.lane.b32.xlu0 %v876, 64
        %v2527 = vpop.permute.xlu0 %2526
        %2528 = vrot.lane.b32.xlu0 %v881, 64
        %v2529 = vpop.permute.xlu0 %2528
        %2530 = vrot.lane.b32.xlu0 %v886, 64
        %v2531 = vpop.permute.xlu0 %2530
        %2532 = vrot.lane.b32.xlu0 %v891, 64
        %v2533 = vpop.permute.xlu0 %2532
        %2534 = vrot.lane.b32.xlu0 %v896, 64
        %v2535 = vpop.permute.xlu0 %2534
        %2536 = vrot.lane.b32.xlu0 %v901, 64
        %v2537 = vpop.permute.xlu0 %2536
        %2538 = vrot.lane.b32.xlu0 %v906, 64
        %v2539 = vpop.permute.xlu0 %2538
        %2540 = vrot.lane.b32.xlu0 %v911, 64
        %v2541 = vpop.permute.xlu0 %2540
        %2542 = vrot.lane.b32.xlu0 %v916, 64
        %v2543 = vpop.permute.xlu0 %2542
        %2544 = vrot.lane.b32.xlu0 %v921, 64
        %v2545 = vpop.permute.xlu0 %2544
        %2546 = vrot.lane.b32.xlu0 %v926, 64
        %v2547 = vpop.permute.xlu0 %2546
        %2548 = vrot.lane.b32.xlu0 %v931, 64
        %v2549 = vpop.permute.xlu0 %2548
        %2550 = vrot.lane.b32.xlu0 %v936, 64
        %v2551 = vpop.permute.xlu0 %2550
        %2568 = vmatprep.subr.mxu0 0.0
        %2569 = vmatpush1.msra.mxu0 %v2521
        %2570 = vmatprep.subr.mxu0 0.0
        %2571 = vmatpush1.msra.mxu0 %v2523
        %2572 = vmatprep.subr.mxu0 0.0
        %2573 = vmatpush1.msra.mxu0 %v2525
        %2574 = vmatprep.subr.mxu0 0.0
        %2575 = vmatpush1.msra.mxu0 %v2527
        %2576 = vmatprep.subr.mxu0 0.0
        %2577 = vmatpush1.msra.mxu0 %v2529
        %2578 = vmatprep.subr.mxu0 0.0
        %2579 = vmatpush1.msra.mxu0 %v2531
        %2580 = vmatprep.subr.mxu0 0.0
        %2581 = vmatpush1.msra.mxu0 %v2533
        %2582 = vmatprep.subr.mxu0 0.0
        %2583 = vmatpush1.msra.mxu0 %v2535
        %2584 = vmatprep.subr.mxu0 0.0
        %2585 = vmatpush1.msra.mxu0 %v2537
        %2586 = vmatprep.subr.mxu0 0.0
        %2587 = vmatpush1.msra.mxu0 %v2539
        %2588 = vmatprep.subr.mxu0 0.0
        %2589 = vmatpush1.msra.mxu0 %v2541
        %2590 = vmatprep.subr.mxu0 0.0
        %2591 = vmatpush1.msra.mxu0 %v2543
        %2592 = vmatprep.subr.mxu0 0.0
        %2593 = vmatpush1.msra.mxu0 %v2545
        %2594 = vmatprep.subr.mxu0 0.0
        %2595 = vmatpush1.msra.mxu0 %v2547
        %2596 = vmatprep.subr.mxu0 0.0
        %2597 = vmatpush1.msra.mxu0 %v2549
        %2598 = vmatprep.subr.mxu0 0.0
        %2599 = vmatpush1.msra.mxu0 %v2551
        %2600 = vmatprep.subr.mxu0 0.0
        %2601 = vmatpush1.msra.mxu0 0.0
        %2602 = vmatprep.subr.mxu0 0.0
        %2603 = vmatpush1.msra.mxu0 0.0
        %2604 = vmatprep.subr.mxu0 0.0
        %2605 = vmatpush1.msra.mxu0 0.0
        %2606 = vmatprep.subr.mxu0 0.0
        %2607 = vmatpush1.msra.mxu0 0.0
        %2608 = vmatprep.subr.mxu0 0.0
        %2609 = vmatpush1.msra.mxu0 0.0
        %2610 = vmatprep.subr.mxu0 0.0
        %2611 = vmatpush1.msra.mxu0 0.0
        %2612 = vmatprep.subr.mxu0 0.0
        %2613 = vmatpush1.msra.mxu0 0.0
        %2614 = vmatprep.subr.mxu0 0.0
        %2615 = vmatpush1.msra.mxu0 0.0
        %2616 = vmatprep.subr.mxu0 0.0
        %2617 = vmatpush1.msra.mxu0 0.0
        %2618 = vmatprep.subr.mxu0 0.0
        %2619 = vmatpush1.msra.mxu0 0.0
        %2620 = vmatprep.subr.mxu0 0.0
        %2621 = vmatpush1.msra.mxu0 0.0
        %2622 = vmatprep.subr.mxu0 0.0
        %2623 = vmatpush1.msra.mxu0 0.0
        %2624 = vmatprep.subr.mxu0 0.0
        %2625 = vmatpush1.msra.mxu0 0.0
        %2626 = vmatprep.subr.mxu0 0.0
        %2627 = vmatpush1.msra.mxu0 0.0
        %2628 = vmatprep.subr.mxu0 0.0
        %2629 = vmatpush1.msra.mxu0 0.0
        %2630 = vmatprep.subr.mxu0 0.0
        %2631 = vmatpush1.msra.mxu0 0.0
        %2632 = vmatprep.mubr.f32.mxu0 0.0
        %2633 = vmatmul.mubr.f32.gmra.mrb[0].mxu0 %v2399
        %v2634 = vpop.f32.mrb[0].mxu0
        %v2635 = vadd.f32 0.0, %v2634
        %v2636 = vpop.f32.mrb[0].mxu0
        %2637 = vmatprep.mubr.f32.mxu0 0.0
        %2638 = vmatmul.mubr.f32.gmra.mrb[0].mxu0 %v2401
        %v2639 = vpop.f32.mrb[0].mxu0
        %v2640 = vadd.f32 0.0, %v2639
        %v2641 = vpop.f32.mrb[0].mxu0
        %2642 = vmatprep.mubr.f32.mxu0 0.0
        %2643 = vmatmul.mubr.f32.gmra.mrb[0].mxu0 %v2403
        %v2644 = vpop.f32.mrb[0].mxu0
        %v2645 = vadd.f32 0.0, %v2644
        %v2646 = vpop.f32.mrb[0].mxu0
        %2647 = vmatprep.mubr.f32.mxu0 0.0
        %2648 = vmatmul.mubr.f32.gmra.mrb[0].mxu0 %v2405
        %v2649 = vpop.f32.mrb[0].mxu0
        %v2650 = vadd.f32 0.0, %v2649
        %v2651 = vpop.f32.mrb[0].mxu0
        %2652 = vmatprep.mubr.f32.mxu0 0.0
        %2653 = vmatmul.mubr.f32.gmra.mrb[0].mxu0 %v2407
        %v2654 = vpop.f32.mrb[0].mxu0
        %v2655 = vadd.f32 0.0, %v2654
        %v2656 = vpop.f32.mrb[0].mxu0
        %2657 = vmatprep.mubr.f32.mxu0 0.0
        %2658 = vmatmul.mubr.f32.gmra.mrb[0].mxu0 %v2409
        %v2659 = vpop.f32.mrb[0].mxu0
        %v2660 = vadd.f32 0.0, %v2659
        %v2661 = vpop.f32.mrb[0].mxu0
        %2662 = vmatprep.mubr.f32.mxu0 0.0
        %2663 = vmatmul.mubr.f32.gmra.mrb[0].mxu0 %v2411
        %v2664 = vpop.f32.mrb[0].mxu0
        %v2665 = vadd.f32 0.0, %v2664
        %v2666 = vpop.f32.mrb[0].mxu0
        %2667 = vmatprep.mubr.f32.mxu0 0.0
        %2668 = vmatmul.mubr.f32.gmra.mrb[0].mxu0 %v2413
        %v2669 = vpop.f32.mrb[0].mxu0
        %v2670 = vadd.f32 0.0, %v2669
        %v2671 = vpop.f32.mrb[0].mxu0
        %2672 = vdwg.mxu0
        %v2673 = vadd.f32 %v2512, %v2635
        %v2674 = vadd.f32 %v2513, %v2640
        %v2675 = vadd.f32 %v2514, %v2645
        %v2676 = vadd.f32 %v2515, %v2650
        %v2677 = vadd.f32 %v2516, %v2655
        %v2678 = vadd.f32 %v2517, %v2660
        %v2679 = vadd.f32 %v2518, %v2665
        %v2680 = vadd.f32 %v2519, %v2670
        %2681 = vst.msk [vmem:[%s2463] sm:$0xff] %vm939, %v2673
        %2682 = vst.msk [vmem:[%s2463 + $0x8] sm:$0xff] %vm939, %v2674
        %2683 = vst.msk [vmem:[%s2463 + $0x10] sm:$0xff] %vm939, %v2675
        %2684 = vst.msk [vmem:[%s2463 + $0x18] sm:$0xff] %vm939, %v2676
        %2685 = vst.msk [vmem:[%s2463 + $0x20] sm:$0xff] %vm939, %v2677
        %2686 = vst.msk [vmem:[%s2463 + $0x28] sm:$0xff] %vm939, %v2678
        %2687 = vst.msk [vmem:[%s2463 + $0x30] sm:$0xff] %vm939, %v2679
        %2688 = vst.msk [vmem:[%s2463 + $0x38] sm:$0xff] %vm939, %v2680
        %2689 = vst.msk [vmem:[%s2293] sm:$0xff] %vm1277, %v2318
        %2690 = vst.msk [vmem:[%s2293 + $0x8] sm:$0xff] %vm1277, %v2319
        %2691 = vst.msk [vmem:[%s2293 + $0x10] sm:$0xff] %vm1277, %v2320
        %2692 = vst.msk [vmem:[%s2293 + $0x18] sm:$0xff] %vm1277, %v2321
        %2693 = vst.msk [vmem:[%s2293 + $0x20] sm:$0xff] %vm1277, %v2322
        %2694 = vst.msk [vmem:[%s2293 + $0x28] sm:$0xff] %vm1277, %v2323
        %2695 = vst.msk [vmem:[%s2293 + $0x30] sm:$0xff] %vm1277, %v2324
        %2696 = vst.msk [vmem:[%s2293 + $0x38] sm:$0xff] %vm1277, %v2325
        %2697 = vrot.lane.b32.xlu0 %v579, 32
        %v2698 = vpop.permute.xlu0 %2697
        %2699 = vrot.lane.b32.xlu0 %v580, 32
        %v2700 = vpop.permute.xlu0 %2699
        %2701 = vrot.lane.b32.xlu0 %v581, 32
        %v2702 = vpop.permute.xlu0 %2701
        %2703 = vrot.lane.b32.xlu0 %v582, 32
        %v2704 = vpop.permute.xlu0 %2703
        %2705 = vrot.lane.b32.xlu0 %v583, 32
        %v2706 = vpop.permute.xlu0 %2705
        %2707 = vrot.lane.b32.xlu0 %v584, 32
        %v2708 = vpop.permute.xlu0 %2707
        %2709 = vrot.lane.b32.xlu0 %v585, 32
        %v2710 = vpop.permute.xlu0 %2709
        %2711 = vrot.lane.b32.xlu0 %v586, 32
        %v2712 = vpop.permute.xlu0 %2711
        %2713 = vrot.lane.b32.xlu0 %v693, 32
        %v2714 = vpop.permute.xlu0 %2713
        %2715 = vrot.lane.b32.xlu0 %v698, 32
        %v2716 = vpop.permute.xlu0 %2715
        %2717 = vrot.lane.b32.xlu0 %v703, 32
        %v2718 = vpop.permute.xlu0 %2717
        %2719 = vrot.lane.b32.xlu0 %v708, 32
        %v2720 = vpop.permute.xlu0 %2719
        %2721 = vrot.lane.b32.xlu0 %v713, 32
        %v2722 = vpop.permute.xlu0 %2721
        %2723 = vrot.lane.b32.xlu0 %v718, 32
        %v2724 = vpop.permute.xlu0 %2723
        %2725 = vrot.lane.b32.xlu0 %v723, 32
        %v2726 = vpop.permute.xlu0 %2725
        %2727 = vrot.lane.b32.xlu0 %v728, 32
        %v2728 = vpop.permute.xlu0 %2727
        %2729 = vrot.lane.b32.xlu0 %v733, 32
        %v2730 = vpop.permute.xlu0 %2729
        %2731 = vrot.lane.b32.xlu0 %v738, 32
        %v2732 = vpop.permute.xlu0 %2731
        %2733 = vrot.lane.b32.xlu0 %v743, 32
        %v2734 = vpop.permute.xlu0 %2733
        %2735 = vrot.lane.b32.xlu0 %v748, 32
        %v2736 = vpop.permute.xlu0 %2735
        %2737 = vrot.lane.b32.xlu0 %v753, 32
        %v2738 = vpop.permute.xlu0 %2737
        %2739 = vrot.lane.b32.xlu0 %v758, 32
        %v2740 = vpop.permute.xlu0 %2739
        %2741 = vrot.lane.b32.xlu0 %v763, 32
        %v2742 = vpop.permute.xlu0 %2741
        %2743 = vrot.lane.b32.xlu0 %v768, 32
        %v2744 = vpop.permute.xlu0 %2743
        %v2745 = vsel %vm939, %v2698, 0
        %v2747 = vsel %vm939, %v2700, 0
        %v2749 = vsel %vm939, %v2702, 0
        %v2751 = vsel %vm939, %v2704, 0
        %v2753 = vsel %vm939, %v2706, 0
        %v2755 = vsel %vm939, %v2708, 0
        %v2757 = vsel %vm939, %v2710, 0
        %v2759 = vsel %vm939, %v2712, 0
        %v2761 = vsel %vm939, %v2714, 0
        %v2763 = vsel %vm939, %v2716, 0
        %v2765 = vsel %vm939, %v2718, 0
        %v2767 = vsel %vm939, %v2720, 0
        %v2769 = vsel %vm939, %v2722, 0
        %v2771 = vsel %vm939, %v2724, 0
        %v2773 = vsel %vm939, %v2726, 0
        %v2775 = vsel %vm939, %v2728, 0
        %v2777 = vsel %vm939, %v2730, 0
        %v2779 = vsel %vm939, %v2732, 0
        %v2781 = vsel %vm939, %v2734, 0
        %v2783 = vsel %vm939, %v2736, 0
        %v2785 = vsel %vm939, %v2738, 0
        %v2787 = vsel %vm939, %v2740, 0
        %v2789 = vsel %vm939, %v2742, 0
        %v2791 = vsel %vm939, %v2744, 0
        %2793 = vmatprep.subr.mxu0 0.0
        %2794 = vmatpush1.xpose.msra.mxu0 %v2761
        %2795 = vmatprep.subr.mxu0 0.0
        %2796 = vmatpush1.xpose.msra.mxu0 %v2763
        %2797 = vmatprep.subr.mxu0 0.0
        %2798 = vmatpush1.xpose.msra.mxu0 %v2765
        %2799 = vmatprep.subr.mxu0 0.0
        %2800 = vmatpush1.xpose.msra.mxu0 %v2767
        %2801 = vmatprep.subr.mxu0 0.0
        %2802 = vmatpush1.xpose.msra.mxu0 %v2769
        %2803 = vmatprep.subr.mxu0 0.0
        %2804 = vmatpush1.xpose.msra.mxu0 %v2771
        %2805 = vmatprep.subr.mxu0 0.0
        %2806 = vmatpush1.xpose.msra.mxu0 %v2773
        %2807 = vmatprep.subr.mxu0 0.0
        %2808 = vmatpush1.xpose.msra.mxu0 %v2775
        %2809 = vmatprep.subr.mxu0 0.0
        %2810 = vmatpush1.xpose.msra.mxu0 %v2777
        %2811 = vmatprep.subr.mxu0 0.0
        %2812 = vmatpush1.xpose.msra.mxu0 %v2779
        %2813 = vmatprep.subr.mxu0 0.0
        %2814 = vmatpush1.xpose.msra.mxu0 %v2781
        %2815 = vmatprep.subr.mxu0 0.0
        %2816 = vmatpush1.xpose.msra.mxu0 %v2783
        %2817 = vmatprep.subr.mxu0 0.0
        %2818 = vmatpush1.xpose.msra.mxu0 %v2785
        %2819 = vmatprep.subr.mxu0 0.0
        %2820 = vmatpush1.xpose.msra.mxu0 %v2787
        %2821 = vmatprep.subr.mxu0 0.0
        %2822 = vmatpush1.xpose.msra.mxu0 %v2789
        %2823 = vmatprep.subr.mxu0 0.0
        %2824 = vmatpush1.xpose.msra.mxu0 %v2791
        %2825 = vmatprep.subr.mxu0 0.0
        %2826 = vmatpush1.xpose.msra.mxu0 0.0
        %2827 = vmatprep.subr.mxu0 0.0
        %2828 = vmatpush1.xpose.msra.mxu0 0.0
        %2829 = vmatprep.subr.mxu0 0.0
        %2830 = vmatpush1.xpose.msra.mxu0 0.0
        %2831 = vmatprep.subr.mxu0 0.0
        %2832 = vmatpush1.xpose.msra.mxu0 0.0
        %2833 = vmatprep.subr.mxu0 0.0
        %2834 = vmatpush1.xpose.msra.mxu0 0.0
        %2835 = vmatprep.subr.mxu0 0.0
        %2836 = vmatpush1.xpose.msra.mxu0 0.0
        %2837 = vmatprep.subr.mxu0 0.0
        %2838 = vmatpush1.xpose.msra.mxu0 0.0
        %2839 = vmatprep.subr.mxu0 0.0
        %2840 = vmatpush1.xpose.msra.mxu0 0.0
        %2841 = vmatprep.subr.mxu0 0.0
        %2842 = vmatpush1.xpose.msra.mxu0 0.0
        %2843 = vmatprep.subr.mxu0 0.0
        %2844 = vmatpush1.xpose.msra.mxu0 0.0
        %2845 = vmatprep.subr.mxu0 0.0
        %2846 = vmatpush1.xpose.msra.mxu0 0.0
        %2847 = vmatprep.subr.mxu0 0.0
        %2848 = vmatpush1.xpose.msra.mxu0 0.0
        %2849 = vmatprep.subr.mxu0 0.0
        %2850 = vmatpush1.xpose.msra.mxu0 0.0
        %2851 = vmatprep.subr.mxu0 0.0
        %2852 = vmatpush1.xpose.msra.mxu0 0.0
        %2853 = vmatprep.subr.mxu0 0.0
        %2854 = vmatpush1.xpose.msra.mxu0 0.0
        %2855 = vmatprep.subr.mxu0 0.0
        %2856 = vmatpush1.xpose.msra.mxu0 0.0
        %2857 = vmatprep.mubr.f32.mxu0 0.0
        %2858 = vmatmul.mubr.f32.gmra.mrb[0].mxu0 %v2745
        %v2859 = vpop.f32.mrb[0].mxu0
        %v2860 = vadd.f32 0.0, %v2859
        %v2861 = vpop.f32.mrb[0].mxu0
        %2862 = vmatprep.mubr.f32.mxu0 0.0
        %2863 = vmatmul.mubr.f32.gmra.mrb[0].mxu0 %v2747
        %v2864 = vpop.f32.mrb[0].mxu0
        %v2865 = vadd.f32 0.0, %v2864
        %v2866 = vpop.f32.mrb[0].mxu0
        %2867 = vmatprep.mubr.f32.mxu0 0.0
        %2868 = vmatmul.mubr.f32.gmra.mrb[0].mxu0 %v2749
        %v2869 = vpop.f32.mrb[0].mxu0
        %v2870 = vadd.f32 0.0, %v2869
        %v2871 = vpop.f32.mrb[0].mxu0
        %2872 = vmatprep.mubr.f32.mxu0 0.0
        %2873 = vmatmul.mubr.f32.gmra.mrb[0].mxu0 %v2751
        %v2874 = vpop.f32.mrb[0].mxu0
        %v2875 = vadd.f32 0.0, %v2874
        %v2876 = vpop.f32.mrb[0].mxu0
        %2877 = vmatprep.mubr.f32.mxu0 0.0
        %2878 = vmatmul.mubr.f32.gmra.mrb[0].mxu0 %v2753
        %v2879 = vpop.f32.mrb[0].mxu0
        %v2880 = vadd.f32 0.0, %v2879
        %v2881 = vpop.f32.mrb[0].mxu0
        %2882 = vmatprep.mubr.f32.mxu0 0.0
        %2883 = vmatmul.mubr.f32.gmra.mrb[0].mxu0 %v2755
        %v2884 = vpop.f32.mrb[0].mxu0
        %v2885 = vadd.f32 0.0, %v2884
        %v2886 = vpop.f32.mrb[0].mxu0
        %2887 = vmatprep.mubr.f32.mxu0 0.0
        %2888 = vmatmul.mubr.f32.gmra.mrb[0].mxu0 %v2757
        %v2889 = vpop.f32.mrb[0].mxu0
        %v2890 = vadd.f32 0.0, %v2889
        %v2891 = vpop.f32.mrb[0].mxu0
        %2892 = vmatprep.mubr.f32.mxu0 0.0
        %2893 = vmatmul.mubr.f32.gmra.mrb[0].mxu0 %v2759
        %v2894 = vpop.f32.mrb[0].mxu0
        %v2895 = vadd.f32 0.0, %v2894
        %v2896 = vpop.f32.mrb[0].mxu0
        %2897 = vdwg.mxu0
        %s2898 = scalar_lea.vmem [#allocation3], 192
        %v2899 = vld [vmem:[%s2898] sm:$0xff]
        %v2900 = vld [vmem:[%s2898 + $0x8] sm:$0xff]
        %v2901 = vld [vmem:[%s2898 + $0x10] sm:$0xff]
        %v2902 = vld [vmem:[%s2898 + $0x18] sm:$0xff]
        %v2903 = vld [vmem:[%s2898 + $0x20] sm:$0xff]
        %v2904 = vld [vmem:[%s2898 + $0x28] sm:$0xff]
        %v2905 = vld [vmem:[%s2898 + $0x30] sm:$0xff]
        %v2906 = vld [vmem:[%s2898 + $0x38] sm:$0xff]
        %2907 = vmax.xlane.f32.xlu0 %v2860
        %v2908 = vpop.xlane.xlu0 %2907
        %2909 = vmax.xlane.f32.xlu0 %v2865
        %v2910 = vpop.xlane.xlu0 %2909
        %2911 = vmax.xlane.f32.xlu0 %v2870
        %v2912 = vpop.xlane.xlu0 %2911
        %2913 = vmax.xlane.f32.xlu0 %v2875
        %v2914 = vpop.xlane.xlu0 %2913
        %2915 = vmax.xlane.f32.xlu0 %v2880
        %v2916 = vpop.xlane.xlu0 %2915
        %2917 = vmax.xlane.f32.xlu0 %v2885
        %v2918 = vpop.xlane.xlu0 %2917
        %2919 = vmax.xlane.f32.xlu0 %v2890
        %v2920 = vpop.xlane.xlu0 %2919
        %2921 = vmax.xlane.f32.xlu0 %v2895
        %v2922 = vpop.xlane.xlu0 %2921
        %v2923 = vmax.f32 %v2899, %v2908
        %v2924 = vmax.f32 %v2900, %v2910
        %v2925 = vmax.f32 %v2901, %v2912
        %v2926 = vmax.f32 %v2902, %v2914
        %v2927 = vmax.f32 %v2903, %v2916
        %v2928 = vmax.f32 %v2904, %v2918
        %v2929 = vmax.f32 %v2905, %v2920
        %v2930 = vmax.f32 %v2906, %v2922
        %v2931 = vsub.f32 %v2899, %v2923
        %v2932 = vsub.f32 %v2900, %v2924
        %v2933 = vsub.f32 %v2901, %v2925
        %v2934 = vsub.f32 %v2902, %v2926
        %v2935 = vsub.f32 %v2903, %v2927
        %v2936 = vsub.f32 %v2904, %v2928
        %v2937 = vsub.f32 %v2905, %v2929
        %v2938 = vsub.f32 %v2906, %v2930
        %v2939 = vmul.f32 %v2931, 1.442695
        %v2940 = vpow.pop %v2939
        %v2941 = vmul.f32 %v2932, 1.442695
        %v2942 = vpow.pop %v2941
        %v2943 = vmul.f32 %v2933, 1.442695
        %v2944 = vpow.pop %v2943
        %v2945 = vmul.f32 %v2934, 1.442695
        %v2946 = vpow.pop %v2945
        %v2947 = vmul.f32 %v2935, 1.442695
        %v2948 = vpow.pop %v2947
        %v2949 = vmul.f32 %v2936, 1.442695
        %v2950 = vpow.pop %v2949
        %v2951 = vmul.f32 %v2937, 1.442695
        %v2952 = vpow.pop %v2951
        %v2953 = vmul.f32 %v2938, 1.442695
        %v2954 = vpow.pop %v2953
        %2956 = vset.pattern.permute.xlu0 0
        %2957 = vperm.xlu0 %2956, %v2923
        %v2958 = vpop.permute.xlu0 %2957
        %2961 = vset.pattern.permute.xlu0 0
        %2962 = vperm.xlu0 %2961, %v2924
        %v2963 = vpop.permute.xlu0 %2962
        %2966 = vset.pattern.permute.xlu0 0
        %2967 = vperm.xlu0 %2966, %v2925
        %v2968 = vpop.permute.xlu0 %2967
        %2971 = vset.pattern.permute.xlu0 0
        %2972 = vperm.xlu0 %2971, %v2926
        %v2973 = vpop.permute.xlu0 %2972
        %2976 = vset.pattern.permute.xlu0 0
        %2977 = vperm.xlu0 %2976, %v2927
        %v2978 = vpop.permute.xlu0 %2977
        %2981 = vset.pattern.permute.xlu0 0
        %2982 = vperm.xlu0 %2981, %v2928
        %v2983 = vpop.permute.xlu0 %2982
        %2986 = vset.pattern.permute.xlu0 0
        %2987 = vperm.xlu0 %2986, %v2929
        %v2988 = vpop.permute.xlu0 %2987
        %2991 = vset.pattern.permute.xlu0 0
        %2992 = vperm.xlu0 %2991, %v2930
        %v2993 = vpop.permute.xlu0 %2992
        %v2995 = vsub.f32 %v2860, %v2958
        %v2996 = vsub.f32 %v2865, %v2963
        %v2997 = vsub.f32 %v2870, %v2968
        %v2998 = vsub.f32 %v2875, %v2973
        %v2999 = vsub.f32 %v2880, %v2978
        %v3000 = vsub.f32 %v2885, %v2983
        %v3001 = vsub.f32 %v2890, %v2988
        %v3002 = vsub.f32 %v2895, %v2993
        %v3003 = vmul.f32 %v2995, 1.442695
        %v3004 = vpow.pop %v3003
        %v3005 = vmul.f32 %v2996, 1.442695
        %v3006 = vpow.pop %v3005
        %v3007 = vmul.f32 %v2997, 1.442695
        %v3008 = vpow.pop %v3007
        %v3009 = vmul.f32 %v2998, 1.442695
        %v3010 = vpow.pop %v3009
        %v3011 = vmul.f32 %v2999, 1.442695
        %v3012 = vpow.pop %v3011
        %v3013 = vmul.f32 %v3000, 1.442695
        %v3014 = vpow.pop %v3013
        %v3015 = vmul.f32 %v3001, 1.442695
        %v3016 = vpow.pop %v3015
        %v3017 = vmul.f32 %v3002, 1.442695
        %v3018 = vpow.pop %v3017
        %s3019 = scalar_lea.vmem [#allocation4], 192
        %v3020 = vld [vmem:[%s3019] sm:$0xff]
        %v3021 = vld [vmem:[%s3019 + $0x8] sm:$0xff]
        %v3022 = vld [vmem:[%s3019 + $0x10] sm:$0xff]
        %v3023 = vld [vmem:[%s3019 + $0x18] sm:$0xff]
        %v3024 = vld [vmem:[%s3019 + $0x20] sm:$0xff]
        %v3025 = vld [vmem:[%s3019 + $0x28] sm:$0xff]
        %v3026 = vld [vmem:[%s3019 + $0x30] sm:$0xff]
        %v3027 = vld [vmem:[%s3019 + $0x38] sm:$0xff]
        %v3028 = vmul.f32 %v2940, %v3020
        %v3029 = vmul.f32 %v2942, %v3021
        %v3030 = vmul.f32 %v2944, %v3022
        %v3031 = vmul.f32 %v2946, %v3023
        %v3032 = vmul.f32 %v2948, %v3024
        %v3033 = vmul.f32 %v2950, %v3025
        %v3034 = vmul.f32 %v2952, %v3026
        %v3035 = vmul.f32 %v2954, %v3027
        %3036 = vadd.xlane.f32.xlu0 %v3004
        %v3037 = vpop.xlane.xlu0 %3036
        %3038 = vadd.xlane.f32.xlu0 %v3006
        %v3039 = vpop.xlane.xlu0 %3038
        %3040 = vadd.xlane.f32.xlu0 %v3008
        %v3041 = vpop.xlane.xlu0 %3040
        %3042 = vadd.xlane.f32.xlu0 %v3010
        %v3043 = vpop.xlane.xlu0 %3042
        %3044 = vadd.xlane.f32.xlu0 %v3012
        %v3045 = vpop.xlane.xlu0 %3044
        %3046 = vadd.xlane.f32.xlu0 %v3014
        %v3047 = vpop.xlane.xlu0 %3046
        %3048 = vadd.xlane.f32.xlu0 %v3016
        %v3049 = vpop.xlane.xlu0 %3048
        %3050 = vadd.xlane.f32.xlu0 %v3018
        %v3051 = vpop.xlane.xlu0 %3050
        %v3052 = vadd.f32 %v3028, %v3037
        %v3053 = vadd.f32 %v3029, %v3039
        %v3054 = vadd.f32 %v3030, %v3041
        %v3055 = vadd.f32 %v3031, %v3043
        %v3056 = vadd.f32 %v3032, %v3045
        %v3057 = vadd.f32 %v3033, %v3047
        %v3058 = vadd.f32 %v3034, %v3049
        %v3059 = vadd.f32 %v3035, %v3051
        %3060 = vst.msk [vmem:[%s3019] sm:$0xff] %vm1277, %v3052
        %3061 = vst.msk [vmem:[%s3019 + $0x8] sm:$0xff] %vm1277, %v3053
        %3062 = vst.msk [vmem:[%s3019 + $0x10] sm:$0xff] %vm1277, %v3054
        %3063 = vst.msk [vmem:[%s3019 + $0x18] sm:$0xff] %vm1277, %v3055
        %3064 = vst.msk [vmem:[%s3019 + $0x20] sm:$0xff] %vm1277, %v3056
        %3065 = vst.msk [vmem:[%s3019 + $0x28] sm:$0xff] %vm1277, %v3057
        %3066 = vst.msk [vmem:[%s3019 + $0x30] sm:$0xff] %vm1277, %v3058
        %3067 = vst.msk [vmem:[%s3019 + $0x38] sm:$0xff] %vm1277, %v3059
        %s3068 = scalar_lea.vmem [#allocation2], 192
        %v3069 = vld [vmem:[%s3068] sm:$0xff]
        %v3070 = vld [vmem:[%s3068 + $0x8] sm:$0xff]
        %v3071 = vld [vmem:[%s3068 + $0x10] sm:$0xff]
        %v3072 = vld [vmem:[%s3068 + $0x18] sm:$0xff]
        %v3073 = vld [vmem:[%s3068 + $0x20] sm:$0xff]
        %v3074 = vld [vmem:[%s3068 + $0x28] sm:$0xff]
        %v3075 = vld [vmem:[%s3068 + $0x30] sm:$0xff]
        %v3076 = vld [vmem:[%s3068 + $0x38] sm:$0xff]
        %3078 = vset.pattern.permute.xlu0 0
        %3079 = vperm.xlu0 %3078, %v2940
        %v3080 = vpop.permute.xlu0 %3079
        %3083 = vset.pattern.permute.xlu0 0
        %3084 = vperm.xlu0 %3083, %v2942
        %v3085 = vpop.permute.xlu0 %3084
        %3088 = vset.pattern.permute.xlu0 0
        %3089 = vperm.xlu0 %3088, %v2944
        %v3090 = vpop.permute.xlu0 %3089
        %3093 = vset.pattern.permute.xlu0 0
        %3094 = vperm.xlu0 %3093, %v2946
        %v3095 = vpop.permute.xlu0 %3094
        %3098 = vset.pattern.permute.xlu0 0
        %3099 = vperm.xlu0 %3098, %v2948
        %v3100 = vpop.permute.xlu0 %3099
        %3103 = vset.pattern.permute.xlu0 0
        %3104 = vperm.xlu0 %3103, %v2950
        %v3105 = vpop.permute.xlu0 %3104
        %3108 = vset.pattern.permute.xlu0 0
        %3109 = vperm.xlu0 %3108, %v2952
        %v3110 = vpop.permute.xlu0 %3109
        %3113 = vset.pattern.permute.xlu0 0
        %3114 = vperm.xlu0 %3113, %v2954
        %v3115 = vpop.permute.xlu0 %3114
        %v3117 = vmul.f32 %v3080, %v3069
        %v3118 = vmul.f32 %v3085, %v3070
        %v3119 = vmul.f32 %v3090, %v3071
        %v3120 = vmul.f32 %v3095, %v3072
        %v3121 = vmul.f32 %v3100, %v3073
        %v3122 = vmul.f32 %v3105, %v3074
        %v3123 = vmul.f32 %v3110, %v3075
        %v3124 = vmul.f32 %v3115, %v3076
        %3125 = vrot.lane.b32.xlu0 %v861, 32
        %v3126 = vpop.permute.xlu0 %3125
        %3127 = vrot.lane.b32.xlu0 %v866, 32
        %v3128 = vpop.permute.xlu0 %3127
        %3129 = vrot.lane.b32.xlu0 %v871, 32
        %v3130 = vpop.permute.xlu0 %3129
        %3131 = vrot.lane.b32.xlu0 %v876, 32
        %v3132 = vpop.permute.xlu0 %3131
        %3133 = vrot.lane.b32.xlu0 %v881, 32
        %v3134 = vpop.permute.xlu0 %3133
        %3135 = vrot.lane.b32.xlu0 %v886, 32
        %v3136 = vpop.permute.xlu0 %3135
        %3137 = vrot.lane.b32.xlu0 %v891, 32
        %v3138 = vpop.permute.xlu0 %3137
        %3139 = vrot.lane.b32.xlu0 %v896, 32
        %v3140 = vpop.permute.xlu0 %3139
        %3141 = vrot.lane.b32.xlu0 %v901, 32
        %v3142 = vpop.permute.xlu0 %3141
        %3143 = vrot.lane.b32.xlu0 %v906, 32
        %v3144 = vpop.permute.xlu0 %3143
        %3145 = vrot.lane.b32.xlu0 %v911, 32
        %v3146 = vpop.permute.xlu0 %3145
        %3147 = vrot.lane.b32.xlu0 %v916, 32
        %v3148 = vpop.permute.xlu0 %3147
        %3149 = vrot.lane.b32.xlu0 %v921, 32
        %v3150 = vpop.permute.xlu0 %3149
        %3151 = vrot.lane.b32.xlu0 %v926, 32
        %v3152 = vpop.permute.xlu0 %3151
        %3153 = vrot.lane.b32.xlu0 %v931, 32
        %v3154 = vpop.permute.xlu0 %3153
        %3155 = vrot.lane.b32.xlu0 %v936, 32
        %v3156 = vpop.permute.xlu0 %3155
        %3173 = vmatprep.subr.mxu0 0.0
        %3174 = vmatpush1.msra.mxu0 %v3126
        %3175 = vmatprep.subr.mxu0 0.0
        %3176 = vmatpush1.msra.mxu0 %v3128
        %3177 = vmatprep.subr.mxu0 0.0
        %3178 = vmatpush1.msra.mxu0 %v3130
        %3179 = vmatprep.subr.mxu0 0.0
        %3180 = vmatpush1.msra.mxu0 %v3132
        %3181 = vmatprep.subr.mxu0 0.0
        %3182 = vmatpush1.msra.mxu0 %v3134
        %3183 = vmatprep.subr.mxu0 0.0
        %3184 = vmatpush1.msra.mxu0 %v3136
        %3185 = vmatprep.subr.mxu0 0.0
        %3186 = vmatpush1.msra.mxu0 %v3138
        %3187 = vmatprep.subr.mxu0 0.0
        %3188 = vmatpush1.msra.mxu0 %v3140
        %3189 = vmatprep.subr.mxu0 0.0
        %3190 = vmatpush1.msra.mxu0 %v3142
        %3191 = vmatprep.subr.mxu0 0.0
        %3192 = vmatpush1.msra.mxu0 %v3144
        %3193 = vmatprep.subr.mxu0 0.0
        %3194 = vmatpush1.msra.mxu0 %v3146
        %3195 = vmatprep.subr.mxu0 0.0
        %3196 = vmatpush1.msra.mxu0 %v3148
        %3197 = vmatprep.subr.mxu0 0.0
        %3198 = vmatpush1.msra.mxu0 %v3150
        %3199 = vmatprep.subr.mxu0 0.0
        %3200 = vmatpush1.msra.mxu0 %v3152
        %3201 = vmatprep.subr.mxu0 0.0
        %3202 = vmatpush1.msra.mxu0 %v3154
        %3203 = vmatprep.subr.mxu0 0.0
        %3204 = vmatpush1.msra.mxu0 %v3156
        %3205 = vmatprep.subr.mxu0 0.0
        %3206 = vmatpush1.msra.mxu0 0.0
        %3207 = vmatprep.subr.mxu0 0.0
        %3208 = vmatpush1.msra.mxu0 0.0
        %3209 = vmatprep.subr.mxu0 0.0
        %3210 = vmatpush1.msra.mxu0 0.0
        %3211 = vmatprep.subr.mxu0 0.0
        %3212 = vmatpush1.msra.mxu0 0.0
        %3213 = vmatprep.subr.mxu0 0.0
        %3214 = vmatpush1.msra.mxu0 0.0
        %3215 = vmatprep.subr.mxu0 0.0
        %3216 = vmatpush1.msra.mxu0 0.0
        %3217 = vmatprep.subr.mxu0 0.0
        %3218 = vmatpush1.msra.mxu0 0.0
        %3219 = vmatprep.subr.mxu0 0.0
        %3220 = vmatpush1.msra.mxu0 0.0
        %3221 = vmatprep.subr.mxu0 0.0
        %3222 = vmatpush1.msra.mxu0 0.0
        %3223 = vmatprep.subr.mxu0 0.0
        %3224 = vmatpush1.msra.mxu0 0.0
        %3225 = vmatprep.subr.mxu0 0.0
        %3226 = vmatpush1.msra.mxu0 0.0
        %3227 = vmatprep.subr.mxu0 0.0
        %3228 = vmatpush1.msra.mxu0 0.0
        %3229 = vmatprep.subr.mxu0 0.0
        %3230 = vmatpush1.msra.mxu0 0.0
        %3231 = vmatprep.subr.mxu0 0.0
        %3232 = vmatpush1.msra.mxu0 0.0
        %3233 = vmatprep.subr.mxu0 0.0
        %3234 = vmatpush1.msra.mxu0 0.0
        %3235 = vmatprep.subr.mxu0 0.0
        %3236 = vmatpush1.msra.mxu0 0.0
        %3237 = vmatprep.mubr.f32.mxu0 0.0
        %3238 = vmatmul.mubr.f32.gmra.mrb[0].mxu0 %v3004
        %v3239 = vpop.f32.mrb[0].mxu0
        %v3240 = vadd.f32 0.0, %v3239
        %v3241 = vpop.f32.mrb[0].mxu0
        %3242 = vmatprep.mubr.f32.mxu0 0.0
        %3243 = vmatmul.mubr.f32.gmra.mrb[0].mxu0 %v3006
        %v3244 = vpop.f32.mrb[0].mxu0
        %v3245 = vadd.f32 0.0, %v3244
        %v3246 = vpop.f32.mrb[0].mxu0
        %3247 = vmatprep.mubr.f32.mxu0 0.0
        %3248 = vmatmul.mubr.f32.gmra.mrb[0].mxu0 %v3008
        %v3249 = vpop.f32.mrb[0].mxu0
        %v3250 = vadd.f32 0.0, %v3249
        %v3251 = vpop.f32.mrb[0].mxu0
        %3252 = vmatprep.mubr.f32.mxu0 0.0
        %3253 = vmatmul.mubr.f32.gmra.mrb[0].mxu0 %v3010
        %v3254 = vpop.f32.mrb[0].mxu0
        %v3255 = vadd.f32 0.0, %v3254
        %v3256 = vpop.f32.mrb[0].mxu0
        %3257 = vmatprep.mubr.f32.mxu0 0.0
        %3258 = vmatmul.mubr.f32.gmra.mrb[0].mxu0 %v3012
        %v3259 = vpop.f32.mrb[0].mxu0
        %v3260 = vadd.f32 0.0, %v3259
        %v3261 = vpop.f32.mrb[0].mxu0
        %3262 = vmatprep.mubr.f32.mxu0 0.0
        %3263 = vmatmul.mubr.f32.gmra.mrb[0].mxu0 %v3014
        %v3264 = vpop.f32.mrb[0].mxu0
        %v3265 = vadd.f32 0.0, %v3264
        %v3266 = vpop.f32.mrb[0].mxu0
        %3267 = vmatprep.mubr.f32.mxu0 0.0
        %3268 = vmatmul.mubr.f32.gmra.mrb[0].mxu0 %v3016
        %v3269 = vpop.f32.mrb[0].mxu0
        %v3270 = vadd.f32 0.0, %v3269
        %v3271 = vpop.f32.mrb[0].mxu0
        %3272 = vmatprep.mubr.f32.mxu0 0.0
        %3273 = vmatmul.mubr.f32.gmra.mrb[0].mxu0 %v3018
        %v3274 = vpop.f32.mrb[0].mxu0
        %v3275 = vadd.f32 0.0, %v3274
        %v3276 = vpop.f32.mrb[0].mxu0
        %3277 = vdwg.mxu0
        %v3278 = vadd.f32 %v3117, %v3240
        %v3279 = vadd.f32 %v3118, %v3245
        %v3280 = vadd.f32 %v3119, %v3250
        %v3281 = vadd.f32 %v3120, %v3255
        %v3282 = vadd.f32 %v3121, %v3260
        %v3283 = vadd.f32 %v3122, %v3265
        %v3284 = vadd.f32 %v3123, %v3270
        %v3285 = vadd.f32 %v3124, %v3275
        %3286 = vst.msk [vmem:[%s3068] sm:$0xff] %vm939, %v3278
        %3287 = vst.msk [vmem:[%s3068 + $0x8] sm:$0xff] %vm939, %v3279
        %3288 = vst.msk [vmem:[%s3068 + $0x10] sm:$0xff] %vm939, %v3280
        %3289 = vst.msk [vmem:[%s3068 + $0x18] sm:$0xff] %vm939, %v3281
        %3290 = vst.msk [vmem:[%s3068 + $0x20] sm:$0xff] %vm939, %v3282
        %3291 = vst.msk [vmem:[%s3068 + $0x28] sm:$0xff] %vm939, %v3283
        %3292 = vst.msk [vmem:[%s3068 + $0x30] sm:$0xff] %vm939, %v3284
        %3293 = vst.msk [vmem:[%s3068 + $0x38] sm:$0xff] %vm939, %v3285
        %3294 = vst.msk [vmem:[%s2898] sm:$0xff] %vm1277, %v2923
        %3295 = vst.msk [vmem:[%s2898 + $0x8] sm:$0xff] %vm1277, %v2924
        %3296 = vst.msk [vmem:[%s2898 + $0x10] sm:$0xff] %vm1277, %v2925
        %3297 = vst.msk [vmem:[%s2898 + $0x18] sm:$0xff] %vm1277, %v2926
        %3298 = vst.msk [vmem:[%s2898 + $0x20] sm:$0xff] %vm1277, %v2927
        %3299 = vst.msk [vmem:[%s2898 + $0x28] sm:$0xff] %vm1277, %v2928
        %3300 = vst.msk [vmem:[%s2898 + $0x30] sm:$0xff] %vm1277, %v2929
        %3301 = vst.msk [vmem:[%s2898 + $0x38] sm:$0xff] %vm1277, %v2930
        %p3302 = scmp.eq.s32.totalorder %s38, 1
        // Predicated region
        $region89: #{tpu_custom_call.1} parent=51 // pred_check
          %p3303 = pneg %p3302
        $region90: #{tpu_custom_call.1} parent=51 // pred_check_branch
          %3305 = sbr.rel (%p3303) target = $region92
        $region91: #{tpu_custom_call.1} parent=51 // pred_region
          %v3306 = vld [vmem:[#allocation4] sm:$0xff]
          %v3307 = vld [vmem:[#allocation4 + $0x8] sm:$0xff]
          %v3308 = vld [vmem:[#allocation4 + $0x10] sm:$0xff]
          %v3309 = vld [vmem:[#allocation4 + $0x18] sm:$0xff]
          %v3310 = vld [vmem:[#allocation4 + $0x20] sm:$0xff]
          %v3311 = vld [vmem:[#allocation4 + $0x28] sm:$0xff]
          %v3312 = vld [vmem:[#allocation4 + $0x30] sm:$0xff]
          %v3313 = vld [vmem:[#allocation4 + $0x38] sm:$0xff]
          %v3314 = vrcp.pop %v3306
          %v3315 = vrcp.pop %v3307
          %v3316 = vrcp.pop %v3308
          %v3317 = vrcp.pop %v3309
          %v3318 = vrcp.pop %v3310
          %v3319 = vrcp.pop %v3311
          %v3320 = vrcp.pop %v3312
          %v3321 = vrcp.pop %v3313
          %v3322 = vld [vmem:[#allocation2] sm:$0xff]
          %v3323 = vld [vmem:[#allocation2 + $0x8] sm:$0xff]
          %v3324 = vld [vmem:[#allocation2 + $0x10] sm:$0xff]
          %v3325 = vld [vmem:[#allocation2 + $0x18] sm:$0xff]
          %v3326 = vld [vmem:[#allocation2 + $0x20] sm:$0xff]
          %v3327 = vld [vmem:[#allocation2 + $0x28] sm:$0xff]
          %v3328 = vld [vmem:[#allocation2 + $0x30] sm:$0xff]
          %v3329 = vld [vmem:[#allocation2 + $0x38] sm:$0xff]
          %3331 = vset.pattern.permute.xlu0 0
          %3332 = vperm.xlu0 %3331, %v3314
          %v3333 = vpop.permute.xlu0 %3332
          %3336 = vset.pattern.permute.xlu0 0
          %3337 = vperm.xlu0 %3336, %v3315
          %v3338 = vpop.permute.xlu0 %3337
          %3341 = vset.pattern.permute.xlu0 0
          %3342 = vperm.xlu0 %3341, %v3316
          %v3343 = vpop.permute.xlu0 %3342
          %3346 = vset.pattern.permute.xlu0 0
          %3347 = vperm.xlu0 %3346, %v3317
          %v3348 = vpop.permute.xlu0 %3347
          %3351 = vset.pattern.permute.xlu0 0
          %3352 = vperm.xlu0 %3351, %v3318
          %v3353 = vpop.permute.xlu0 %3352
          %3356 = vset.pattern.permute.xlu0 0
          %3357 = vperm.xlu0 %3356, %v3319
          %v3358 = vpop.permute.xlu0 %3357
          %3361 = vset.pattern.permute.xlu0 0
          %3362 = vperm.xlu0 %3361, %v3320
          %v3363 = vpop.permute.xlu0 %3362
          %3366 = vset.pattern.permute.xlu0 0
          %3367 = vperm.xlu0 %3366, %v3321
          %v3368 = vpop.permute.xlu0 %3367
          %v3370 = vmul.f32 %v3322, %v3333
          %v3371 = vmul.f32 %v3323, %v3338
          %v3372 = vmul.f32 %v3324, %v3343
          %v3373 = vmul.f32 %v3325, %v3348
          %v3374 = vmul.f32 %v3326, %v3353
          %v3375 = vmul.f32 %v3327, %v3358
          %v3376 = vmul.f32 %v3328, %v3363
          %v3377 = vmul.f32 %v3329, %v3368
          %v3378 = vld [vmem:[#allocation16] sm:$0xff]
          %v3379 = vld [vmem:[#allocation16 + $0x8] sm:$0xff]
          %v3380 = vld [vmem:[#allocation16 + $0x10] sm:$0xff]
          %v3381 = vld [vmem:[#allocation16 + $0x18] sm:$0xff]
          %v3382 = vld [vmem:[%s1793] sm:$0xff]
          %v3383 = vld [vmem:[%s1793 + $0x8] sm:$0xff]
          %v3384 = vld [vmem:[%s1793 + $0x10] sm:$0xff]
          %v3385 = vld [vmem:[%s1793 + $0x18] sm:$0xff]
          %v3386 = vld [vmem:[%s1793 + $0x20] sm:$0xff]
          %v3387 = vld [vmem:[%s1793 + $0x28] sm:$0xff]
          %v3388 = vld [vmem:[%s1793 + $0x30] sm:$0xff]
          %v3389 = vld [vmem:[%s1793 + $0x38] sm:$0xff]
          %v3390 = vrcp.pop %v3382
          %v3391 = vrcp.pop %v3383
          %v3392 = vrcp.pop %v3384
          %v3393 = vrcp.pop %v3385
          %v3394 = vrcp.pop %v3386
          %v3395 = vrcp.pop %v3387
          %v3396 = vrcp.pop %v3388
          %v3397 = vrcp.pop %v3389
          %v3398 = vld [vmem:[%s1842] sm:$0xff]
          %v3399 = vld [vmem:[%s1842 + $0x8] sm:$0xff]
          %v3400 = vld [vmem:[%s1842 + $0x10] sm:$0xff]
          %v3401 = vld [vmem:[%s1842 + $0x18] sm:$0xff]
          %v3402 = vld [vmem:[%s1842 + $0x20] sm:$0xff]
          %v3403 = vld [vmem:[%s1842 + $0x28] sm:$0xff]
          %v3404 = vld [vmem:[%s1842 + $0x30] sm:$0xff]
          %v3405 = vld [vmem:[%s1842 + $0x38] sm:$0xff]
          %3407 = vset.pattern.permute.xlu0 0
          %3408 = vperm.xlu0 %3407, %v3390
          %v3409 = vpop.permute.xlu0 %3408
          %3412 = vset.pattern.permute.xlu0 0
          %3413 = vperm.xlu0 %3412, %v3391
          %v3414 = vpop.permute.xlu0 %3413
          %3417 = vset.pattern.permute.xlu0 0
          %3418 = vperm.xlu0 %3417, %v3392
          %v3419 = vpop.permute.xlu0 %3418
          %3422 = vset.pattern.permute.xlu0 0
          %3423 = vperm.xlu0 %3422, %v3393
          %v3424 = vpop.permute.xlu0 %3423
          %3427 = vset.pattern.permute.xlu0 0
          %3428 = vperm.xlu0 %3427, %v3394
          %v3429 = vpop.permute.xlu0 %3428
          %3432 = vset.pattern.permute.xlu0 0
          %3433 = vperm.xlu0 %3432, %v3395
          %v3434 = vpop.permute.xlu0 %3433
          %3437 = vset.pattern.permute.xlu0 0
          %3438 = vperm.xlu0 %3437, %v3396
          %v3439 = vpop.permute.xlu0 %3438
          %3442 = vset.pattern.permute.xlu0 0
          %3443 = vperm.xlu0 %3442, %v3397
          %v3444 = vpop.permute.xlu0 %3443
          %v3446 = vmul.f32 %v3398, %v3409
          %v3447 = vmul.f32 %v3399, %v3414
          %v3448 = vmul.f32 %v3400, %v3419
          %v3449 = vmul.f32 %v3401, %v3424
          %v3450 = vmul.f32 %v3402, %v3429
          %v3451 = vmul.f32 %v3403, %v3434
          %v3452 = vmul.f32 %v3404, %v3439
          %v3453 = vmul.f32 %v3405, %v3444
          %v3454 = vld [vmem:[#allocation16 + $0x20] sm:$0xff]
          %v3455 = vld [vmem:[#allocation16 + $0x28] sm:$0xff]
          %v3456 = vld [vmem:[#allocation16 + $0x30] sm:$0xff]
          %v3457 = vld [vmem:[#allocation16 + $0x38] sm:$0xff]
          %v3459 = vsel %vm939, %v3446, 0
          %v3462 = vsel %vm939, %v3447, 0
          %v3465 = vsel %vm939, %v3448, 0
          %v3468 = vsel %vm939, %v3449, 0
          %v3471 = vsel %vm939, %v3450, 0
          %v3474 = vsel %vm939, %v3451, 0
          %v3477 = vsel %vm939, %v3452, 0
          %v3480 = vsel %vm939, %v3453, 0
          %3482 = vmatprep.subr.mxu0 0.0
          %3483 = vmatpush1.msra.mxu0 %v3454
          %3484 = vmatprep.subr.mxu0 0.0
          %3485 = vmatpush1.msra.mxu0 %v3455
          %3486 = vmatprep.subr.mxu0 0.0
          %3487 = vmatpush1.msra.mxu0 %v3456
          %3488 = vmatprep.subr.mxu0 0.0
          %3489 = vmatpush1.msra.mxu0 %v3457
          %3490 = vmatprep.subr.mxu0 0.0
          %3491 = vmatpush1.msra.mxu0 0.0
          %3492 = vmatprep.subr.mxu0 0.0
          %3493 = vmatpush1.msra.mxu0 0.0
          %3494 = vmatprep.subr.mxu0 0.0
          %3495 = vmatpush1.msra.mxu0 0.0
          %3496 = vmatprep.subr.mxu0 0.0
          %3497 = vmatpush1.msra.mxu0 0.0
          %3498 = vmatprep.subr.mxu0 0.0
          %3499 = vmatpush1.msra.mxu0 0.0
          %3500 = vmatprep.subr.mxu0 0.0
          %3501 = vmatpush1.msra.mxu0 0.0
          %3502 = vmatprep.subr.mxu0 0.0
          %3503 = vmatpush1.msra.mxu0 0.0
          %3504 = vmatprep.subr.mxu0 0.0
          %3505 = vmatpush1.msra.mxu0 0.0
          %3506 = vmatprep.subr.mxu0 0.0
          %3507 = vmatpush1.msra.mxu0 0.0
          %3508 = vmatprep.subr.mxu0 0.0
          %3509 = vmatpush1.msra.mxu0 0.0
          %3510 = vmatprep.subr.mxu0 0.0
          %3511 = vmatpush1.msra.mxu0 0.0
          %3512 = vmatprep.subr.mxu0 0.0
          %3513 = vmatpush1.msra.mxu0 0.0
          %3514 = vmatprep.subr.mxu0 0.0
          %3515 = vmatpush1.msra.mxu0 0.0
          %3516 = vmatprep.subr.mxu0 0.0
          %3517 = vmatpush1.msra.mxu0 0.0
          %3518 = vmatprep.subr.mxu0 0.0
          %3519 = vmatpush1.msra.mxu0 0.0
          %3520 = vmatprep.subr.mxu0 0.0
          %3521 = vmatpush1.msra.mxu0 0.0
          %3522 = vmatprep.subr.mxu0 0.0
          %3523 = vmatpush1.msra.mxu0 0.0
          %3524 = vmatprep.subr.mxu0 0.0
          %3525 = vmatpush1.msra.mxu0 0.0
          %3526 = vmatprep.subr.mxu0 0.0
          %3527 = vmatpush1.msra.mxu0 0.0
          %3528 = vmatprep.subr.mxu0 0.0
          %3529 = vmatpush1.msra.mxu0 0.0
          %3530 = vmatprep.subr.mxu0 0.0
          %3531 = vmatpush1.msra.mxu0 0.0
          %3532 = vmatprep.subr.mxu0 0.0
          %3533 = vmatpush1.msra.mxu0 0.0
          %3534 = vmatprep.subr.mxu0 0.0
          %3535 = vmatpush1.msra.mxu0 0.0
          %3536 = vmatprep.subr.mxu0 0.0
          %3537 = vmatpush1.msra.mxu0 0.0
          %3538 = vmatprep.subr.mxu0 0.0
          %3539 = vmatpush1.msra.mxu0 0.0
          %3540 = vmatprep.subr.mxu0 0.0
          %3541 = vmatpush1.msra.mxu0 0.0
          %3542 = vmatprep.subr.mxu0 0.0
          %3543 = vmatpush1.msra.mxu0 0.0
          %3544 = vmatprep.subr.mxu0 0.0
          %3545 = vmatpush1.msra.mxu0 0.0
          %3546 = vmatprep.mubr.f32.mxu0 0.0
          %3547 = vmatmul.mubr.f32.gmra.mrb[0].mxu0 %v3459
          %v3548 = vpop.f32.mrb[0].mxu0
          %v3549 = vadd.f32 0.0, %v3548
          %v3550 = vpop.f32.mrb[0].mxu0
          %3551 = vmatprep.mubr.f32.mxu0 0.0
          %3552 = vmatmul.mubr.f32.gmra.mrb[0].mxu0 %v3462
          %v3553 = vpop.f32.mrb[0].mxu0
          %v3554 = vadd.f32 0.0, %v3553
          %v3555 = vpop.f32.mrb[0].mxu0
          %3556 = vmatprep.mubr.f32.mxu0 0.0
          %3557 = vmatmul.mubr.f32.gmra.mrb[0].mxu0 %v3465
          %v3558 = vpop.f32.mrb[0].mxu0
          %v3559 = vadd.f32 0.0, %v3558
          %v3560 = vpop.f32.mrb[0].mxu0
          %3561 = vmatprep.mubr.f32.mxu0 0.0
          %3562 = vmatmul.mubr.f32.gmra.mrb[0].mxu0 %v3468
          %v3563 = vpop.f32.mrb[0].mxu0
          %v3564 = vadd.f32 0.0, %v3563
          %v3565 = vpop.f32.mrb[0].mxu0
          %3566 = vmatprep.mubr.f32.mxu0 0.0
          %3567 = vmatmul.mubr.f32.gmra.mrb[0].mxu0 %v3471
          %v3568 = vpop.f32.mrb[0].mxu0
          %v3569 = vadd.f32 0.0, %v3568
          %v3570 = vpop.f32.mrb[0].mxu0
          %3571 = vmatprep.mubr.f32.mxu0 0.0
          %3572 = vmatmul.mubr.f32.gmra.mrb[0].mxu0 %v3474
          %v3573 = vpop.f32.mrb[0].mxu0
          %v3574 = vadd.f32 0.0, %v3573
          %v3575 = vpop.f32.mrb[0].mxu0
          %3576 = vmatprep.mubr.f32.mxu0 0.0
          %3577 = vmatmul.mubr.f32.gmra.mrb[0].mxu0 %v3477
          %v3578 = vpop.f32.mrb[0].mxu0
          %v3579 = vadd.f32 0.0, %v3578
          %v3580 = vpop.f32.mrb[0].mxu0
          %3581 = vmatprep.mubr.f32.mxu0 0.0
          %3582 = vmatmul.mubr.f32.gmra.mrb[0].mxu0 %v3480
          %v3583 = vpop.f32.mrb[0].mxu0
          %v3584 = vadd.f32 0.0, %v3583
          %v3585 = vpop.f32.mrb[0].mxu0
          %3586 = vdwg.mxu0
          %v3588 = vsel %vm939, %v3370, 0
          %v3591 = vsel %vm939, %v3371, 0
          %v3594 = vsel %vm939, %v3372, 0
          %v3597 = vsel %vm939, %v3373, 0
          %v3600 = vsel %vm939, %v3374, 0
          %v3603 = vsel %vm939, %v3375, 0
          %v3606 = vsel %vm939, %v3376, 0
          %v3609 = vsel %vm939, %v3377, 0
          %3611 = vmatprep.subr.mxu0 0.0
          %3612 = vmatpush1.msra.mxu0 %v3378
          %3613 = vmatprep.subr.mxu0 0.0
          %3614 = vmatpush1.msra.mxu0 %v3379
          %3615 = vmatprep.subr.mxu0 0.0
          %3616 = vmatpush1.msra.mxu0 %v3380
          %3617 = vmatprep.subr.mxu0 0.0
          %3618 = vmatpush1.msra.mxu0 %v3381
          %3619 = vmatprep.subr.mxu0 0.0
          %3620 = vmatpush1.msra.mxu0 0.0
          %3621 = vmatprep.subr.mxu0 0.0
          %3622 = vmatpush1.msra.mxu0 0.0
          %3623 = vmatprep.subr.mxu0 0.0
          %3624 = vmatpush1.msra.mxu0 0.0
          %3625 = vmatprep.subr.mxu0 0.0
          %3626 = vmatpush1.msra.mxu0 0.0
          %3627 = vmatprep.subr.mxu0 0.0
          %3628 = vmatpush1.msra.mxu0 0.0
          %3629 = vmatprep.subr.mxu0 0.0
          %3630 = vmatpush1.msra.mxu0 0.0
          %3631 = vmatprep.subr.mxu0 0.0
          %3632 = vmatpush1.msra.mxu0 0.0
          %3633 = vmatprep.subr.mxu0 0.0
          %3634 = vmatpush1.msra.mxu0 0.0
          %3635 = vmatprep.subr.mxu0 0.0
          %3636 = vmatpush1.msra.mxu0 0.0
          %3637 = vmatprep.subr.mxu0 0.0
          %3638 = vmatpush1.msra.mxu0 0.0
          %3639 = vmatprep.subr.mxu0 0.0
          %3640 = vmatpush1.msra.mxu0 0.0
          %3641 = vmatprep.subr.mxu0 0.0
          %3642 = vmatpush1.msra.mxu0 0.0
          %3643 = vmatprep.subr.mxu0 0.0
          %3644 = vmatpush1.msra.mxu0 0.0
          %3645 = vmatprep.subr.mxu0 0.0
          %3646 = vmatpush1.msra.mxu0 0.0
          %3647 = vmatprep.subr.mxu0 0.0
          %3648 = vmatpush1.msra.mxu0 0.0
          %3649 = vmatprep.subr.mxu0 0.0
          %3650 = vmatpush1.msra.mxu0 0.0
          %3651 = vmatprep.subr.mxu0 0.0
          %3652 = vmatpush1.msra.mxu0 0.0
          %3653 = vmatprep.subr.mxu0 0.0
          %3654 = vmatpush1.msra.mxu0 0.0
          %3655 = vmatprep.subr.mxu0 0.0
          %3656 = vmatpush1.msra.mxu0 0.0
          %3657 = vmatprep.subr.mxu0 0.0
          %3658 = vmatpush1.msra.mxu0 0.0
          %3659 = vmatprep.subr.mxu0 0.0
          %3660 = vmatpush1.msra.mxu0 0.0
          %3661 = vmatprep.subr.mxu0 0.0
          %3662 = vmatpush1.msra.mxu0 0.0
          %3663 = vmatprep.subr.mxu0 0.0
          %3664 = vmatpush1.msra.mxu0 0.0
          %3665 = vmatprep.subr.mxu0 0.0
          %3666 = vmatpush1.msra.mxu0 0.0
          %3667 = vmatprep.subr.mxu0 0.0
          %3668 = vmatpush1.msra.mxu0 0.0
          %3669 = vmatprep.subr.mxu0 0.0
          %3670 = vmatpush1.msra.mxu0 0.0
          %3671 = vmatprep.subr.mxu0 0.0
          %3672 = vmatpush1.msra.mxu0 0.0
          %3673 = vmatprep.subr.mxu0 0.0
          %3674 = vmatpush1.msra.mxu0 0.0
          %3675 = vmatprep.mubr.f32.mxu0 0.0
          %3676 = vmatmul.mubr.f32.gmra.mrb[0].mxu0 %v3588
          %v3677 = vpop.f32.mrb[0].mxu0
          %v3678 = vadd.f32 %v3549, %v3677
          %v3679 = vpop.f32.mrb[0].mxu0
          %3680 = vmatprep.mubr.f32.mxu0 0.0
          %3681 = vmatmul.mubr.f32.gmra.mrb[0].mxu0 %v3591
          %v3682 = vpop.f32.mrb[0].mxu0
          %v3683 = vadd.f32 %v3554, %v3682
          %v3684 = vpop.f32.mrb[0].mxu0
          %3685 = vmatprep.mubr.f32.mxu0 0.0
          %3686 = vmatmul.mubr.f32.gmra.mrb[0].mxu0 %v3594
          %v3687 = vpop.f32.mrb[0].mxu0
          %v3688 = vadd.f32 %v3559, %v3687
          %v3689 = vpop.f32.mrb[0].mxu0
          %3690 = vmatprep.mubr.f32.mxu0 0.0
          %3691 = vmatmul.mubr.f32.gmra.mrb[0].mxu0 %v3597
          %v3692 = vpop.f32.mrb[0].mxu0
          %v3693 = vadd.f32 %v3564, %v3692
          %v3694 = vpop.f32.mrb[0].mxu0
          %3695 = vmatprep.mubr.f32.mxu0 0.0
          %3696 = vmatmul.mubr.f32.gmra.mrb[0].mxu0 %v3600
          %v3697 = vpop.f32.mrb[0].mxu0
          %v3698 = vadd.f32 %v3569, %v3697
          %v3699 = vpop.f32.mrb[0].mxu0
          %3700 = vmatprep.mubr.f32.mxu0 0.0
          %3701 = vmatmul.mubr.f32.gmra.mrb[0].mxu0 %v3603
          %v3702 = vpop.f32.mrb[0].mxu0
          %v3703 = vadd.f32 %v3574, %v3702
          %v3704 = vpop.f32.mrb[0].mxu0
          %3705 = vmatprep.mubr.f32.mxu0 0.0
          %3706 = vmatmul.mubr.f32.gmra.mrb[0].mxu0 %v3606
          %v3707 = vpop.f32.mrb[0].mxu0
          %v3708 = vadd.f32 %v3579, %v3707
          %v3709 = vpop.f32.mrb[0].mxu0
          %3710 = vmatprep.mubr.f32.mxu0 0.0
          %3711 = vmatmul.mubr.f32.gmra.mrb[0].mxu0 %v3609
          %v3712 = vpop.f32.mrb[0].mxu0
          %v3713 = vadd.f32 %v3584, %v3712
          %v3714 = vpop.f32.mrb[0].mxu0
          %3715 = vdwg.mxu0
          %v3716 = vld [vmem:[%s2414] sm:$0xff]
          %v3717 = vld [vmem:[%s2414 + $0x8] sm:$0xff]
          %v3718 = vld [vmem:[%s2414 + $0x10] sm:$0xff]
          %v3719 = vld [vmem:[%s2414 + $0x18] sm:$0xff]
          %v3720 = vld [vmem:[%s2414 + $0x20] sm:$0xff]
          %v3721 = vld [vmem:[%s2414 + $0x28] sm:$0xff]
          %v3722 = vld [vmem:[%s2414 + $0x30] sm:$0xff]
          %v3723 = vld [vmem:[%s2414 + $0x38] sm:$0xff]
          %v3724 = vrcp.pop %v3716
          %v3725 = vrcp.pop %v3717
          %v3726 = vrcp.pop %v3718
          %v3727 = vrcp.pop %v3719
          %v3728 = vrcp.pop %v3720
          %v3729 = vrcp.pop %v3721
          %v3730 = vrcp.pop %v3722
          %v3731 = vrcp.pop %v3723
          %v3732 = vld [vmem:[%s2463] sm:$0xff]
          %v3733 = vld [vmem:[%s2463 + $0x8] sm:$0xff]
          %v3734 = vld [vmem:[%s2463 + $0x10] sm:$0xff]
          %v3735 = vld [vmem:[%s2463 + $0x18] sm:$0xff]
          %v3736 = vld [vmem:[%s2463 + $0x20] sm:$0xff]
          %v3737 = vld [vmem:[%s2463 + $0x28] sm:$0xff]
          %v3738 = vld [vmem:[%s2463 + $0x30] sm:$0xff]
          %v3739 = vld [vmem:[%s2463 + $0x38] sm:$0xff]
          %3741 = vset.pattern.permute.xlu0 0
          %3742 = vperm.xlu0 %3741, %v3724
          %v3743 = vpop.permute.xlu0 %3742
          %3746 = vset.pattern.permute.xlu0 0
          %3747 = vperm.xlu0 %3746, %v3725
          %v3748 = vpop.permute.xlu0 %3747
          %3751 = vset.pattern.permute.xlu0 0
          %3752 = vperm.xlu0 %3751, %v3726
          %v3753 = vpop.permute.xlu0 %3752
          %3756 = vset.pattern.permute.xlu0 0
          %3757 = vperm.xlu0 %3756, %v3727
          %v3758 = vpop.permute.xlu0 %3757
          %3761 = vset.pattern.permute.xlu0 0
          %3762 = vperm.xlu0 %3761, %v3728
          %v3763 = vpop.permute.xlu0 %3762
          %3766 = vset.pattern.permute.xlu0 0
          %3767 = vperm.xlu0 %3766, %v3729
          %v3768 = vpop.permute.xlu0 %3767
          %3771 = vset.pattern.permute.xlu0 0
          %3772 = vperm.xlu0 %3771, %v3730
          %v3773 = vpop.permute.xlu0 %3772
          %3776 = vset.pattern.permute.xlu0 0
          %3777 = vperm.xlu0 %3776, %v3731
          %v3778 = vpop.permute.xlu0 %3777
          %v3780 = vmul.f32 %v3732, %v3743
          %v3781 = vmul.f32 %v3733, %v3748
          %v3782 = vmul.f32 %v3734, %v3753
          %v3783 = vmul.f32 %v3735, %v3758
          %v3784 = vmul.f32 %v3736, %v3763
          %v3785 = vmul.f32 %v3737, %v3768
          %v3786 = vmul.f32 %v3738, %v3773
          %v3787 = vmul.f32 %v3739, %v3778
          %v3788 = vld [vmem:[#allocation16 + $0x40] sm:$0xff]
          %v3789 = vld [vmem:[#allocation16 + $0x48] sm:$0xff]
          %v3790 = vld [vmem:[#allocation16 + $0x50] sm:$0xff]
          %v3791 = vld [vmem:[#allocation16 + $0x58] sm:$0xff]
          %v3793 = vsel %vm939, %v3780, 0
          %v3796 = vsel %vm939, %v3781, 0
          %v3799 = vsel %vm939, %v3782, 0
          %v3802 = vsel %vm939, %v3783, 0
          %v3805 = vsel %vm939, %v3784, 0
          %v3808 = vsel %vm939, %v3785, 0
          %v3811 = vsel %vm939, %v3786, 0
          %v3814 = vsel %vm939, %v3787, 0
          %3816 = vmatprep.subr.mxu0 0.0
          %3817 = vmatpush1.msra.mxu0 %v3788
          %3818 = vmatprep.subr.mxu0 0.0
          %3819 = vmatpush1.msra.mxu0 %v3789
          %3820 = vmatprep.subr.mxu0 0.0
          %3821 = vmatpush1.msra.mxu0 %v3790
          %3822 = vmatprep.subr.mxu0 0.0
          %3823 = vmatpush1.msra.mxu0 %v3791
          %3824 = vmatprep.subr.mxu0 0.0
          %3825 = vmatpush1.msra.mxu0 0.0
          %3826 = vmatprep.subr.mxu0 0.0
          %3827 = vmatpush1.msra.mxu0 0.0
          %3828 = vmatprep.subr.mxu0 0.0
          %3829 = vmatpush1.msra.mxu0 0.0
          %3830 = vmatprep.subr.mxu0 0.0
          %3831 = vmatpush1.msra.mxu0 0.0
          %3832 = vmatprep.subr.mxu0 0.0
          %3833 = vmatpush1.msra.mxu0 0.0
          %3834 = vmatprep.subr.mxu0 0.0
          %3835 = vmatpush1.msra.mxu0 0.0
          %3836 = vmatprep.subr.mxu0 0.0
          %3837 = vmatpush1.msra.mxu0 0.0
          %3838 = vmatprep.subr.mxu0 0.0
          %3839 = vmatpush1.msra.mxu0 0.0
          %3840 = vmatprep.subr.mxu0 0.0
          %3841 = vmatpush1.msra.mxu0 0.0
          %3842 = vmatprep.subr.mxu0 0.0
          %3843 = vmatpush1.msra.mxu0 0.0
          %3844 = vmatprep.subr.mxu0 0.0
          %3845 = vmatpush1.msra.mxu0 0.0
          %3846 = vmatprep.subr.mxu0 0.0
          %3847 = vmatpush1.msra.mxu0 0.0
          %3848 = vmatprep.subr.mxu0 0.0
          %3849 = vmatpush1.msra.mxu0 0.0
          %3850 = vmatprep.subr.mxu0 0.0
          %3851 = vmatpush1.msra.mxu0 0.0
          %3852 = vmatprep.subr.mxu0 0.0
          %3853 = vmatpush1.msra.mxu0 0.0
          %3854 = vmatprep.subr.mxu0 0.0
          %3855 = vmatpush1.msra.mxu0 0.0
          %3856 = vmatprep.subr.mxu0 0.0
          %3857 = vmatpush1.msra.mxu0 0.0
          %3858 = vmatprep.subr.mxu0 0.0
          %3859 = vmatpush1.msra.mxu0 0.0
          %3860 = vmatprep.subr.mxu0 0.0
          %3861 = vmatpush1.msra.mxu0 0.0
          %3862 = vmatprep.subr.mxu0 0.0
          %3863 = vmatpush1.msra.mxu0 0.0
          %3864 = vmatprep.subr.mxu0 0.0
          %3865 = vmatpush1.msra.mxu0 0.0
          %3866 = vmatprep.subr.mxu0 0.0
          %3867 = vmatpush1.msra.mxu0 0.0
          %3868 = vmatprep.subr.mxu0 0.0
          %3869 = vmatpush1.msra.mxu0 0.0
          %3870 = vmatprep.subr.mxu0 0.0
          %3871 = vmatpush1.msra.mxu0 0.0
          %3872 = vmatprep.subr.mxu0 0.0
          %3873 = vmatpush1.msra.mxu0 0.0
          %3874 = vmatprep.subr.mxu0 0.0
          %3875 = vmatpush1.msra.mxu0 0.0
          %3876 = vmatprep.subr.mxu0 0.0
          %3877 = vmatpush1.msra.mxu0 0.0
          %3878 = vmatprep.subr.mxu0 0.0
          %3879 = vmatpush1.msra.mxu0 0.0
          %3880 = vmatprep.mubr.f32.mxu0 0.0
          %3881 = vmatmul.mubr.f32.gmra.mrb[0].mxu0 %v3793
          %v3882 = vpop.f32.mrb[0].mxu0
          %v3883 = vadd.f32 0.0, %v3882
          %v3884 = vpop.f32.mrb[0].mxu0
          %3885 = vmatprep.mubr.f32.mxu0 0.0
          %3886 = vmatmul.mubr.f32.gmra.mrb[0].mxu0 %v3796
          %v3887 = vpop.f32.mrb[0].mxu0
          %v3888 = vadd.f32 0.0, %v3887
          %v3889 = vpop.f32.mrb[0].mxu0
          %3890 = vmatprep.mubr.f32.mxu0 0.0
          %3891 = vmatmul.mubr.f32.gmra.mrb[0].mxu0 %v3799
          %v3892 = vpop.f32.mrb[0].mxu0
          %v3893 = vadd.f32 0.0, %v3892
          %v3894 = vpop.f32.mrb[0].mxu0
          %3895 = vmatprep.mubr.f32.mxu0 0.0
          %3896 = vmatmul.mubr.f32.gmra.mrb[0].mxu0 %v3802
          %v3897 = vpop.f32.mrb[0].mxu0
          %v3898 = vadd.f32 0.0, %v3897
          %v3899 = vpop.f32.mrb[0].mxu0
          %3900 = vmatprep.mubr.f32.mxu0 0.0
          %3901 = vmatmul.mubr.f32.gmra.mrb[0].mxu0 %v3805
          %v3902 = vpop.f32.mrb[0].mxu0
          %v3903 = vadd.f32 0.0, %v3902
          %v3904 = vpop.f32.mrb[0].mxu0
          %3905 = vmatprep.mubr.f32.mxu0 0.0
          %3906 = vmatmul.mubr.f32.gmra.mrb[0].mxu0 %v3808
          %v3907 = vpop.f32.mrb[0].mxu0
          %v3908 = vadd.f32 0.0, %v3907
          %v3909 = vpop.f32.mrb[0].mxu0
          %3910 = vmatprep.mubr.f32.mxu0 0.0
          %3911 = vmatmul.mubr.f32.gmra.mrb[0].mxu0 %v3811
          %v3912 = vpop.f32.mrb[0].mxu0
          %v3913 = vadd.f32 0.0, %v3912
          %v3914 = vpop.f32.mrb[0].mxu0
          %3915 = vmatprep.mubr.f32.mxu0 0.0
          %3916 = vmatmul.mubr.f32.gmra.mrb[0].mxu0 %v3814
          %v3917 = vpop.f32.mrb[0].mxu0
          %v3918 = vadd.f32 0.0, %v3917
          %v3919 = vpop.f32.mrb[0].mxu0
          %3920 = vdwg.mxu0
          %v3921 = vadd.f32 %v3678, %v3883
          %v3922 = vadd.f32 %v3683, %v3888
          %v3923 = vadd.f32 %v3688, %v3893
          %v3924 = vadd.f32 %v3693, %v3898
          %v3925 = vadd.f32 %v3698, %v3903
          %v3926 = vadd.f32 %v3703, %v3908
          %v3927 = vadd.f32 %v3708, %v3913
          %v3928 = vadd.f32 %v3713, %v3918
          %v3929 = vld [vmem:[%s3019] sm:$0xff]
          %v3930 = vld [vmem:[%s3019 + $0x8] sm:$0xff]
          %v3931 = vld [vmem:[%s3019 + $0x10] sm:$0xff]
          %v3932 = vld [vmem:[%s3019 + $0x18] sm:$0xff]
          %v3933 = vld [vmem:[%s3019 + $0x20] sm:$0xff]
          %v3934 = vld [vmem:[%s3019 + $0x28] sm:$0xff]
          %v3935 = vld [vmem:[%s3019 + $0x30] sm:$0xff]
          %v3936 = vld [vmem:[%s3019 + $0x38] sm:$0xff]
          %v3937 = vrcp.pop %v3929
          %v3938 = vrcp.pop %v3930
          %v3939 = vrcp.pop %v3931
          %v3940 = vrcp.pop %v3932
          %v3941 = vrcp.pop %v3933
          %v3942 = vrcp.pop %v3934
          %v3943 = vrcp.pop %v3935
          %v3944 = vrcp.pop %v3936
          %v3945 = vld [vmem:[%s3068] sm:$0xff]
          %v3946 = vld [vmem:[%s3068 + $0x8] sm:$0xff]
          %v3947 = vld [vmem:[%s3068 + $0x10] sm:$0xff]
          %v3948 = vld [vmem:[%s3068 + $0x18] sm:$0xff]
          %v3949 = vld [vmem:[%s3068 + $0x20] sm:$0xff]
          %v3950 = vld [vmem:[%s3068 + $0x28] sm:$0xff]
          %v3951 = vld [vmem:[%s3068 + $0x30] sm:$0xff]
          %v3952 = vld [vmem:[%s3068 + $0x38] sm:$0xff]
          %3954 = vset.pattern.permute.xlu0 0
          %3955 = vperm.xlu0 %3954, %v3937
          %v3956 = vpop.permute.xlu0 %3955
          %3959 = vset.pattern.permute.xlu0 0
          %3960 = vperm.xlu0 %3959, %v3938
          %v3961 = vpop.permute.xlu0 %3960
          %3964 = vset.pattern.permute.xlu0 0
          %3965 = vperm.xlu0 %3964, %v3939
          %v3966 = vpop.permute.xlu0 %3965
          %3969 = vset.pattern.permute.xlu0 0
          %3970 = vperm.xlu0 %3969, %v3940
          %v3971 = vpop.permute.xlu0 %3970
          %3974 = vset.pattern.permute.xlu0 0
          %3975 = vperm.xlu0 %3974, %v3941
          %v3976 = vpop.permute.xlu0 %3975
          %3979 = vset.pattern.permute.xlu0 0
          %3980 = vperm.xlu0 %3979, %v3942
          %v3981 = vpop.permute.xlu0 %3980
          %3984 = vset.pattern.permute.xlu0 0
          %3985 = vperm.xlu0 %3984, %v3943
          %v3986 = vpop.permute.xlu0 %3985
          %3989 = vset.pattern.permute.xlu0 0
          %3990 = vperm.xlu0 %3989, %v3944
          %v3991 = vpop.permute.xlu0 %3990
          %v3993 = vmul.f32 %v3945, %v3956
          %v3994 = vmul.f32 %v3946, %v3961
          %v3995 = vmul.f32 %v3947, %v3966
          %v3996 = vmul.f32 %v3948, %v3971
          %v3997 = vmul.f32 %v3949, %v3976
          %v3998 = vmul.f32 %v3950, %v3981
          %v3999 = vmul.f32 %v3951, %v3986
          %v4000 = vmul.f32 %v3952, %v3991
          %v4001 = vld [vmem:[#allocation16 + $0x60] sm:$0xff]
          %v4002 = vld [vmem:[#allocation16 + $0x68] sm:$0xff]
          %v4003 = vld [vmem:[#allocation16 + $0x70] sm:$0xff]
          %v4004 = vld [vmem:[#allocation16 + $0x78] sm:$0xff]
          %v4006 = vsel %vm939, %v3993, 0
          %v4009 = vsel %vm939, %v3994, 0
          %v4012 = vsel %vm939, %v3995, 0
          %v4015 = vsel %vm939, %v3996, 0
          %v4018 = vsel %vm939, %v3997, 0
          %v4021 = vsel %vm939, %v3998, 0
          %v4024 = vsel %vm939, %v3999, 0
          %v4027 = vsel %vm939, %v4000, 0
          %4029 = vmatprep.subr.mxu0 0.0
          %4030 = vmatpush1.msra.mxu0 %v4001
          %4031 = vmatprep.subr.mxu0 0.0
          %4032 = vmatpush1.msra.mxu0 %v4002
          %4033 = vmatprep.subr.mxu0 0.0
          %4034 = vmatpush1.msra.mxu0 %v4003
          %4035 = vmatprep.subr.mxu0 0.0
          %4036 = vmatpush1.msra.mxu0 %v4004
          %4037 = vmatprep.subr.mxu0 0.0
          %4038 = vmatpush1.msra.mxu0 0.0
          %4039 = vmatprep.subr.mxu0 0.0
          %4040 = vmatpush1.msra.mxu0 0.0
          %4041 = vmatprep.subr.mxu0 0.0
          %4042 = vmatpush1.msra.mxu0 0.0
          %4043 = vmatprep.subr.mxu0 0.0
          %4044 = vmatpush1.msra.mxu0 0.0
          %4045 = vmatprep.subr.mxu0 0.0
          %4046 = vmatpush1.msra.mxu0 0.0
          %4047 = vmatprep.subr.mxu0 0.0
          %4048 = vmatpush1.msra.mxu0 0.0
          %4049 = vmatprep.subr.mxu0 0.0
          %4050 = vmatpush1.msra.mxu0 0.0
          %4051 = vmatprep.subr.mxu0 0.0
          %4052 = vmatpush1.msra.mxu0 0.0
          %4053 = vmatprep.subr.mxu0 0.0
          %4054 = vmatpush1.msra.mxu0 0.0
          %4055 = vmatprep.subr.mxu0 0.0
          %4056 = vmatpush1.msra.mxu0 0.0
          %4057 = vmatprep.subr.mxu0 0.0
          %4058 = vmatpush1.msra.mxu0 0.0
          %4059 = vmatprep.subr.mxu0 0.0
          %4060 = vmatpush1.msra.mxu0 0.0
          %4061 = vmatprep.subr.mxu0 0.0
          %4062 = vmatpush1.msra.mxu0 0.0
          %4063 = vmatprep.subr.mxu0 0.0
          %4064 = vmatpush1.msra.mxu0 0.0
          %4065 = vmatprep.subr.mxu0 0.0
          %4066 = vmatpush1.msra.mxu0 0.0
          %4067 = vmatprep.subr.mxu0 0.0
          %4068 = vmatpush1.msra.mxu0 0.0
          %4069 = vmatprep.subr.mxu0 0.0
          %4070 = vmatpush1.msra.mxu0 0.0
          %4071 = vmatprep.subr.mxu0 0.0
          %4072 = vmatpush1.msra.mxu0 0.0
          %4073 = vmatprep.subr.mxu0 0.0
          %4074 = vmatpush1.msra.mxu0 0.0
          %4075 = vmatprep.subr.mxu0 0.0
          %4076 = vmatpush1.msra.mxu0 0.0
          %4077 = vmatprep.subr.mxu0 0.0
          %4078 = vmatpush1.msra.mxu0 0.0
          %4079 = vmatprep.subr.mxu0 0.0
          %4080 = vmatpush1.msra.mxu0 0.0
          %4081 = vmatprep.subr.mxu0 0.0
          %4082 = vmatpush1.msra.mxu0 0.0
          %4083 = vmatprep.subr.mxu0 0.0
          %4084 = vmatpush1.msra.mxu0 0.0
          %4085 = vmatprep.subr.mxu0 0.0
          %4086 = vmatpush1.msra.mxu0 0.0
          %4087 = vmatprep.subr.mxu0 0.0
          %4088 = vmatpush1.msra.mxu0 0.0
          %4089 = vmatprep.subr.mxu0 0.0
          %4090 = vmatpush1.msra.mxu0 0.0
          %4091 = vmatprep.subr.mxu0 0.0
          %4092 = vmatpush1.msra.mxu0 0.0
          %4093 = vmatprep.mubr.f32.mxu0 0.0
          %4094 = vmatmul.mubr.f32.gmra.mrb[0].mxu0 %v4006
          %v4095 = vpop.f32.mrb[0].mxu0
          %v4096 = vadd.f32 0.0, %v4095
          %v4097 = vpop.f32.mrb[0].mxu0
          %4098 = vmatprep.mubr.f32.mxu0 0.0
          %4099 = vmatmul.mubr.f32.gmra.mrb[0].mxu0 %v4009
          %v4100 = vpop.f32.mrb[0].mxu0
          %v4101 = vadd.f32 0.0, %v4100
          %v4102 = vpop.f32.mrb[0].mxu0
          %4103 = vmatprep.mubr.f32.mxu0 0.0
          %4104 = vmatmul.mubr.f32.gmra.mrb[0].mxu0 %v4012
          %v4105 = vpop.f32.mrb[0].mxu0
          %v4106 = vadd.f32 0.0, %v4105
          %v4107 = vpop.f32.mrb[0].mxu0
          %4108 = vmatprep.mubr.f32.mxu0 0.0
          %4109 = vmatmul.mubr.f32.gmra.mrb[0].mxu0 %v4015
          %v4110 = vpop.f32.mrb[0].mxu0
          %v4111 = vadd.f32 0.0, %v4110
          %v4112 = vpop.f32.mrb[0].mxu0
          %4113 = vmatprep.mubr.f32.mxu0 0.0
          %4114 = vmatmul.mubr.f32.gmra.mrb[0].mxu0 %v4018
          %v4115 = vpop.f32.mrb[0].mxu0
          %v4116 = vadd.f32 0.0, %v4115
          %v4117 = vpop.f32.mrb[0].mxu0
          %4118 = vmatprep.mubr.f32.mxu0 0.0
          %4119 = vmatmul.mubr.f32.gmra.mrb[0].mxu0 %v4021
          %v4120 = vpop.f32.mrb[0].mxu0
          %v4121 = vadd.f32 0.0, %v4120
          %v4122 = vpop.f32.mrb[0].mxu0
          %4123 = vmatprep.mubr.f32.mxu0 0.0
          %4124 = vmatmul.mubr.f32.gmra.mrb[0].mxu0 %v4024
          %v4125 = vpop.f32.mrb[0].mxu0
          %v4126 = vadd.f32 0.0, %v4125
          %v4127 = vpop.f32.mrb[0].mxu0
          %4128 = vmatprep.mubr.f32.mxu0 0.0
          %4129 = vmatmul.mubr.f32.gmra.mrb[0].mxu0 %v4027
          %v4130 = vpop.f32.mrb[0].mxu0
          %v4131 = vadd.f32 0.0, %v4130
          %v4132 = vpop.f32.mrb[0].mxu0
          %4133 = vdwg.mxu0
          %v4134 = vadd.f32 %v3921, %v4096
          %v4135 = vadd.f32 %v3922, %v4101
          %v4136 = vadd.f32 %v3923, %v4106
          %v4137 = vadd.f32 %v3924, %v4111
          %v4138 = vadd.f32 %v3925, %v4116
          %v4139 = vadd.f32 %v3926, %v4121
          %v4140 = vadd.f32 %v3927, %v4126
          %v4141 = vadd.f32 %v3928, %v4131
          %v4142 = vld [vmem:[#allocation17] sm:$0x1]
          %v4144 = vlaneseq
          %v4145 = vshrl.u32 %v4144, 7
          %v4146 = vsub.s32 0, %v4145
          %v4147 = vrot.slane %v4142, %v4146
          %v4149 = vadd.f32 %v4134, %v4147
          %v4150 = vadd.f32 %v4135, %v4147
          %v4151 = vadd.f32 %v4136, %v4147
          %v4152 = vadd.f32 %v4137, %v4147
          %v4153 = vadd.f32 %v4138, %v4147
          %v4154 = vadd.f32 %v4139, %v4147
          %v4155 = vadd.f32 %v4140, %v4147
          %v4156 = vadd.f32 %v4141, %v4147
          %4157 = vst [vmem:[%s473] sm:$0xff] %v4149
          %4158 = vst [vmem:[%s473 + $0x8] sm:$0xff] %v4150
          %4159 = vst [vmem:[%s473 + $0x10] sm:$0xff] %v4151
          %4160 = vst [vmem:[%s473 + $0x18] sm:$0xff] %v4152
          %4161 = vst [vmem:[%s473 + $0x20] sm:$0xff] %v4153
          %4162 = vst [vmem:[%s473 + $0x28] sm:$0xff] %v4154
          %4163 = vst [vmem:[%s473 + $0x30] sm:$0xff] %v4155
          %4164 = vst [vmem:[%s473 + $0x38] sm:$0xff] %v4156
        $region92: #{tpu_custom_call.1} parent=51 // pred_fallthru
          _
        %s4165 = sand.u32 %s242, 1
        %s4166 = scalar_lea.sflag [#allocation7], %s4165
        %s4167 = sand.u32 %s242, 1
        %s4168 = smul.addr %s4167, 64
        %s4169 = scalar_lea.vmem [#allocation19], %s4168
        // Predicated region
        $region93: #{tpu_custom_call.1} parent=51 // pred_check
          %p4170 = pneg %p252
        $region94: #{tpu_custom_call.1} parent=51 // pred_check_branch
          %4172 = sbr.rel (%p4170) target = $region96
        $region95: #{tpu_custom_call.1} parent=51 // pred_region
          %s4173 = smul.u32 8, %s37
          %s4175 = ssub.s32 1024, 1024
          %4176 = vsyncadd %s4166, %s4175
          %s4177 = smul.addr %s36, 16
          %s4178 = sadd.s32 %s4173, %s4177
          %s4179 = smul.addr %s4178, 128
          %s4180 = scalar_lea.hbm %s8, %s4179
          %s4181 = sshll.u32 %s4169, 4
          %s4182 = int_to_ptr.vmem [resolvable:$true] %s4181
          %4187 = dma.vmem_to_hbm [thread:$0]  %s4182, 1024, %s4180, %s4166, 128, 128, 8
        $region96: #{tpu_custom_call.1} parent=51 // pred_fallthru
          _
      $region52: #{tpu_custom_call.1} parent=5 // pred_fallthru
        _
      %p4188 = scmp.le.s32.totalorder 2, %s26
      // Predicated region
      $region97: #{tpu_custom_call.1} parent=5 // pred_check
        %p4189 = pneg %p4188
      $region98: #{tpu_custom_call.1} parent=5 // pred_check_branch
        %4191 = sbr.rel (%p4189) target = $region100
      $region99: #{tpu_custom_call.1} parent=5 // pred_region
        %s4192 = ssub.s32 %s26, 2
        // Predicated region
        $region101: #{tpu_custom_call.1} parent=99 // pred_check
          %p4193 = pneg %p258
        $region102: #{tpu_custom_call.1} parent=99 // pred_check_branch
          %4195 = sbr.rel (%p4193) target = $region104
        $region103: #{tpu_custom_call.1} parent=99 // pred_region
          %s4196 = sand.u32 %s243, 1
          %s4197 = scalar_lea.sflag [#allocation7], %s4196
          %s4198 = sand.u32 %s243, 1
          %s4199 = smul.addr %s4198, 64
          %s4200 = scalar_lea.vmem [#allocation19], %s4199
          %4201 = dma.done %s4197, 1024
        $region104: #{tpu_custom_call.1} parent=99 // pred_fallthru
          _
      $region100: #{tpu_custom_call.1} parent=5 // pred_fallthru
        _
    $region6: #{tpu_custom_call.1} parent=1 // loop_footer
      %s30 = sadd.s32 1, %s26
    $region7: #{tpu_custom_call.1} parent=1 // loop_footer_branch
      %25 = sbr.rel target = $region3
    $region8: #{tpu_custom_call.1} parent=1 // loop_exit
      _
    %4202 = vsyncpa [#allocation6], 1
    %s4203 = scalar_lea.sflag [#allocation6], 1
    %4204 = vsyncpa %s4203, 1
    %4205 = vsyncpa [#allocation9], 1
    %s4206 = scalar_lea.sflag [#allocation9], 1
    %4207 = vsyncpa %s4206, 1
    %4208 = vsyncpa [#allocation12], 1
    %4209 = vsyncpa [#allocation15], 1
    %4210 = vsyncpa [#allocation18], 1
    %4211 = vsyncpa [#allocation7], 1
    %s4212 = scalar_lea.sflag [#allocation7], 1
    %4213 = vsyncpa %s4212, 1

</llo_original>
